<compile_context>
chip_gen: v6e
topology: v6e:2x2x1
jax: 0.10.0
libtpu: 0.0.40
codegen_flags: <defaults>
</compile_context>

<pallas_src>
import jax
import jax.numpy as jnp
from jax import lax
from jax.experimental import pallas as pl
from jax.experimental.pallas import tpu as pltpu


def tanformer_head_kernel(anchor_smem,          # SMEM (B,)  int32: round(mass)+mass_shift
                          anchors_ref,          # VMEM (B,1) int32 (same values)
                          pool_ref, x_ref,      # [B,N], [N,Eg]
                          wbn_ref, bbn_ref,     # [Eg,E], [1,E]
                          wskip_ref, bskip_ref,  # [14,E,E], [14,1,E]
                          wf_ref, bf_ref,       # [E,O], [1,O]
                          wb_ref, bb_ref,       # [E,O], [1,O]
                          wg_ref, bg_ref,       # [E,O], [1,O]
                          rev_mat_ref,          # [O,O] f32: R[k,j]=[k+j==O-1]
                          out_ref):             # [B,O]
    f32 = jnp.float32
    B, O = out_ref.shape

    # gap: per-graph mean pooling expressed as a matmul with the pooling matrix.
    hidden = jnp.dot(pool_ref[...], x_ref[...], preferred_element_type=f32)

    # bottleneck linear
    hidden = jnp.dot(hidden, wbn_ref[...], preferred_element_type=f32) + bbn_ref[...]

    # 7 residual SKIP blocks (statically unrolled; all weights resident in VMEM
    # at these toy sizes -- production NEIMS sizes would need weight streaming).
    for i in range(7):
        w1 = wskip_ref[2 * i]
        b1 = bskip_ref[2 * i]
        w2 = wskip_ref[2 * i + 1]
        b2 = bskip_ref[2 * i + 1]
        t = jnp.maximum(jnp.dot(hidden, w1, preferred_element_type=f32) + b1, 0.0)
        hidden = hidden + jnp.dot(t, w2, preferred_element_type=f32) + b2

    hidden = jnp.maximum(hidden, 0.0)  # relu_out_resnet

    fwd = jnp.dot(hidden, wf_ref[...], preferred_element_type=f32) + bf_ref[...]
    bwd = jnp.dot(hidden, wb_ref[...], preferred_element_type=f32) + bb_ref[...]
    gate = jax.nn.sigmoid(
        jnp.dot(hidden, wg_ref[...], preferred_element_type=f32) + bg_ref[...])

    # --- spectrum reversal ---------------------------------------------------
    # Step 1 (MXU, batched): full lane reversal  bwd_rev[b, j] = bwd[b, O-1-j].
    bwd_rev = jnp.dot(bwd, rev_mat_ref[...], preferred_element_type=f32)

    # Step 2 (XLU): per-graph circular shift so that
    #   rev[b, m] = bwd_rev[b, (m + (O-1-anchor_b)) mod O] = bwd[b, anchor_b - m].
    # With roll semantics out[m] = x[(m - shift) mod O], shift = (anchor_b+1) mod O.
    # Wrap-around garbage (m > anchor_b) is zeroed by the mass mask below.
    # Each iteration only keeps ~6 live vregs, so a static unroll is safe.
    row_iota = lax.broadcasted_iota(jnp.int32, (B, 1), 0)
    rev = jnp.zeros((B, O), f32)
    for b in range(B):
        anchor = anchor_smem[b]
        shift = lax.rem(anchor + 1, jnp.int32(O))
        rolled = pltpu.roll(bwd_rev, shift, axis=1)        # whole tile, this row's shift
        sel = (row_iota == b).astype(f32)                  # pick out row b
        rev = rev + rolled * sel

    # --- vectorized epilogue: mass mask, gate mix, relu, one full-tile store --
    lane_iota = lax.broadcasted_iota(jnp.int32, (B, O), 1)
    mask = (lane_iota <= anchors_ref[...]).astype(f32)     # [B,O]
    out = mask * (gate * fwd + (1.0 - gate) * rev)
    out_ref[...] = jnp.maximum(out, 0.0).astype(out_ref.dtype)


def tanformer_conv_head(params, x, batch_index, molecular_weight, mass_shift, num_graphs):
    N, _ = x.shape
    B = num_graphs
    O = params["w_forward"].shape[1]

    # Glue: build the gap pooling matrix, integer mass anchors, and the constant
    # reversal matrix (hoisted out of the kernel).
    one_hot = (batch_index[None, :] == jnp.arange(B)[:, None]).astype(jnp.float32)
    counts = jnp.maximum(one_hot.sum(axis=1, keepdims=True), 1.0)
    pool_mat = one_hot / counts                                          # [B, N]
    anchors = jnp.round(molecular_weight).astype(jnp.int32) + jnp.int32(mass_shift)
    rev_mat = jnp.fliplr(jnp.eye(O, dtype=jnp.float32))                  # R[k,j]=[k+j==O-1]

    vmem = pl.BlockSpec(memory_space=pltpu.MemorySpace.VMEM)
    smem = pl.BlockSpec(memory_space=pltpu.MemorySpace.SMEM)

    out = pl.pallas_call(
        tanformer_head_kernel,
        out_shape=jax.ShapeDtypeStruct((B, O), jnp.float32),
        in_specs=[smem] + [vmem] * 14,
        out_specs=vmem,
    )(anchors, anchors[:, None], pool_mat, x,
      params["w_bottleneck"], params["b_bottleneck"],
      params["w_skip"], params["b_skip"],
      params["w_forward"], params["b_forward"],
      params["w_backward"], params["b_backward"],
      params["w_gate"], params["b_gate"],
      rev_mat)

    # TODO(synk): torch casts to float64; TPU has no native f64 (JAX x64 off by
    # default), so this astype is a semantic marker only.
    return out.astype(jnp.float64)


def reference(params, x, batch_index, molecular_weight, mass_shift, num_graphs):
    """Pure-JAX reference for validation."""
    B = num_graphs
    one_hot = (batch_index[None, :] == jnp.arange(B)[:, None]).astype(jnp.float32)
    pool = one_hot / jnp.maximum(one_hot.sum(axis=1, keepdims=True), 1.0)
    h = pool @ x
    h = h @ params["w_bottleneck"] + params["b_bottleneck"][0]
    for i in range(7):
        t = jax.nn.relu(h @ params["w_skip"][2 * i] + params["b_skip"][2 * i][0])
        h = h + t @ params["w_skip"][2 * i + 1] + params["b_skip"][2 * i + 1][0]
    h = jax.nn.relu(h)
    fwd = h @ params["w_forward"] + params["b_forward"][0]
    bwd = h @ params["w_backward"] + params["b_backward"][0]
    gate = jax.nn.sigmoid(h @ params["w_gate"] + params["b_gate"][0])
    anchors = jnp.round(molecular_weight).astype(jnp.int32) + mass_shift
    O = fwd.shape[1]
    idx = jnp.arange(O)[None, :]
    fwd = fwd * (idx <= anchors[:, None]).astype(jnp.float32)
    src = anchors[:, None] - idx
    valid = ((src >= 0) & (src < O)).astype(jnp.float32)
    rev = jnp.take_along_axis(bwd, jnp.clip(src, 0, O - 1), axis=1) * valid
    out = gate * fwd + (1.0 - gate) * rev
    return jax.nn.relu(out)


def init_params(key, e_gnn, e, o):
    ks = jax.random.split(key, 12)
    s = 0.05
    return {
        "w_bottleneck": s * jax.random.normal(ks[0], (e_gnn, e), jnp.float32),
        "b_bottleneck": s * jax.random.normal(ks[1], (1, e), jnp.float32),
        "w_skip":       s * jax.random.normal(ks[2], (14, e, e), jnp.float32),
        "b_skip":       s * jax.random.normal(ks[3], (14, 1, e), jnp.float32),
        "w_forward":    s * jax.random.normal(ks[4], (e, o), jnp.float32),
        "b_forward":    s * jax.random.normal(ks[5], (1, o), jnp.float32),
        "w_backward":   s * jax.random.normal(ks[6], (e, o), jnp.float32),
        "b_backward":   s * jax.random.normal(ks[7], (1, o), jnp.float32),
        "w_gate":       s * jax.random.normal(ks[8], (e, o), jnp.float32),
        "b_gate":       s * jax.random.normal(ks[9], (1, o), jnp.float32),
    }


if __name__ == "__main__":
    # Small, (8,128)-friendly shapes.
    N_NODES, NUM_GRAPHS = 32, 8
    E_GNN, E, O = 64, 128, 256
    MASS_SHIFT = 5

    key = jax.random.PRNGKey(0)
    k_param, k_x, k_mass = jax.random.split(key, 3)

    params = init_params(k_param, E_GNN, E, O)
    x = jax.random.normal(k_x, (N_NODES, E_GNN), jnp.float32)        # node features
    batch_index = jnp.repeat(jnp.arange(NUM_GRAPHS, dtype=jnp.int32), N_NODES // NUM_GRAPHS)
    molecular_weight = jax.random.uniform(k_mass, (NUM_GRAPHS,), jnp.float32, 50.0, 200.0)

    out = tanformer_conv_head(params, x, batch_index, molecular_weight,
                              MASS_SHIFT, NUM_GRAPHS)
    out = jax.block_until_ready(out)

    ref = reference(params, x, batch_index, molecular_weight, MASS_SHIFT, NUM_GRAPHS)
    assert out.shape == (NUM_GRAPHS, O)
    assert jnp.allclose(out.astype(jnp.float32), ref, atol=1e-3, rtol=1e-3), (
        "mismatch vs pure-JAX reference")

    print("KERNEL_OK")
</pallas_src>

<mosaic_0001>
module attributes {stable_mosaic.version = 11 : i64} {
  func.func @tanformer_head_kernel(%arg0: memref<8xi32, #tpu.memory_space<smem>>, %arg1: memref<8x1xi32, #tpu.memory_space<vmem>>, %arg2: memref<8x32xf32, #tpu.memory_space<vmem>>, %arg3: memref<32x64xf32, #tpu.memory_space<vmem>>, %arg4: memref<64x128xf32, #tpu.memory_space<vmem>>, %arg5: memref<1x128xf32, #tpu.memory_space<vmem>>, %arg6: memref<14x128x128xf32, #tpu.memory_space<vmem>>, %arg7: memref<14x1x128xf32, #tpu.memory_space<vmem>>, %arg8: memref<128x256xf32, #tpu.memory_space<vmem>>, %arg9: memref<1x256xf32, #tpu.memory_space<vmem>>, %arg10: memref<128x256xf32, #tpu.memory_space<vmem>>, %arg11: memref<1x256xf32, #tpu.memory_space<vmem>>, %arg12: memref<128x256xf32, #tpu.memory_space<vmem>>, %arg13: memref<1x256xf32, #tpu.memory_space<vmem>>, %arg14: memref<256x256xf32, #tpu.memory_space<vmem>>, %arg15: memref<8x256xf32, #tpu.memory_space<vmem>>) attributes {dimension_semantics = [], scalar_prefetch = 0 : i64, scratch_operands = 0 : i64, tpu.core_type = #tpu.core_type<tc>} {
    %c0 = arith.constant 0 : index
    %c0_0 = arith.constant 0 : index
    %0 = vector.load %arg2[%c0, %c0_0] : memref<8x32xf32, #tpu.memory_space<vmem>>, vector<8x32xf32>
    %c0_1 = arith.constant 0 : index
    %c0_2 = arith.constant 0 : index
    %1 = vector.load %arg3[%c0_1, %c0_2] : memref<32x64xf32, #tpu.memory_space<vmem>>, vector<32x64xf32>
    %cst = arith.constant dense<0.000000e+00> : vector<8x64xf32>
    %2 = tpu.matmul %0, %1, %cst {dimension_numbers = #tpu.dot_dimension_numbers<[1], [0], [0], [1], [0, 0, 1, 1], [], []>} : vector<8x32xf32>, vector<32x64xf32>, vector<8x64xf32> -> vector<8x64xf32>
    %c0_3 = arith.constant 0 : index
    %c0_4 = arith.constant 0 : index
    %3 = vector.load %arg4[%c0_3, %c0_4] : memref<64x128xf32, #tpu.memory_space<vmem>>, vector<64x128xf32>
    %cst_5 = arith.constant dense<0.000000e+00> : vector<8x128xf32>
    %4 = tpu.matmul %2, %3, %cst_5 {dimension_numbers = #tpu.dot_dimension_numbers<[1], [0], [0], [1], [0, 0, 1, 1], [], []>} : vector<8x64xf32>, vector<64x128xf32>, vector<8x128xf32> -> vector<8x128xf32>
    %c0_6 = arith.constant 0 : index
    %c0_7 = arith.constant 0 : index
    %5 = vector.load %arg5[%c0_6, %c0_7] : memref<1x128xf32, #tpu.memory_space<vmem>>, vector<1x128xf32>
    %6 = vector.broadcast %5 : vector<1x128xf32> to vector<8x128xf32>
    %7 = arith.addf %4, %6 : vector<8x128xf32>
    %c0_8 = arith.constant 0 : index
    %c0_9 = arith.constant 0 : index
    %c0_10 = arith.constant 0 : index
    %8 = vector.load %arg6[%c0_8, %c0_9, %c0_10] : memref<14x128x128xf32, #tpu.memory_space<vmem>>, vector<1x128x128xf32>
    %9 = vector.shape_cast %8 : vector<1x128x128xf32> to vector<128x128xf32>
    %c0_11 = arith.constant 0 : index
    %c0_12 = arith.constant 0 : index
    %c0_13 = arith.constant 0 : index
    %10 = vector.load %arg7[%c0_11, %c0_12, %c0_13] : memref<14x1x128xf32, #tpu.memory_space<vmem>>, vector<1x1x128xf32>
    %11 = vector.shape_cast %10 : vector<1x1x128xf32> to vector<1x128xf32>
    %c1 = arith.constant 1 : index
    %c0_14 = arith.constant 0 : index
    %c0_15 = arith.constant 0 : index
    %12 = vector.load %arg6[%c1, %c0_14, %c0_15] : memref<14x128x128xf32, #tpu.memory_space<vmem>>, vector<1x128x128xf32>
    %13 = vector.shape_cast %12 : vector<1x128x128xf32> to vector<128x128xf32>
    %c1_16 = arith.constant 1 : index
    %c0_17 = arith.constant 0 : index
    %c0_18 = arith.constant 0 : index
    %14 = vector.load %arg7[%c1_16, %c0_17, %c0_18] : memref<14x1x128xf32, #tpu.memory_space<vmem>>, vector<1x1x128xf32>
    %15 = vector.shape_cast %14 : vector<1x1x128xf32> to vector<1x128xf32>
    %cst_19 = arith.constant dense<0.000000e+00> : vector<8x128xf32>
    %16 = tpu.matmul %7, %9, %cst_19 {dimension_numbers = #tpu.dot_dimension_numbers<[1], [0], [0], [1], [0, 0, 1, 1], [], []>} : vector<8x128xf32>, vector<128x128xf32>, vector<8x128xf32> -> vector<8x128xf32>
    %17 = vector.broadcast %11 : vector<1x128xf32> to vector<8x128xf32>
    %18 = arith.addf %16, %17 : vector<8x128xf32>
    %cst_20 = arith.constant 0.000000e+00 : f32
    %19 = vector.broadcast %cst_20 : f32 to vector<8x128xf32>
    %20 = arith.maximumf %18, %19 : vector<8x128xf32>
    %cst_21 = arith.constant dense<0.000000e+00> : vector<8x128xf32>
    %21 = tpu.matmul %20, %13, %cst_21 {dimension_numbers = #tpu.dot_dimension_numbers<[1], [0], [0], [1], [0, 0, 1, 1], [], []>} : vector<8x128xf32>, vector<128x128xf32>, vector<8x128xf32> -> vector<8x128xf32>
    %22 = arith.addf %7, %21 : vector<8x128xf32>
    %23 = vector.broadcast %15 : vector<1x128xf32> to vector<8x128xf32>
    %24 = arith.addf %22, %23 : vector<8x128xf32>
    %c2 = arith.constant 2 : index
    %c0_22 = arith.constant 0 : index
    %c0_23 = arith.constant 0 : index
    %25 = vector.load %arg6[%c2, %c0_22, %c0_23] : memref<14x128x128xf32, #tpu.memory_space<vmem>>, vector<1x128x128xf32>
    %26 = vector.shape_cast %25 : vector<1x128x128xf32> to vector<128x128xf32>
    %c2_24 = arith.constant 2 : index
    %c0_25 = arith.constant 0 : index
    %c0_26 = arith.constant 0 : index
    %27 = vector.load %arg7[%c2_24, %c0_25, %c0_26] : memref<14x1x128xf32, #tpu.memory_space<vmem>>, vector<1x1x128xf32>
    %28 = vector.shape_cast %27 : vector<1x1x128xf32> to vector<1x128xf32>
    %c3 = arith.constant 3 : index
    %c0_27 = arith.constant 0 : index
    %c0_28 = arith.constant 0 : index
    %29 = vector.load %arg6[%c3, %c0_27, %c0_28] : memref<14x128x128xf32, #tpu.memory_space<vmem>>, vector<1x128x128xf32>
    %30 = vector.shape_cast %29 : vector<1x128x128xf32> to vector<128x128xf32>
    %c3_29 = arith.constant 3 : index
    %c0_30 = arith.constant 0 : index
    %c0_31 = arith.constant 0 : index
    %31 = vector.load %arg7[%c3_29, %c0_30, %c0_31] : memref<14x1x128xf32, #tpu.memory_space<vmem>>, vector<1x1x128xf32>
    %32 = vector.shape_cast %31 : vector<1x1x128xf32> to vector<1x128xf32>
    %cst_32 = arith.constant dense<0.000000e+00> : vector<8x128xf32>
    %33 = tpu.matmul %24, %26, %cst_32 {dimension_numbers = #tpu.dot_dimension_numbers<[1], [0], [0], [1], [0, 0, 1, 1], [], []>} : vector<8x128xf32>, vector<128x128xf32>, vector<8x128xf32> -> vector<8x128xf32>
    %34 = vector.broadcast %28 : vector<1x128xf32> to vector<8x128xf32>
    %35 = arith.addf %33, %34 : vector<8x128xf32>
    %cst_33 = arith.constant 0.000000e+00 : f32
    %36 = vector.broadcast %cst_33 : f32 to vector<8x128xf32>
    %37 = arith.maximumf %35, %36 : vector<8x128xf32>
    %cst_34 = arith.constant dense<0.000000e+00> : vector<8x128xf32>
    %38 = tpu.matmul %37, %30, %cst_34 {dimension_numbers = #tpu.dot_dimension_numbers<[1], [0], [0], [1], [0, 0, 1, 1], [], []>} : vector<8x128xf32>, vector<128x128xf32>, vector<8x128xf32> -> vector<8x128xf32>
    %39 = arith.addf %24, %38 : vector<8x128xf32>
    %40 = vector.broadcast %32 : vector<1x128xf32> to vector<8x128xf32>
    %41 = arith.addf %39, %40 : vector<8x128xf32>
    %c4 = arith.constant 4 : index
    %c0_35 = arith.constant 0 : index
    %c0_36 = arith.constant 0 : index
    %42 = vector.load %arg6[%c4, %c0_35, %c0_36] : memref<14x128x128xf32, #tpu.memory_space<vmem>>, vector<1x128x128xf32>
    %43 = vector.shape_cast %42 : vector<1x128x128xf32> to vector<128x128xf32>
    %c4_37 = arith.constant 4 : index
    %c0_38 = arith.constant 0 : index
    %c0_39 = arith.constant 0 : index
    %44 = vector.load %arg7[%c4_37, %c0_38, %c0_39] : memref<14x1x128xf32, #tpu.memory_space<vmem>>, vector<1x1x128xf32>
    %45 = vector.shape_cast %44 : vector<1x1x128xf32> to vector<1x128xf32>
    %c5 = arith.constant 5 : index
    %c0_40 = arith.constant 0 : index
    %c0_41 = arith.constant 0 : index
    %46 = vector.load %arg6[%c5, %c0_40, %c0_41] : memref<14x128x128xf32, #tpu.memory_space<vmem>>, vector<1x128x128xf32>
    %47 = vector.shape_cast %46 : vector<1x128x128xf32> to vector<128x128xf32>
    %c5_42 = arith.constant 5 : index
    %c0_43 = arith.constant 0 : index
    %c0_44 = arith.constant 0 : index
    %48 = vector.load %arg7[%c5_42, %c0_43, %c0_44] : memref<14x1x128xf32, #tpu.memory_space<vmem>>, vector<1x1x128xf32>
    %49 = vector.shape_cast %48 : vector<1x1x128xf32> to vector<1x128xf32>
    %cst_45 = arith.constant dense<0.000000e+00> : vector<8x128xf32>
    %50 = tpu.matmul %41, %43, %cst_45 {dimension_numbers = #tpu.dot_dimension_numbers<[1], [0], [0], [1], [0, 0, 1, 1], [], []>} : vector<8x128xf32>, vector<128x128xf32>, vector<8x128xf32> -> vector<8x128xf32>
    %51 = vector.broadcast %45 : vector<1x128xf32> to vector<8x128xf32>
    %52 = arith.addf %50, %51 : vector<8x128xf32>
    %cst_46 = arith.constant 0.000000e+00 : f32
    %53 = vector.broadcast %cst_46 : f32 to vector<8x128xf32>
    %54 = arith.maximumf %52, %53 : vector<8x128xf32>
    %cst_47 = arith.constant dense<0.000000e+00> : vector<8x128xf32>
    %55 = tpu.matmul %54, %47, %cst_47 {dimension_numbers = #tpu.dot_dimension_numbers<[1], [0], [0], [1], [0, 0, 1, 1], [], []>} : vector<8x128xf32>, vector<128x128xf32>, vector<8x128xf32> -> vector<8x128xf32>
    %56 = arith.addf %41, %55 : vector<8x128xf32>
    %57 = vector.broadcast %49 : vector<1x128xf32> to vector<8x128xf32>
    %58 = arith.addf %56, %57 : vector<8x128xf32>
    %c6 = arith.constant 6 : index
    %c0_48 = arith.constant 0 : index
    %c0_49 = arith.constant 0 : index
    %59 = vector.load %arg6[%c6, %c0_48, %c0_49] : memref<14x128x128xf32, #tpu.memory_space<vmem>>, vector<1x128x128xf32>
    %60 = vector.shape_cast %59 : vector<1x128x128xf32> to vector<128x128xf32>
    %c6_50 = arith.constant 6 : index
    %c0_51 = arith.constant 0 : index
    %c0_52 = arith.constant 0 : index
    %61 = vector.load %arg7[%c6_50, %c0_51, %c0_52] : memref<14x1x128xf32, #tpu.memory_space<vmem>>, vector<1x1x128xf32>
    %62 = vector.shape_cast %61 : vector<1x1x128xf32> to vector<1x128xf32>
    %c7 = arith.constant 7 : index
    %c0_53 = arith.constant 0 : index
    %c0_54 = arith.constant 0 : index
    %63 = vector.load %arg6[%c7, %c0_53, %c0_54] : memref<14x128x128xf32, #tpu.memory_space<vmem>>, vector<1x128x128xf32>
    %64 = vector.shape_cast %63 : vector<1x128x128xf32> to vector<128x128xf32>
    %c7_55 = arith.constant 7 : index
    %c0_56 = arith.constant 0 : index
    %c0_57 = arith.constant 0 : index
    %65 = vector.load %arg7[%c7_55, %c0_56, %c0_57] : memref<14x1x128xf32, #tpu.memory_space<vmem>>, vector<1x1x128xf32>
    %66 = vector.shape_cast %65 : vector<1x1x128xf32> to vector<1x128xf32>
    %cst_58 = arith.constant dense<0.000000e+00> : vector<8x128xf32>
    %67 = tpu.matmul %58, %60, %cst_58 {dimension_numbers = #tpu.dot_dimension_numbers<[1], [0], [0], [1], [0, 0, 1, 1], [], []>} : vector<8x128xf32>, vector<128x128xf32>, vector<8x128xf32> -> vector<8x128xf32>
    %68 = vector.broadcast %62 : vector<1x128xf32> to vector<8x128xf32>
    %69 = arith.addf %67, %68 : vector<8x128xf32>
    %cst_59 = arith.constant 0.000000e+00 : f32
    %70 = vector.broadcast %cst_59 : f32 to vector<8x128xf32>
    %71 = arith.maximumf %69, %70 : vector<8x128xf32>
    %cst_60 = arith.constant dense<0.000000e+00> : vector<8x128xf32>
    %72 = tpu.matmul %71, %64, %cst_60 {dimension_numbers = #tpu.dot_dimension_numbers<[1], [0], [0], [1], [0, 0, 1, 1], [], []>} : vector<8x128xf32>, vector<128x128xf32>, vector<8x128xf32> -> vector<8x128xf32>
    %73 = arith.addf %58, %72 : vector<8x128xf32>
    %74 = vector.broadcast %66 : vector<1x128xf32> to vector<8x128xf32>
    %75 = arith.addf %73, %74 : vector<8x128xf32>
    %c8 = arith.constant 8 : index
    %c0_61 = arith.constant 0 : index
    %c0_62 = arith.constant 0 : index
    %76 = vector.load %arg6[%c8, %c0_61, %c0_62] : memref<14x128x128xf32, #tpu.memory_space<vmem>>, vector<1x128x128xf32>
    %77 = vector.shape_cast %76 : vector<1x128x128xf32> to vector<128x128xf32>
    %c8_63 = arith.constant 8 : index
    %c0_64 = arith.constant 0 : index
    %c0_65 = arith.constant 0 : index
    %78 = vector.load %arg7[%c8_63, %c0_64, %c0_65] : memref<14x1x128xf32, #tpu.memory_space<vmem>>, vector<1x1x128xf32>
    %79 = vector.shape_cast %78 : vector<1x1x128xf32> to vector<1x128xf32>
    %c9 = arith.constant 9 : index
    %c0_66 = arith.constant 0 : index
    %c0_67 = arith.constant 0 : index
    %80 = vector.load %arg6[%c9, %c0_66, %c0_67] : memref<14x128x128xf32, #tpu.memory_space<vmem>>, vector<1x128x128xf32>
    %81 = vector.shape_cast %80 : vector<1x128x128xf32> to vector<128x128xf32>
    %c9_68 = arith.constant 9 : index
    %c0_69 = arith.constant 0 : index
    %c0_70 = arith.constant 0 : index
    %82 = vector.load %arg7[%c9_68, %c0_69, %c0_70] : memref<14x1x128xf32, #tpu.memory_space<vmem>>, vector<1x1x128xf32>
    %83 = vector.shape_cast %82 : vector<1x1x128xf32> to vector<1x128xf32>
    %cst_71 = arith.constant dense<0.000000e+00> : vector<8x128xf32>
    %84 = tpu.matmul %75, %77, %cst_71 {dimension_numbers = #tpu.dot_dimension_numbers<[1], [0], [0], [1], [0, 0, 1, 1], [], []>} : vector<8x128xf32>, vector<128x128xf32>, vector<8x128xf32> -> vector<8x128xf32>
    %85 = vector.broadcast %79 : vector<1x128xf32> to vector<8x128xf32>
    %86 = arith.addf %84, %85 : vector<8x128xf32>
    %cst_72 = arith.constant 0.000000e+00 : f32
    %87 = vector.broadcast %cst_72 : f32 to vector<8x128xf32>
    %88 = arith.maximumf %86, %87 : vector<8x128xf32>
    %cst_73 = arith.constant dense<0.000000e+00> : vector<8x128xf32>
    %89 = tpu.matmul %88, %81, %cst_73 {dimension_numbers = #tpu.dot_dimension_numbers<[1], [0], [0], [1], [0, 0, 1, 1], [], []>} : vector<8x128xf32>, vector<128x128xf32>, vector<8x128xf32> -> vector<8x128xf32>
    %90 = arith.addf %75, %89 : vector<8x128xf32>
    %91 = vector.broadcast %83 : vector<1x128xf32> to vector<8x128xf32>
    %92 = arith.addf %90, %91 : vector<8x128xf32>
    %c10 = arith.constant 10 : index
    %c0_74 = arith.constant 0 : index
    %c0_75 = arith.constant 0 : index
    %93 = vector.load %arg6[%c10, %c0_74, %c0_75] : memref<14x128x128xf32, #tpu.memory_space<vmem>>, vector<1x128x128xf32>
    %94 = vector.shape_cast %93 : vector<1x128x128xf32> to vector<128x128xf32>
    %c10_76 = arith.constant 10 : index
    %c0_77 = arith.constant 0 : index
    %c0_78 = arith.constant 0 : index
    %95 = vector.load %arg7[%c10_76, %c0_77, %c0_78] : memref<14x1x128xf32, #tpu.memory_space<vmem>>, vector<1x1x128xf32>
    %96 = vector.shape_cast %95 : vector<1x1x128xf32> to vector<1x128xf32>
    %c11 = arith.constant 11 : index
    %c0_79 = arith.constant 0 : index
    %c0_80 = arith.constant 0 : index
    %97 = vector.load %arg6[%c11, %c0_79, %c0_80] : memref<14x128x128xf32, #tpu.memory_space<vmem>>, vector<1x128x128xf32>
    %98 = vector.shape_cast %97 : vector<1x128x128xf32> to vector<128x128xf32>
    %c11_81 = arith.constant 11 : index
    %c0_82 = arith.constant 0 : index
    %c0_83 = arith.constant 0 : index
    %99 = vector.load %arg7[%c11_81, %c0_82, %c0_83] : memref<14x1x128xf32, #tpu.memory_space<vmem>>, vector<1x1x128xf32>
    %100 = vector.shape_cast %99 : vector<1x1x128xf32> to vector<1x128xf32>
    %cst_84 = arith.constant dense<0.000000e+00> : vector<8x128xf32>
    %101 = tpu.matmul %92, %94, %cst_84 {dimension_numbers = #tpu.dot_dimension_numbers<[1], [0], [0], [1], [0, 0, 1, 1], [], []>} : vector<8x128xf32>, vector<128x128xf32>, vector<8x128xf32> -> vector<8x128xf32>
    %102 = vector.broadcast %96 : vector<1x128xf32> to vector<8x128xf32>
    %103 = arith.addf %101, %102 : vector<8x128xf32>
    %cst_85 = arith.constant 0.000000e+00 : f32
    %104 = vector.broadcast %cst_85 : f32 to vector<8x128xf32>
    %105 = arith.maximumf %103, %104 : vector<8x128xf32>
    %cst_86 = arith.constant dense<0.000000e+00> : vector<8x128xf32>
    %106 = tpu.matmul %105, %98, %cst_86 {dimension_numbers = #tpu.dot_dimension_numbers<[1], [0], [0], [1], [0, 0, 1, 1], [], []>} : vector<8x128xf32>, vector<128x128xf32>, vector<8x128xf32> -> vector<8x128xf32>
    %107 = arith.addf %92, %106 : vector<8x128xf32>
    %108 = vector.broadcast %100 : vector<1x128xf32> to vector<8x128xf32>
    %109 = arith.addf %107, %108 : vector<8x128xf32>
    %c12 = arith.constant 12 : index
    %c0_87 = arith.constant 0 : index
    %c0_88 = arith.constant 0 : index
    %110 = vector.load %arg6[%c12, %c0_87, %c0_88] : memref<14x128x128xf32, #tpu.memory_space<vmem>>, vector<1x128x128xf32>
    %111 = vector.shape_cast %110 : vector<1x128x128xf32> to vector<128x128xf32>
    %c12_89 = arith.constant 12 : index
    %c0_90 = arith.constant 0 : index
    %c0_91 = arith.constant 0 : index
    %112 = vector.load %arg7[%c12_89, %c0_90, %c0_91] : memref<14x1x128xf32, #tpu.memory_space<vmem>>, vector<1x1x128xf32>
    %113 = vector.shape_cast %112 : vector<1x1x128xf32> to vector<1x128xf32>
    %c13 = arith.constant 13 : index
    %c0_92 = arith.constant 0 : index
    %c0_93 = arith.constant 0 : index
    %114 = vector.load %arg6[%c13, %c0_92, %c0_93] : memref<14x128x128xf32, #tpu.memory_space<vmem>>, vector<1x128x128xf32>
    %115 = vector.shape_cast %114 : vector<1x128x128xf32> to vector<128x128xf32>
    %c13_94 = arith.constant 13 : index
    %c0_95 = arith.constant 0 : index
    %c0_96 = arith.constant 0 : index
    %116 = vector.load %arg7[%c13_94, %c0_95, %c0_96] : memref<14x1x128xf32, #tpu.memory_space<vmem>>, vector<1x1x128xf32>
    %117 = vector.shape_cast %116 : vector<1x1x128xf32> to vector<1x128xf32>
    %cst_97 = arith.constant dense<0.000000e+00> : vector<8x128xf32>
    %118 = tpu.matmul %109, %111, %cst_97 {dimension_numbers = #tpu.dot_dimension_numbers<[1], [0], [0], [1], [0, 0, 1, 1], [], []>} : vector<8x128xf32>, vector<128x128xf32>, vector<8x128xf32> -> vector<8x128xf32>
    %119 = vector.broadcast %113 : vector<1x128xf32> to vector<8x128xf32>
    %120 = arith.addf %118, %119 : vector<8x128xf32>
    %cst_98 = arith.constant 0.000000e+00 : f32
    %121 = vector.broadcast %cst_98 : f32 to vector<8x128xf32>
    %122 = arith.maximumf %120, %121 : vector<8x128xf32>
    %cst_99 = arith.constant dense<0.000000e+00> : vector<8x128xf32>
    %123 = tpu.matmul %122, %115, %cst_99 {dimension_numbers = #tpu.dot_dimension_numbers<[1], [0], [0], [1], [0, 0, 1, 1], [], []>} : vector<8x128xf32>, vector<128x128xf32>, vector<8x128xf32> -> vector<8x128xf32>
    %124 = arith.addf %109, %123 : vector<8x128xf32>
    %125 = vector.broadcast %117 : vector<1x128xf32> to vector<8x128xf32>
    %126 = arith.addf %124, %125 : vector<8x128xf32>
    %cst_100 = arith.constant 0.000000e+00 : f32
    %127 = vector.broadcast %cst_100 : f32 to vector<8x128xf32>
    %128 = arith.maximumf %126, %127 : vector<8x128xf32>
    %c0_101 = arith.constant 0 : index
    %c0_102 = arith.constant 0 : index
    %129 = vector.load %arg8[%c0_101, %c0_102] : memref<128x256xf32, #tpu.memory_space<vmem>>, vector<128x256xf32>
    %cst_103 = arith.constant dense<0.000000e+00> : vector<8x256xf32>
    %130 = tpu.matmul %128, %129, %cst_103 {dimension_numbers = #tpu.dot_dimension_numbers<[1], [0], [0], [1], [0, 0, 1, 1], [], []>} : vector<8x128xf32>, vector<128x256xf32>, vector<8x256xf32> -> vector<8x256xf32>
    %c0_104 = arith.constant 0 : index
    %c0_105 = arith.constant 0 : index
    %131 = vector.load %arg9[%c0_104, %c0_105] : memref<1x256xf32, #tpu.memory_space<vmem>>, vector<1x256xf32>
    %132 = vector.broadcast %131 : vector<1x256xf32> to vector<8x256xf32>
    %133 = arith.addf %130, %132 : vector<8x256xf32>
    %c0_106 = arith.constant 0 : index
    %c0_107 = arith.constant 0 : index
    %134 = vector.load %arg10[%c0_106, %c0_107] : memref<128x256xf32, #tpu.memory_space<vmem>>, vector<128x256xf32>
    %cst_108 = arith.constant dense<0.000000e+00> : vector<8x256xf32>
    %135 = tpu.matmul %128, %134, %cst_108 {dimension_numbers = #tpu.dot_dimension_numbers<[1], [0], [0], [1], [0, 0, 1, 1], [], []>} : vector<8x128xf32>, vector<128x256xf32>, vector<8x256xf32> -> vector<8x256xf32>
    %c0_109 = arith.constant 0 : index
    %c0_110 = arith.constant 0 : index
    %136 = vector.load %arg11[%c0_109, %c0_110] : memref<1x256xf32, #tpu.memory_space<vmem>>, vector<1x256xf32>
    %137 = vector.broadcast %136 : vector<1x256xf32> to vector<8x256xf32>
    %138 = arith.addf %135, %137 : vector<8x256xf32>
    %c0_111 = arith.constant 0 : index
    %c0_112 = arith.constant 0 : index
    %139 = vector.load %arg12[%c0_111, %c0_112] : memref<128x256xf32, #tpu.memory_space<vmem>>, vector<128x256xf32>
    %cst_113 = arith.constant dense<0.000000e+00> : vector<8x256xf32>
    %140 = tpu.matmul %128, %139, %cst_113 {dimension_numbers = #tpu.dot_dimension_numbers<[1], [0], [0], [1], [0, 0, 1, 1], [], []>} : vector<8x128xf32>, vector<128x256xf32>, vector<8x256xf32> -> vector<8x256xf32>
    %c0_114 = arith.constant 0 : index
    %c0_115 = arith.constant 0 : index
    %141 = vector.load %arg13[%c0_114, %c0_115] : memref<1x256xf32, #tpu.memory_space<vmem>>, vector<1x256xf32>
    %142 = vector.broadcast %141 : vector<1x256xf32> to vector<8x256xf32>
    %143 = arith.addf %140, %142 : vector<8x256xf32>
    %144 = arith.negf %143 : vector<8x256xf32>
    %145 = math.exp %144 : vector<8x256xf32>
    %cst_116 = arith.constant 1.000000e+00 : f32
    %146 = vector.broadcast %cst_116 : f32 to vector<8x256xf32>
    %147 = arith.addf %146, %145 : vector<8x256xf32>
    %148 = arith.divf %146, %147 : vector<8x256xf32>
    %c0_117 = arith.constant 0 : index
    %c0_118 = arith.constant 0 : index
    %149 = vector.load %arg14[%c0_117, %c0_118] : memref<256x256xf32, #tpu.memory_space<vmem>>, vector<256x256xf32>
    %cst_119 = arith.constant dense<0.000000e+00> : vector<8x256xf32>
    %150 = tpu.matmul %138, %149, %cst_119 {dimension_numbers = #tpu.dot_dimension_numbers<[1], [0], [0], [1], [0, 0, 1, 1], [], []>} : vector<8x256xf32>, vector<256x256xf32>, vector<8x256xf32> -> vector<8x256xf32>
    %151 = tpu.iota {dimensions = array<i32: 0>} : vector<8x1xi32>
    %cst_120 = arith.constant 0.000000e+00 : f32
    %152 = vector.broadcast %cst_120 : f32 to vector<8x256xf32>
    %c0_121 = arith.constant 0 : index
    %153 = memref.load %arg0[%c0_121] : memref<8xi32, #tpu.memory_space<smem>>
    %c1_i32 = arith.constant 1 : i32
    %154 = arith.addi %153, %c1_i32 : i32
    %c256_i32 = arith.constant 256 : i32
    %155 = arith.remsi %154, %c256_i32 : i32
    %156 = tpu.dynamic_rotate %150 by %155 dim 1 : vector<8x256xf32>, i32 -> vector<8x256xf32>
    %c0_i32 = arith.constant 0 : i32
    %157 = vector.broadcast %c0_i32 : i32 to vector<8x1xi32>
    %158 = arith.cmpi eq, %151, %157 : vector<8x1xi32>
    %159 = arith.extui %158 : vector<8x1xi1> to vector<8x1xi32>
    %160 = arith.sitofp %159 : vector<8x1xi32> to vector<8x1xf32>
    %161 = vector.broadcast %160 : vector<8x1xf32> to vector<8x256xf32>
    %162 = arith.mulf %156, %161 : vector<8x256xf32>
    %163 = arith.addf %152, %162 : vector<8x256xf32>
    %c1_122 = arith.constant 1 : index
    %164 = memref.load %arg0[%c1_122] : memref<8xi32, #tpu.memory_space<smem>>
    %c1_i32_123 = arith.constant 1 : i32
    %165 = arith.addi %164, %c1_i32_123 : i32
    %c256_i32_124 = arith.constant 256 : i32
    %166 = arith.remsi %165, %c256_i32_124 : i32
    %167 = tpu.dynamic_rotate %150 by %166 dim 1 : vector<8x256xf32>, i32 -> vector<8x256xf32>
    %c1_i32_125 = arith.constant 1 : i32
    %168 = vector.broadcast %c1_i32_125 : i32 to vector<8x1xi32>
    %169 = arith.cmpi eq, %151, %168 : vector<8x1xi32>
    %170 = arith.extui %169 : vector<8x1xi1> to vector<8x1xi32>
    %171 = arith.sitofp %170 : vector<8x1xi32> to vector<8x1xf32>
    %172 = vector.broadcast %171 : vector<8x1xf32> to vector<8x256xf32>
    %173 = arith.mulf %167, %172 : vector<8x256xf32>
    %174 = arith.addf %163, %173 : vector<8x256xf32>
    %c2_126 = arith.constant 2 : index
    %175 = memref.load %arg0[%c2_126] : memref<8xi32, #tpu.memory_space<smem>>
    %c1_i32_127 = arith.constant 1 : i32
    %176 = arith.addi %175, %c1_i32_127 : i32
    %c256_i32_128 = arith.constant 256 : i32
    %177 = arith.remsi %176, %c256_i32_128 : i32
    %178 = tpu.dynamic_rotate %150 by %177 dim 1 : vector<8x256xf32>, i32 -> vector<8x256xf32>
    %c2_i32 = arith.constant 2 : i32
    %179 = vector.broadcast %c2_i32 : i32 to vector<8x1xi32>
    %180 = arith.cmpi eq, %151, %179 : vector<8x1xi32>
    %181 = arith.extui %180 : vector<8x1xi1> to vector<8x1xi32>
    %182 = arith.sitofp %181 : vector<8x1xi32> to vector<8x1xf32>
    %183 = vector.broadcast %182 : vector<8x1xf32> to vector<8x256xf32>
    %184 = arith.mulf %178, %183 : vector<8x256xf32>
    %185 = arith.addf %174, %184 : vector<8x256xf32>
    %c3_129 = arith.constant 3 : index
    %186 = memref.load %arg0[%c3_129] : memref<8xi32, #tpu.memory_space<smem>>
    %c1_i32_130 = arith.constant 1 : i32
    %187 = arith.addi %186, %c1_i32_130 : i32
    %c256_i32_131 = arith.constant 256 : i32
    %188 = arith.remsi %187, %c256_i32_131 : i32
    %189 = tpu.dynamic_rotate %150 by %188 dim 1 : vector<8x256xf32>, i32 -> vector<8x256xf32>
    %c3_i32 = arith.constant 3 : i32
    %190 = vector.broadcast %c3_i32 : i32 to vector<8x1xi32>
    %191 = arith.cmpi eq, %151, %190 : vector<8x1xi32>
    %192 = arith.extui %191 : vector<8x1xi1> to vector<8x1xi32>
    %193 = arith.sitofp %192 : vector<8x1xi32> to vector<8x1xf32>
    %194 = vector.broadcast %193 : vector<8x1xf32> to vector<8x256xf32>
    %195 = arith.mulf %189, %194 : vector<8x256xf32>
    %196 = arith.addf %185, %195 : vector<8x256xf32>
    %c4_132 = arith.constant 4 : index
    %197 = memref.load %arg0[%c4_132] : memref<8xi32, #tpu.memory_space<smem>>
    %c1_i32_133 = arith.constant 1 : i32
    %198 = arith.addi %197, %c1_i32_133 : i32
    %c256_i32_134 = arith.constant 256 : i32
    %199 = arith.remsi %198, %c256_i32_134 : i32
    %200 = tpu.dynamic_rotate %150 by %199 dim 1 : vector<8x256xf32>, i32 -> vector<8x256xf32>
    %c4_i32 = arith.constant 4 : i32
    %201 = vector.broadcast %c4_i32 : i32 to vector<8x1xi32>
    %202 = arith.cmpi eq, %151, %201 : vector<8x1xi32>
    %203 = arith.extui %202 : vector<8x1xi1> to vector<8x1xi32>
    %204 = arith.sitofp %203 : vector<8x1xi32> to vector<8x1xf32>
    %205 = vector.broadcast %204 : vector<8x1xf32> to vector<8x256xf32>
    %206 = arith.mulf %200, %205 : vector<8x256xf32>
    %207 = arith.addf %196, %206 : vector<8x256xf32>
    %c5_135 = arith.constant 5 : index
    %208 = memref.load %arg0[%c5_135] : memref<8xi32, #tpu.memory_space<smem>>
    %c1_i32_136 = arith.constant 1 : i32
    %209 = arith.addi %208, %c1_i32_136 : i32
    %c256_i32_137 = arith.constant 256 : i32
    %210 = arith.remsi %209, %c256_i32_137 : i32
    %211 = tpu.dynamic_rotate %150 by %210 dim 1 : vector<8x256xf32>, i32 -> vector<8x256xf32>
    %c5_i32 = arith.constant 5 : i32
    %212 = vector.broadcast %c5_i32 : i32 to vector<8x1xi32>
    %213 = arith.cmpi eq, %151, %212 : vector<8x1xi32>
    %214 = arith.extui %213 : vector<8x1xi1> to vector<8x1xi32>
    %215 = arith.sitofp %214 : vector<8x1xi32> to vector<8x1xf32>
    %216 = vector.broadcast %215 : vector<8x1xf32> to vector<8x256xf32>
    %217 = arith.mulf %211, %216 : vector<8x256xf32>
    %218 = arith.addf %207, %217 : vector<8x256xf32>
    %c6_138 = arith.constant 6 : index
    %219 = memref.load %arg0[%c6_138] : memref<8xi32, #tpu.memory_space<smem>>
    %c1_i32_139 = arith.constant 1 : i32
    %220 = arith.addi %219, %c1_i32_139 : i32
    %c256_i32_140 = arith.constant 256 : i32
    %221 = arith.remsi %220, %c256_i32_140 : i32
    %222 = tpu.dynamic_rotate %150 by %221 dim 1 : vector<8x256xf32>, i32 -> vector<8x256xf32>
    %c6_i32 = arith.constant 6 : i32
    %223 = vector.broadcast %c6_i32 : i32 to vector<8x1xi32>
    %224 = arith.cmpi eq, %151, %223 : vector<8x1xi32>
    %225 = arith.extui %224 : vector<8x1xi1> to vector<8x1xi32>
    %226 = arith.sitofp %225 : vector<8x1xi32> to vector<8x1xf32>
    %227 = vector.broadcast %226 : vector<8x1xf32> to vector<8x256xf32>
    %228 = arith.mulf %222, %227 : vector<8x256xf32>
    %229 = arith.addf %218, %228 : vector<8x256xf32>
    %c7_141 = arith.constant 7 : index
    %230 = memref.load %arg0[%c7_141] : memref<8xi32, #tpu.memory_space<smem>>
    %c1_i32_142 = arith.constant 1 : i32
    %231 = arith.addi %230, %c1_i32_142 : i32
    %c256_i32_143 = arith.constant 256 : i32
    %232 = arith.remsi %231, %c256_i32_143 : i32
    %233 = tpu.dynamic_rotate %150 by %232 dim 1 : vector<8x256xf32>, i32 -> vector<8x256xf32>
    %c7_i32 = arith.constant 7 : i32
    %234 = vector.broadcast %c7_i32 : i32 to vector<8x1xi32>
    %235 = arith.cmpi eq, %151, %234 : vector<8x1xi32>
    %236 = arith.extui %235 : vector<8x1xi1> to vector<8x1xi32>
    %237 = arith.sitofp %236 : vector<8x1xi32> to vector<8x1xf32>
    %238 = vector.broadcast %237 : vector<8x1xf32> to vector<8x256xf32>
    %239 = arith.mulf %233, %238 : vector<8x256xf32>
    %240 = arith.addf %229, %239 : vector<8x256xf32>
    %241 = tpu.iota {dimensions = array<i32: 1>} : vector<8x256xi32>
    %c0_144 = arith.constant 0 : index
    %c0_145 = arith.constant 0 : index
    %242 = vector.load %arg1[%c0_144, %c0_145] : memref<8x1xi32, #tpu.memory_space<vmem>>, vector<8x1xi32>
    %243 = vector.broadcast %242 : vector<8x1xi32> to vector<8x256xi32>
    %244 = arith.cmpi sle, %241, %243 : vector<8x256xi32>
    %245 = arith.extui %244 : vector<8x256xi1> to vector<8x256xi32>
    %246 = arith.sitofp %245 : vector<8x256xi32> to vector<8x256xf32>
    %247 = arith.mulf %148, %133 : vector<8x256xf32>
    %cst_146 = arith.constant 1.000000e+00 : f32
    %248 = vector.broadcast %cst_146 : f32 to vector<8x256xf32>
    %249 = arith.subf %248, %148 : vector<8x256xf32>
    %250 = arith.mulf %249, %240 : vector<8x256xf32>
    %251 = arith.addf %247, %250 : vector<8x256xf32>
    %252 = arith.mulf %246, %251 : vector<8x256xf32>
    %cst_147 = arith.constant 0.000000e+00 : f32
    %253 = vector.broadcast %cst_147 : f32 to vector<8x256xf32>
    %254 = arith.maximumf %252, %253 : vector<8x256xf32>
    %c0_148 = arith.constant 0 : index
    %c0_149 = arith.constant 0 : index
    %255 = vector.load %arg15[%c0_148, %c0_149] : memref<8x256xf32, #tpu.memory_space<vmem>>, vector<8x256xf32>
    tpu.vector_store %arg15[%c0_148, %c0_149], %254 {strides = array<i32>} : memref<8x256xf32, #tpu.memory_space<vmem>>, vector<8x256xf32>,
    return
  }
}

</mosaic_0001>

<llo_original>
// kernel: tpu_custom_call.1
$region0: #{tpu_custom_call.1}
  #allocation0 [shape = 'u32[]', space=smem, size = 0x4, offset = 0x4, fixed_abs, tag = 'smem constant byte address 0x4 - core index']
  #allocation1 [shape = 'u32[144,128]{1,0:T(1,128)}', space=vmem, size = 0x12000, scoped, tag = 'internal scratch']
  %s0 = inlined_call_operand.vmem [shape: s32[8], index: 0, kind: input, shape index: {}]
  %s1 = inlined_call_operand.vmem [shape: s32[8,1], index: 1, kind: input, shape index: {}]
  %s2 = inlined_call_operand.hbm [shape: f32[8,32], index: 2, kind: input, shape index: {}]
  %s3 = inlined_call_operand.hbm [shape: f32[32,64], index: 3, kind: input, shape index: {}]
  %s4 = inlined_call_operand.hbm [shape: f32[64,128], index: 4, kind: input, shape index: {}]
  %s5 = inlined_call_operand.hbm [shape: f32[1,128], index: 5, kind: input, shape index: {}]
  %s6 = inlined_call_operand.hbm [shape: f32[14,128,128], index: 6, kind: input, shape index: {}]
  %s7 = inlined_call_operand.vmem [shape: f32[14,1,128], index: 7, kind: input, shape index: {}]
  %s8 = inlined_call_operand.hbm [shape: f32[128,256], index: 8, kind: input, shape index: {}]
  %s9 = inlined_call_operand.vmem [shape: f32[1,256], index: 9, kind: input, shape index: {}]
  %s10 = inlined_call_operand.hbm [shape: f32[128,256], index: 10, kind: input, shape index: {}]
  %s11 = inlined_call_operand.vmem [shape: f32[1,256], index: 11, kind: input, shape index: {}]
  %s12 = inlined_call_operand.hbm [shape: f32[128,256], index: 12, kind: input, shape index: {}]
  %s13 = inlined_call_operand.vmem [shape: f32[1,256], index: 13, kind: input, shape index: {}]
  %s14 = inlined_call_operand.hbm [shape: f32[256,256], index: 14, kind: input, shape index: {}]
  %s15 = inlined_call_operand.hbm [shape: f32[8,256], index: 15, kind: output, shape index: {}]
  %s16 = sld [smem:[#allocation0]]
  $region110: #{tpu_custom_call.1} parent=0
    _
  %s18 = ssub.s32 1, %s16
  %s19 = scalar_select 0, %s18, %s16
  $region1: #{tpu_custom_call.1} parent=0
    #allocation2 [shape = 'u8[512]{0}', space=smem, size = 0x200, scoped, tag = 'input window, operand 0, single buffered']
    #allocation3 [shape = 's32[1]{0}', space=sflag, size = 0x4, scoped, tag = 'scoped memory for tpu_custom_call.1']
    #allocation4 [shape = 's32[1]{0}', space=sflag, size = 0x4, scoped, tag = 'scoped memory for tpu_custom_call.1']
    #allocation5 [shape = 's32[1]{0}', space=sflag, size = 0x4, scoped, tag = 'scoped memory for tpu_custom_call.1']
    #allocation6 [shape = 'u8[4096]{0}', space=vmem, size = 0x1000, scoped, tag = 'input window, operand 2, single buffered']
    #allocation7 [shape = 'u8[16384]{0}', space=vmem, size = 0x4000, scoped, tag = 'input window, operand 3, single buffered']
    #allocation8 [shape = 's32[1]{0}', space=sflag, size = 0x4, scoped, tag = 'scoped memory for tpu_custom_call.1']
    #allocation9 [shape = 'u8[32768]{0}', space=vmem, size = 0x8000, scoped, tag = 'input window, operand 4, single buffered']
    #allocation10 [shape = 'u8[512]{0}', space=vmem, size = 0x400, scoped, tag = 'input window, operand 5, single buffered']
    #allocation11 [shape = 's32[1]{0}', space=sflag, size = 0x4, scoped, tag = 'scoped memory for tpu_custom_call.1']
    #allocation12 [shape = 'u8[917504]{0}', space=vmem, size = 0xe0000, scoped, tag = 'input window, operand 6, single buffered']
    #allocation13 [shape = 'u8[131072]{0}', space=vmem, size = 0x20000, scoped, tag = 'input window, operand 8, single buffered']
    #allocation14 [shape = 's32[1]{0}', space=sflag, size = 0x4, scoped, tag = 'scoped memory for tpu_custom_call.1']
    #allocation15 [shape = 'u8[131072]{0}', space=vmem, size = 0x20000, scoped, tag = 'input window, operand 10, single buffered']
    #allocation16 [shape = 'u8[131072]{0}', space=vmem, size = 0x20000, scoped, tag = 'input window, operand 12, single buffered']
    #allocation17 [shape = 's32[1]{0}', space=sflag, size = 0x4, scoped, tag = 'scoped memory for tpu_custom_call.1']
    #allocation18 [shape = 'u8[262144]{0}', space=vmem, size = 0x40000, scoped, tag = 'input window, operand 14, single buffered']
    #allocation19 [shape = 'u8[8192]{0}', space=vmem, size = 0x2000, scoped, tag = 'output window, operand 0, single buffered']
    %20 = vsyncpa [#allocation5], 0
    %21 = vsyncpa [#allocation3], 0
    %22 = vsyncpa [#allocation8], 0
    %23 = vsyncpa [#allocation11], 0
    %24 = vsyncpa [#allocation14], 0
    %25 = vsyncpa [#allocation17], 0
    %26 = vsyncpa [#allocation4], 0
    // Predicated region
    $region2: #{tpu_custom_call.1} parent=1 // pred_check
      _
    $region3: #{tpu_custom_call.1} parent=1 // pred_check_branch
      %28 = sbr.rel (0) target = $region5
    $region4: #{tpu_custom_call.1} parent=1 // pred_region
      %s30 = ssub.s32 16, 16
      %31 = vsyncadd [#allocation5], %s30
      %s33 = sshll.u32 %s0, 4
      %s34 = int_to_ptr.vmem [resolvable:$true] %s33
      %36 = dma.vmem_to_smem %s34, 16, [#allocation2], [#allocation5]
    $region5: #{tpu_custom_call.1} parent=1 // pred_fallthru
      _
    // Predicated region
    $region6: #{tpu_custom_call.1} parent=1 // pred_check
      _
    $region7: #{tpu_custom_call.1} parent=1 // pred_check_branch
      %38 = sbr.rel (0) target = $region9
    $region8: #{tpu_custom_call.1} parent=1 // pred_region
      _
    $region9: #{tpu_custom_call.1} parent=1 // pred_fallthru
      _
    // Predicated region
    $region10: #{tpu_custom_call.1} parent=1 // pred_check
      _
    $region11: #{tpu_custom_call.1} parent=1 // pred_check_branch
      %40 = sbr.rel (0) target = $region13
    $region12: #{tpu_custom_call.1} parent=1 // pred_region
      %s42 = ssub.s32 128, 128
      %43 = vsyncadd [#allocation3], %s42
      %s45 = sshll.u32 [#allocation6], 4
      %s46 = int_to_ptr.vmem [resolvable:$true] %s45
      %48 = dma.hbm_to_vmem [thread:$0]  %s2, 128, %s46, [#allocation3]
    $region13: #{tpu_custom_call.1} parent=1 // pred_fallthru
      _
    // Predicated region
    $region14: #{tpu_custom_call.1} parent=1 // pred_check
      _
    $region15: #{tpu_custom_call.1} parent=1 // pred_check_branch
      %50 = sbr.rel (0) target = $region17
    $region16: #{tpu_custom_call.1} parent=1 // pred_region
      %s52 = ssub.s32 512, 512
      %53 = vsyncadd [#allocation8], %s52
      %s54 = sshll.u32 [#allocation7], 4
      %s55 = int_to_ptr.vmem [resolvable:$true] %s54
      %60 = dma.hbm_to_vmem [thread:$0]  %s3, 512, %s55, [#allocation8], 128, 128, 8
    $region17: #{tpu_custom_call.1} parent=1 // pred_fallthru
      _
    // Predicated region
    $region18: #{tpu_custom_call.1} parent=1 // pred_check
      _
    $region19: #{tpu_custom_call.1} parent=1 // pred_check_branch
      %62 = sbr.rel (0) target = $region21
    $region20: #{tpu_custom_call.1} parent=1 // pred_region
      %s64 = ssub.s32 1024, 1024
      %65 = vsyncadd [#allocation8], %s64
      %s66 = sshll.u32 [#allocation9], 4
      %s67 = int_to_ptr.vmem [resolvable:$true] %s66
      %72 = dma.hbm_to_vmem [thread:$0]  %s4, 1024, %s67, [#allocation8], 128, 128, 8
    $region21: #{tpu_custom_call.1} parent=1 // pred_fallthru
      _
    // Predicated region
    $region22: #{tpu_custom_call.1} parent=1 // pred_check
      _
    $region23: #{tpu_custom_call.1} parent=1 // pred_check_branch
      %74 = sbr.rel (0) target = $region25
    $region24: #{tpu_custom_call.1} parent=1 // pred_region
      %s76 = ssub.s32 16, 16
      %77 = vsyncadd [#allocation11], %s76
      %s79 = sshll.u32 [#allocation10], 4
      %s80 = int_to_ptr.vmem [resolvable:$true] %s79
      %82 = dma.hbm_to_vmem [thread:$0]  %s5, 16, %s80, [#allocation11]
    $region25: #{tpu_custom_call.1} parent=1 // pred_fallthru
      _
    // Predicated region
    $region26: #{tpu_custom_call.1} parent=1 // pred_check
      _
    $region27: #{tpu_custom_call.1} parent=1 // pred_check_branch
      %84 = sbr.rel (0) target = $region29
    $region28: #{tpu_custom_call.1} parent=1 // pred_region
      %s86 = ssub.s32 28672, 28672
      %87 = vsyncadd [#allocation11], %s86
      %s88 = sshll.u32 [#allocation12], 4
      %s89 = int_to_ptr.vmem [resolvable:$true] %s88
      %94 = dma.hbm_to_vmem [thread:$0]  %s6, 28672, %s89, [#allocation11], 128, 128, 8
    $region29: #{tpu_custom_call.1} parent=1 // pred_fallthru
      _
    // Predicated region
    $region30: #{tpu_custom_call.1} parent=1 // pred_check
      _
    $region31: #{tpu_custom_call.1} parent=1 // pred_check_branch
      %96 = sbr.rel (0) target = $region33
    $region32: #{tpu_custom_call.1} parent=1 // pred_region
      _
    $region33: #{tpu_custom_call.1} parent=1 // pred_fallthru
      _
    // Predicated region
    $region34: #{tpu_custom_call.1} parent=1 // pred_check
      _
    $region35: #{tpu_custom_call.1} parent=1 // pred_check_branch
      %98 = sbr.rel (0) target = $region37
    $region36: #{tpu_custom_call.1} parent=1 // pred_region
      %s100 = ssub.s32 4096, 4096
      %101 = vsyncadd [#allocation14], %s100
      %s102 = sshll.u32 [#allocation13], 4
      %s103 = int_to_ptr.vmem [resolvable:$true] %s102
      %108 = dma.hbm_to_vmem [thread:$0]  %s8, 4096, %s103, [#allocation14], 256, 256, 16
    $region37: #{tpu_custom_call.1} parent=1 // pred_fallthru
      _
    // Predicated region
    $region38: #{tpu_custom_call.1} parent=1 // pred_check
      _
    $region39: #{tpu_custom_call.1} parent=1 // pred_check_branch
      %110 = sbr.rel (0) target = $region41
    $region40: #{tpu_custom_call.1} parent=1 // pred_region
      _
    $region41: #{tpu_custom_call.1} parent=1 // pred_fallthru
      _
    // Predicated region
    $region42: #{tpu_custom_call.1} parent=1 // pred_check
      _
    $region43: #{tpu_custom_call.1} parent=1 // pred_check_branch
      %112 = sbr.rel (0) target = $region45
    $region44: #{tpu_custom_call.1} parent=1 // pred_region
      %s114 = ssub.s32 4096, 4096
      %115 = vsyncadd [#allocation14], %s114
      %s116 = sshll.u32 [#allocation15], 4
      %s117 = int_to_ptr.vmem [resolvable:$true] %s116
      %122 = dma.hbm_to_vmem [thread:$0]  %s10, 4096, %s117, [#allocation14], 256, 256, 16
    $region45: #{tpu_custom_call.1} parent=1 // pred_fallthru
      _
    // Predicated region
    $region46: #{tpu_custom_call.1} parent=1 // pred_check
      _
    $region47: #{tpu_custom_call.1} parent=1 // pred_check_branch
      %124 = sbr.rel (0) target = $region49
    $region48: #{tpu_custom_call.1} parent=1 // pred_region
      _
    $region49: #{tpu_custom_call.1} parent=1 // pred_fallthru
      _
    // Predicated region
    $region50: #{tpu_custom_call.1} parent=1 // pred_check
      _
    $region51: #{tpu_custom_call.1} parent=1 // pred_check_branch
      %126 = sbr.rel (0) target = $region53
    $region52: #{tpu_custom_call.1} parent=1 // pred_region
      %s128 = ssub.s32 4096, 4096
      %129 = vsyncadd [#allocation17], %s128
      %s130 = sshll.u32 [#allocation16], 4
      %s131 = int_to_ptr.vmem [resolvable:$true] %s130
      %136 = dma.hbm_to_vmem [thread:$0]  %s12, 4096, %s131, [#allocation17], 256, 256, 16
    $region53: #{tpu_custom_call.1} parent=1 // pred_fallthru
      _
    // Predicated region
    $region54: #{tpu_custom_call.1} parent=1 // pred_check
      _
    $region55: #{tpu_custom_call.1} parent=1 // pred_check_branch
      %138 = sbr.rel (0) target = $region57
    $region56: #{tpu_custom_call.1} parent=1 // pred_region
      _
    $region57: #{tpu_custom_call.1} parent=1 // pred_fallthru
      _
    // Predicated region
    $region58: #{tpu_custom_call.1} parent=1 // pred_check
      _
    $region59: #{tpu_custom_call.1} parent=1 // pred_check_branch
      %140 = sbr.rel (0) target = $region61
    $region60: #{tpu_custom_call.1} parent=1 // pred_region
      %s142 = ssub.s32 8192, 8192
      %143 = vsyncadd [#allocation17], %s142
      %s144 = sshll.u32 [#allocation18], 4
      %s145 = int_to_ptr.vmem [resolvable:$true] %s144
      %150 = dma.hbm_to_vmem [thread:$0]  %s14, 8192, %s145, [#allocation17], 256, 256, 16
    $region61: #{tpu_custom_call.1} parent=1 // pred_fallthru
      _
    // Predicated region
    $region62: #{tpu_custom_call.1} parent=1 // pred_check
      _
    $region63: #{tpu_custom_call.1} parent=1 // pred_check_branch
      %152 = sbr.rel (0) target = $region65
    $region64: #{tpu_custom_call.1} parent=1 // pred_region
      %153 = dma.done [#allocation5], 16
    $region65: #{tpu_custom_call.1} parent=1 // pred_fallthru
      _
    // Predicated region
    $region66: #{tpu_custom_call.1} parent=1 // pred_check
      _
    $region67: #{tpu_custom_call.1} parent=1 // pred_check_branch
      %155 = sbr.rel (0) target = $region69
    $region68: #{tpu_custom_call.1} parent=1 // pred_region
      %156 = dma.done [#allocation3], 128
    $region69: #{tpu_custom_call.1} parent=1 // pred_fallthru
      _
    // Predicated region
    $region70: #{tpu_custom_call.1} parent=1 // pred_check
      _
    $region71: #{tpu_custom_call.1} parent=1 // pred_check_branch
      %158 = sbr.rel (0) target = $region73
    $region72: #{tpu_custom_call.1} parent=1 // pred_region
      %159 = dma.done [#allocation8], 512
    $region73: #{tpu_custom_call.1} parent=1 // pred_fallthru
      _
    // Predicated region
    $region74: #{tpu_custom_call.1} parent=1 // pred_check
      _
    $region75: #{tpu_custom_call.1} parent=1 // pred_check_branch
      %161 = sbr.rel (0) target = $region77
    $region76: #{tpu_custom_call.1} parent=1 // pred_region
      %162 = dma.done [#allocation8], 1024
    $region77: #{tpu_custom_call.1} parent=1 // pred_fallthru
      _
    // Predicated region
    $region78: #{tpu_custom_call.1} parent=1 // pred_check
      _
    $region79: #{tpu_custom_call.1} parent=1 // pred_check_branch
      %164 = sbr.rel (0) target = $region81
    $region80: #{tpu_custom_call.1} parent=1 // pred_region
      %165 = dma.done [#allocation11], 16
    $region81: #{tpu_custom_call.1} parent=1 // pred_fallthru
      _
    // Predicated region
    $region82: #{tpu_custom_call.1} parent=1 // pred_check
      _
    $region83: #{tpu_custom_call.1} parent=1 // pred_check_branch
      %167 = sbr.rel (0) target = $region85
    $region84: #{tpu_custom_call.1} parent=1 // pred_region
      %168 = dma.done [#allocation11], 28672
    $region85: #{tpu_custom_call.1} parent=1 // pred_fallthru
      _
    // Predicated region
    $region86: #{tpu_custom_call.1} parent=1 // pred_check
      _
    $region87: #{tpu_custom_call.1} parent=1 // pred_check_branch
      %170 = sbr.rel (0) target = $region89
    $region88: #{tpu_custom_call.1} parent=1 // pred_region
      %171 = dma.done [#allocation14], 4096
    $region89: #{tpu_custom_call.1} parent=1 // pred_fallthru
      _
    // Predicated region
    $region90: #{tpu_custom_call.1} parent=1 // pred_check
      _
    $region91: #{tpu_custom_call.1} parent=1 // pred_check_branch
      %173 = sbr.rel (0) target = $region93
    $region92: #{tpu_custom_call.1} parent=1 // pred_region
      %174 = dma.done [#allocation14], 4096
    $region93: #{tpu_custom_call.1} parent=1 // pred_fallthru
      _
    // Predicated region
    $region94: #{tpu_custom_call.1} parent=1 // pred_check
      _
    $region95: #{tpu_custom_call.1} parent=1 // pred_check_branch
      %176 = sbr.rel (0) target = $region97
    $region96: #{tpu_custom_call.1} parent=1 // pred_region
      %177 = dma.done [#allocation17], 4096
    $region97: #{tpu_custom_call.1} parent=1 // pred_fallthru
      _
    // Predicated region
    $region98: #{tpu_custom_call.1} parent=1 // pred_check
      _
    $region99: #{tpu_custom_call.1} parent=1 // pred_check_branch
      %179 = sbr.rel (0) target = $region101
    $region100: #{tpu_custom_call.1} parent=1 // pred_region
      %180 = dma.done [#allocation17], 8192
    $region101: #{tpu_custom_call.1} parent=1 // pred_fallthru
      _
    %181 = sfence
    %v182 = vld [vmem:[#allocation6] sm:$0xff]
    %v183 = vld [vmem:[#allocation7] sm:$0xff]
    %v184 = vld [vmem:[#allocation7 + $0x8] sm:$0xff]
    %v185 = vld [vmem:[#allocation7 + $0x10] sm:$0xff]
    %v186 = vld [vmem:[#allocation7 + $0x18] sm:$0xff]
    %vm187 = vcmask 261120
    %v189 = vsel %vm187, %v182, 0
    %191 = vmatprep.subr.mxu0 0.0
    %192 = vmatpush1.msra.mxu0 0.0
    %193 = vmatprep.subr.mxu0 0.0
    %194 = vmatpush1.msra.mxu0 0.0
    %195 = vmatprep.subr.mxu0 0.0
    %196 = vmatpush1.msra.mxu0 0.0
    %197 = vmatprep.subr.mxu0 0.0
    %198 = vmatpush1.msra.mxu0 0.0
    %199 = vmatprep.subr.mxu0 0.0
    %200 = vmatpush1.msra.mxu0 0.0
    %201 = vmatprep.subr.mxu0 0.0
    %202 = vmatpush1.msra.mxu0 0.0
    %203 = vmatprep.subr.mxu0 0.0
    %204 = vmatpush1.msra.mxu0 0.0
    %205 = vmatprep.subr.mxu0 0.0
    %206 = vmatpush1.msra.mxu0 0.0
    %207 = vmatprep.subr.mxu0 0.0
    %208 = vmatpush1.msra.mxu0 0.0
    %209 = vmatprep.subr.mxu0 0.0
    %210 = vmatpush1.msra.mxu0 0.0
    %211 = vmatprep.subr.mxu0 0.0
    %212 = vmatpush1.msra.mxu0 0.0
    %213 = vmatprep.subr.mxu0 0.0
    %214 = vmatpush1.msra.mxu0 0.0
    %215 = vmatprep.subr.mxu0 0.0
    %216 = vmatpush1.msra.mxu0 %v186
    %217 = vmatprep.subr.mxu0 0.0
    %218 = vmatpush1.msra.mxu0 %v185
    %219 = vmatprep.subr.mxu0 0.0
    %220 = vmatpush1.msra.mxu0 %v184
    %221 = vmatprep.subr.mxu0 0.0
    %222 = vmatpush1.msra.mxu0 %v183
    %223 = vmatprep.subr.mxu0 0.0
    %224 = vmatpush2.msra.mxu0 0.0
    %225 = vmatprep.subr.mxu0 0.0
    %226 = vmatpush2.msra.mxu0 0.0
    %227 = vmatprep.subr.mxu0 0.0
    %228 = vmatpush2.msra.mxu0 0.0
    %229 = vmatprep.subr.mxu0 0.0
    %230 = vmatpush2.msra.mxu0 0.0
    %231 = vmatprep.subr.mxu0 0.0
    %232 = vmatpush2.msra.mxu0 0.0
    %233 = vmatprep.subr.mxu0 0.0
    %234 = vmatpush2.msra.mxu0 0.0
    %235 = vmatprep.subr.mxu0 0.0
    %236 = vmatpush2.msra.mxu0 0.0
    %237 = vmatprep.subr.mxu0 0.0
    %238 = vmatpush2.msra.mxu0 0.0
    %239 = vmatprep.subr.mxu0 0.0
    %240 = vmatpush2.msra.mxu0 0.0
    %241 = vmatprep.subr.mxu0 0.0
    %242 = vmatpush2.msra.mxu0 0.0
    %243 = vmatprep.subr.mxu0 0.0
    %244 = vmatpush2.msra.mxu0 0.0
    %245 = vmatprep.subr.mxu0 0.0
    %246 = vmatpush2.msra.mxu0 0.0
    %247 = vmatprep.subr.mxu0 0.0
    %248 = vmatpush2.msra.mxu0 0.0
    %249 = vmatprep.subr.mxu0 0.0
    %250 = vmatpush2.msra.mxu0 0.0
    %251 = vmatprep.subr.mxu0 0.0
    %252 = vmatpush2.msra.mxu0 0.0
    %253 = vmatprep.subr.mxu0 0.0
    %254 = vmatpush2.msra.mxu0 0.0
    %255 = vmatprep.mubr.f32.mxu0 0.0
    %256 = vmatmul.mubr.f32.gmra.mxu0 %v189
    %v257 = vpop.f32.mrf.mxu0
    %v258 = vadd.f32 0.0, %v257
    %v259 = vpop.f32.mrf.mxu0
    %260 = vdwg.mxu0
    %v261 = vld [vmem:[#allocation9] sm:$0xff]
    %v262 = vld [vmem:[#allocation9 + $0x8] sm:$0xff]
    %v263 = vld [vmem:[#allocation9 + $0x10] sm:$0xff]
    %v264 = vld [vmem:[#allocation9 + $0x18] sm:$0xff]
    %v265 = vld [vmem:[#allocation9 + $0x20] sm:$0xff]
    %v266 = vld [vmem:[#allocation9 + $0x28] sm:$0xff]
    %v267 = vld [vmem:[#allocation9 + $0x30] sm:$0xff]
    %v268 = vld [vmem:[#allocation9 + $0x38] sm:$0xff]
    %v269 = vld [vmem:[#allocation10] sm:$0x1]
    %v271 = vlaneseq
    %v272 = vshrl.u32 %v271, 7
    %v273 = vsub.s32 0, %v272
    %v274 = vrot.slane %v269, %v273
    %vm276 = vcmask 523264
    %v278 = vsel %vm276, %v258, 0
    %280 = vmatprep.subr.mxu0 0.0
    %281 = vmatpush1.msra.mxu0 0.0
    %282 = vmatprep.subr.mxu0 0.0
    %283 = vmatpush1.msra.mxu0 0.0
    %284 = vmatprep.subr.mxu0 0.0
    %285 = vmatpush1.msra.mxu0 0.0
    %286 = vmatprep.subr.mxu0 0.0
    %287 = vmatpush1.msra.mxu0 0.0
    %288 = vmatprep.subr.mxu0 0.0
    %289 = vmatpush1.msra.mxu0 0.0
    %290 = vmatprep.subr.mxu0 0.0
    %291 = vmatpush1.msra.mxu0 0.0
    %292 = vmatprep.subr.mxu0 0.0
    %293 = vmatpush1.msra.mxu0 0.0
    %294 = vmatprep.subr.mxu0 0.0
    %295 = vmatpush1.msra.mxu0 0.0
    %296 = vmatprep.subr.mxu0 0.0
    %297 = vmatpush1.msra.mxu0 %v268
    %298 = vmatprep.subr.mxu0 0.0
    %299 = vmatpush1.msra.mxu0 %v267
    %300 = vmatprep.subr.mxu0 0.0
    %301 = vmatpush1.msra.mxu0 %v266
    %302 = vmatprep.subr.mxu0 0.0
    %303 = vmatpush1.msra.mxu0 %v265
    %304 = vmatprep.subr.mxu0 0.0
    %305 = vmatpush1.msra.mxu0 %v264
    %306 = vmatprep.subr.mxu0 0.0
    %307 = vmatpush1.msra.mxu0 %v263
    %308 = vmatprep.subr.mxu0 0.0
    %309 = vmatpush1.msra.mxu0 %v262
    %310 = vmatprep.subr.mxu0 0.0
    %311 = vmatpush1.msra.mxu0 %v261
    %312 = vmatprep.subr.mxu0 0.0
    %313 = vmatpush2.msra.mxu0 0.0
    %314 = vmatprep.subr.mxu0 0.0
    %315 = vmatpush2.msra.mxu0 0.0
    %316 = vmatprep.subr.mxu0 0.0
    %317 = vmatpush2.msra.mxu0 0.0
    %318 = vmatprep.subr.mxu0 0.0
    %319 = vmatpush2.msra.mxu0 0.0
    %320 = vmatprep.subr.mxu0 0.0
    %321 = vmatpush2.msra.mxu0 0.0
    %322 = vmatprep.subr.mxu0 0.0
    %323 = vmatpush2.msra.mxu0 0.0
    %324 = vmatprep.subr.mxu0 0.0
    %325 = vmatpush2.msra.mxu0 0.0
    %326 = vmatprep.subr.mxu0 0.0
    %327 = vmatpush2.msra.mxu0 0.0
    %328 = vmatprep.subr.mxu0 0.0
    %329 = vmatpush2.msra.mxu0 0.0
    %330 = vmatprep.subr.mxu0 0.0
    %331 = vmatpush2.msra.mxu0 0.0
    %332 = vmatprep.subr.mxu0 0.0
    %333 = vmatpush2.msra.mxu0 0.0
    %334 = vmatprep.subr.mxu0 0.0
    %335 = vmatpush2.msra.mxu0 0.0
    %336 = vmatprep.subr.mxu0 0.0
    %337 = vmatpush2.msra.mxu0 0.0
    %338 = vmatprep.subr.mxu0 0.0
    %339 = vmatpush2.msra.mxu0 0.0
    %340 = vmatprep.subr.mxu0 0.0
    %341 = vmatpush2.msra.mxu0 0.0
    %342 = vmatprep.subr.mxu0 0.0
    %343 = vmatpush2.msra.mxu0 0.0
    %344 = vmatprep.mubr.f32.mxu0 0.0
    %345 = vmatmul.mubr.f32.gmra.mxu0 %v278
    %v346 = vpop.f32.mrf.mxu0
    %v347 = vadd.f32 %v274, %v346
    %v348 = vpop.f32.mrf.mxu0
    %349 = vdwg.mxu0
    %v350 = vld [vmem:[#allocation12] sm:$0xff]
    %v351 = vld [vmem:[#allocation12 + $0x8] sm:$0xff]
    %v352 = vld [vmem:[#allocation12 + $0x10] sm:$0xff]
    %v353 = vld [vmem:[#allocation12 + $0x18] sm:$0xff]
    %v354 = vld [vmem:[#allocation12 + $0x20] sm:$0xff]
    %v355 = vld [vmem:[#allocation12 + $0x28] sm:$0xff]
    %v356 = vld [vmem:[#allocation12 + $0x30] sm:$0xff]
    %v357 = vld [vmem:[#allocation12 + $0x38] sm:$0xff]
    %v358 = vld [vmem:[#allocation12 + $0x40] sm:$0xff]
    %v359 = vld [vmem:[#allocation12 + $0x48] sm:$0xff]
    %v360 = vld [vmem:[#allocation12 + $0x50] sm:$0xff]
    %v361 = vld [vmem:[#allocation12 + $0x58] sm:$0xff]
    %v362 = vld [vmem:[#allocation12 + $0x60] sm:$0xff]
    %v363 = vld [vmem:[#allocation12 + $0x68] sm:$0xff]
    %v364 = vld [vmem:[#allocation12 + $0x70] sm:$0xff]
    %v365 = vld [vmem:[#allocation12 + $0x78] sm:$0xff]
    %v366 = vld [vmem:[%s7] sm:$0x1]
    %s367 = scalar_lea.vmem [#allocation12], 128
    %v368 = vld [vmem:[%s367] sm:$0xff]
    %v369 = vld [vmem:[%s367 + $0x8] sm:$0xff]
    %v370 = vld [vmem:[%s367 + $0x10] sm:$0xff]
    %v371 = vld [vmem:[%s367 + $0x18] sm:$0xff]
    %v372 = vld [vmem:[%s367 + $0x20] sm:$0xff]
    %v373 = vld [vmem:[%s367 + $0x28] sm:$0xff]
    %v374 = vld [vmem:[%s367 + $0x30] sm:$0xff]
    %v375 = vld [vmem:[%s367 + $0x38] sm:$0xff]
    %v376 = vld [vmem:[%s367 + $0x40] sm:$0xff]
    %v377 = vld [vmem:[%s367 + $0x48] sm:$0xff]
    %v378 = vld [vmem:[%s367 + $0x50] sm:$0xff]
    %v379 = vld [vmem:[%s367 + $0x58] sm:$0xff]
    %v380 = vld [vmem:[%s367 + $0x60] sm:$0xff]
    %v381 = vld [vmem:[%s367 + $0x68] sm:$0xff]
    %v382 = vld [vmem:[%s367 + $0x70] sm:$0xff]
    %v383 = vld [vmem:[%s367 + $0x78] sm:$0xff]
    %s384 = scalar_lea.vmem %s7, 1
    %v385 = vld [vmem:[%s384] sm:$0x1]
    %v387 = vlaneseq
    %v388 = vshrl.u32 %v387, 7
    %v389 = vsub.s32 0, %v388
    %v390 = vrot.slane %v366, %v389
    %392 = vmatprep.subr.mxu0 0.0
    %393 = vmatpush1.msra.mxu0 %v365
    %394 = vmatprep.subr.mxu0 0.0
    %395 = vmatpush1.msra.mxu0 %v364
    %396 = vmatprep.subr.mxu0 0.0
    %397 = vmatpush1.msra.mxu0 %v363
    %398 = vmatprep.subr.mxu0 0.0
    %399 = vmatpush1.msra.mxu0 %v362
    %400 = vmatprep.subr.mxu0 0.0
    %401 = vmatpush1.msra.mxu0 %v361
    %402 = vmatprep.subr.mxu0 0.0
    %403 = vmatpush1.msra.mxu0 %v360
    %404 = vmatprep.subr.mxu0 0.0
    %405 = vmatpush1.msra.mxu0 %v359
    %406 = vmatprep.subr.mxu0 0.0
    %407 = vmatpush1.msra.mxu0 %v358
    %408 = vmatprep.subr.mxu0 0.0
    %409 = vmatpush1.msra.mxu0 %v357
    %410 = vmatprep.subr.mxu0 0.0
    %411 = vmatpush1.msra.mxu0 %v356
    %412 = vmatprep.subr.mxu0 0.0
    %413 = vmatpush1.msra.mxu0 %v355
    %414 = vmatprep.subr.mxu0 0.0
    %415 = vmatpush1.msra.mxu0 %v354
    %416 = vmatprep.subr.mxu0 0.0
    %417 = vmatpush1.msra.mxu0 %v353
    %418 = vmatprep.subr.mxu0 0.0
    %419 = vmatpush1.msra.mxu0 %v352
    %420 = vmatprep.subr.mxu0 0.0
    %421 = vmatpush1.msra.mxu0 %v351
    %422 = vmatprep.subr.mxu0 0.0
    %423 = vmatpush1.msra.mxu0 %v350
    %424 = vmatprep.subr.mxu0 0.0
    %425 = vmatpush2.msra.mxu0 0.0
    %426 = vmatprep.subr.mxu0 0.0
    %427 = vmatpush2.msra.mxu0 0.0
    %428 = vmatprep.subr.mxu0 0.0
    %429 = vmatpush2.msra.mxu0 0.0
    %430 = vmatprep.subr.mxu0 0.0
    %431 = vmatpush2.msra.mxu0 0.0
    %432 = vmatprep.subr.mxu0 0.0
    %433 = vmatpush2.msra.mxu0 0.0
    %434 = vmatprep.subr.mxu0 0.0
    %435 = vmatpush2.msra.mxu0 0.0
    %436 = vmatprep.subr.mxu0 0.0
    %437 = vmatpush2.msra.mxu0 0.0
    %438 = vmatprep.subr.mxu0 0.0
    %439 = vmatpush2.msra.mxu0 0.0
    %440 = vmatprep.subr.mxu0 0.0
    %441 = vmatpush2.msra.mxu0 0.0
    %442 = vmatprep.subr.mxu0 0.0
    %443 = vmatpush2.msra.mxu0 0.0
    %444 = vmatprep.subr.mxu0 0.0
    %445 = vmatpush2.msra.mxu0 0.0
    %446 = vmatprep.subr.mxu0 0.0
    %447 = vmatpush2.msra.mxu0 0.0
    %448 = vmatprep.subr.mxu0 0.0
    %449 = vmatpush2.msra.mxu0 0.0
    %450 = vmatprep.subr.mxu0 0.0
    %451 = vmatpush2.msra.mxu0 0.0
    %452 = vmatprep.subr.mxu0 0.0
    %453 = vmatpush2.msra.mxu0 0.0
    %454 = vmatprep.subr.mxu0 0.0
    %455 = vmatpush2.msra.mxu0 0.0
    %456 = vmatprep.mubr.f32.mxu0 0.0
    %457 = vmatmul.mubr.f32.gmra.mxu0 %v347
    %v458 = vpop.f32.mrf.mxu0
    %v459 = vadd.f32 %v390, %v458
    %v460 = vpop.f32.mrf.mxu0
    %461 = vdwg.mxu0
    %v462 = vmax.f32 %v459, 0.0
    %463 = vmatprep.subr.mxu0 0.0
    %464 = vmatpush1.msra.mxu0 %v383
    %465 = vmatprep.subr.mxu0 0.0
    %466 = vmatpush1.msra.mxu0 %v382
    %467 = vmatprep.subr.mxu0 0.0
    %468 = vmatpush1.msra.mxu0 %v381
    %469 = vmatprep.subr.mxu0 0.0
    %470 = vmatpush1.msra.mxu0 %v380
    %471 = vmatprep.subr.mxu0 0.0
    %472 = vmatpush1.msra.mxu0 %v379
    %473 = vmatprep.subr.mxu0 0.0
    %474 = vmatpush1.msra.mxu0 %v378
    %475 = vmatprep.subr.mxu0 0.0
    %476 = vmatpush1.msra.mxu0 %v377
    %477 = vmatprep.subr.mxu0 0.0
    %478 = vmatpush1.msra.mxu0 %v376
    %479 = vmatprep.subr.mxu0 0.0
    %480 = vmatpush1.msra.mxu0 %v375
    %481 = vmatprep.subr.mxu0 0.0
    %482 = vmatpush1.msra.mxu0 %v374
    %483 = vmatprep.subr.mxu0 0.0
    %484 = vmatpush1.msra.mxu0 %v373
    %485 = vmatprep.subr.mxu0 0.0
    %486 = vmatpush1.msra.mxu0 %v372
    %487 = vmatprep.subr.mxu0 0.0
    %488 = vmatpush1.msra.mxu0 %v371
    %489 = vmatprep.subr.mxu0 0.0
    %490 = vmatpush1.msra.mxu0 %v370
    %491 = vmatprep.subr.mxu0 0.0
    %492 = vmatpush1.msra.mxu0 %v369
    %493 = vmatprep.subr.mxu0 0.0
    %494 = vmatpush1.msra.mxu0 %v368
    %495 = vmatprep.subr.mxu0 0.0
    %496 = vmatpush2.msra.mxu0 0.0
    %497 = vmatprep.subr.mxu0 0.0
    %498 = vmatpush2.msra.mxu0 0.0
    %499 = vmatprep.subr.mxu0 0.0
    %500 = vmatpush2.msra.mxu0 0.0
    %501 = vmatprep.subr.mxu0 0.0
    %502 = vmatpush2.msra.mxu0 0.0
    %503 = vmatprep.subr.mxu0 0.0
    %504 = vmatpush2.msra.mxu0 0.0
    %505 = vmatprep.subr.mxu0 0.0
    %506 = vmatpush2.msra.mxu0 0.0
    %507 = vmatprep.subr.mxu0 0.0
    %508 = vmatpush2.msra.mxu0 0.0
    %509 = vmatprep.subr.mxu0 0.0
    %510 = vmatpush2.msra.mxu0 0.0
    %511 = vmatprep.subr.mxu0 0.0
    %512 = vmatpush2.msra.mxu0 0.0
    %513 = vmatprep.subr.mxu0 0.0
    %514 = vmatpush2.msra.mxu0 0.0
    %515 = vmatprep.subr.mxu0 0.0
    %516 = vmatpush2.msra.mxu0 0.0
    %517 = vmatprep.subr.mxu0 0.0
    %518 = vmatpush2.msra.mxu0 0.0
    %519 = vmatprep.subr.mxu0 0.0
    %520 = vmatpush2.msra.mxu0 0.0
    %521 = vmatprep.subr.mxu0 0.0
    %522 = vmatpush2.msra.mxu0 0.0
    %523 = vmatprep.subr.mxu0 0.0
    %524 = vmatpush2.msra.mxu0 0.0
    %525 = vmatprep.subr.mxu0 0.0
    %526 = vmatpush2.msra.mxu0 0.0
    %527 = vmatprep.mubr.f32.mxu0 0.0
    %528 = vmatmul.mubr.f32.gmra.mxu0 %v462
    %v529 = vpop.f32.mrf.mxu0
    %v530 = vadd.f32 0.0, %v529
    %v531 = vpop.f32.mrf.mxu0
    %532 = vdwg.mxu0
    %v533 = vadd.f32 %v347, %v530
    %v535 = vlaneseq
    %v536 = vshrl.u32 %v535, 7
    %v537 = vsub.s32 0, %v536
    %v538 = vrot.slane %v385, %v537
    %v540 = vadd.f32 %v533, %v538
    %s541 = scalar_lea.vmem [#allocation12], 256
    %v542 = vld [vmem:[%s541] sm:$0xff]
    %v543 = vld [vmem:[%s541 + $0x8] sm:$0xff]
    %v544 = vld [vmem:[%s541 + $0x10] sm:$0xff]
    %v545 = vld [vmem:[%s541 + $0x18] sm:$0xff]
    %v546 = vld [vmem:[%s541 + $0x20] sm:$0xff]
    %v547 = vld [vmem:[%s541 + $0x28] sm:$0xff]
    %v548 = vld [vmem:[%s541 + $0x30] sm:$0xff]
    %v549 = vld [vmem:[%s541 + $0x38] sm:$0xff]
    %v550 = vld [vmem:[%s541 + $0x40] sm:$0xff]
    %v551 = vld [vmem:[%s541 + $0x48] sm:$0xff]
    %v552 = vld [vmem:[%s541 + $0x50] sm:$0xff]
    %v553 = vld [vmem:[%s541 + $0x58] sm:$0xff]
    %v554 = vld [vmem:[%s541 + $0x60] sm:$0xff]
    %v555 = vld [vmem:[%s541 + $0x68] sm:$0xff]
    %v556 = vld [vmem:[%s541 + $0x70] sm:$0xff]
    %v557 = vld [vmem:[%s541 + $0x78] sm:$0xff]
    %s558 = scalar_lea.vmem %s7, 2
    %v559 = vld [vmem:[%s558] sm:$0x1]
    %s560 = scalar_lea.vmem [#allocation12], 384
    %v561 = vld [vmem:[%s560] sm:$0xff]
    %v562 = vld [vmem:[%s560 + $0x8] sm:$0xff]
    %v563 = vld [vmem:[%s560 + $0x10] sm:$0xff]
    %v564 = vld [vmem:[%s560 + $0x18] sm:$0xff]
    %v565 = vld [vmem:[%s560 + $0x20] sm:$0xff]
    %v566 = vld [vmem:[%s560 + $0x28] sm:$0xff]
    %v567 = vld [vmem:[%s560 + $0x30] sm:$0xff]
    %v568 = vld [vmem:[%s560 + $0x38] sm:$0xff]
    %v569 = vld [vmem:[%s560 + $0x40] sm:$0xff]
    %v570 = vld [vmem:[%s560 + $0x48] sm:$0xff]
    %v571 = vld [vmem:[%s560 + $0x50] sm:$0xff]
    %v572 = vld [vmem:[%s560 + $0x58] sm:$0xff]
    %v573 = vld [vmem:[%s560 + $0x60] sm:$0xff]
    %v574 = vld [vmem:[%s560 + $0x68] sm:$0xff]
    %v575 = vld [vmem:[%s560 + $0x70] sm:$0xff]
    %v576 = vld [vmem:[%s560 + $0x78] sm:$0xff]
    %s577 = scalar_lea.vmem %s7, 3
    %v578 = vld [vmem:[%s577] sm:$0x1]
    %v580 = vlaneseq
    %v581 = vshrl.u32 %v580, 7
    %v582 = vsub.s32 0, %v581
    %v583 = vrot.slane %v559, %v582
    %585 = vmatprep.subr.mxu0 0.0
    %586 = vmatpush1.msra.mxu0 %v557
    %587 = vmatprep.subr.mxu0 0.0
    %588 = vmatpush1.msra.mxu0 %v556
    %589 = vmatprep.subr.mxu0 0.0
    %590 = vmatpush1.msra.mxu0 %v555
    %591 = vmatprep.subr.mxu0 0.0
    %592 = vmatpush1.msra.mxu0 %v554
    %593 = vmatprep.subr.mxu0 0.0
    %594 = vmatpush1.msra.mxu0 %v553
    %595 = vmatprep.subr.mxu0 0.0
    %596 = vmatpush1.msra.mxu0 %v552
    %597 = vmatprep.subr.mxu0 0.0
    %598 = vmatpush1.msra.mxu0 %v551
    %599 = vmatprep.subr.mxu0 0.0
    %600 = vmatpush1.msra.mxu0 %v550
    %601 = vmatprep.subr.mxu0 0.0
    %602 = vmatpush1.msra.mxu0 %v549
    %603 = vmatprep.subr.mxu0 0.0
    %604 = vmatpush1.msra.mxu0 %v548
    %605 = vmatprep.subr.mxu0 0.0
    %606 = vmatpush1.msra.mxu0 %v547
    %607 = vmatprep.subr.mxu0 0.0
    %608 = vmatpush1.msra.mxu0 %v546
    %609 = vmatprep.subr.mxu0 0.0
    %610 = vmatpush1.msra.mxu0 %v545
    %611 = vmatprep.subr.mxu0 0.0
    %612 = vmatpush1.msra.mxu0 %v544
    %613 = vmatprep.subr.mxu0 0.0
    %614 = vmatpush1.msra.mxu0 %v543
    %615 = vmatprep.subr.mxu0 0.0
    %616 = vmatpush1.msra.mxu0 %v542
    %617 = vmatprep.subr.mxu0 0.0
    %618 = vmatpush2.msra.mxu0 0.0
    %619 = vmatprep.subr.mxu0 0.0
    %620 = vmatpush2.msra.mxu0 0.0
    %621 = vmatprep.subr.mxu0 0.0
    %622 = vmatpush2.msra.mxu0 0.0
    %623 = vmatprep.subr.mxu0 0.0
    %624 = vmatpush2.msra.mxu0 0.0
    %625 = vmatprep.subr.mxu0 0.0
    %626 = vmatpush2.msra.mxu0 0.0
    %627 = vmatprep.subr.mxu0 0.0
    %628 = vmatpush2.msra.mxu0 0.0
    %629 = vmatprep.subr.mxu0 0.0
    %630 = vmatpush2.msra.mxu0 0.0
    %631 = vmatprep.subr.mxu0 0.0
    %632 = vmatpush2.msra.mxu0 0.0
    %633 = vmatprep.subr.mxu0 0.0
    %634 = vmatpush2.msra.mxu0 0.0
    %635 = vmatprep.subr.mxu0 0.0
    %636 = vmatpush2.msra.mxu0 0.0
    %637 = vmatprep.subr.mxu0 0.0
    %638 = vmatpush2.msra.mxu0 0.0
    %639 = vmatprep.subr.mxu0 0.0
    %640 = vmatpush2.msra.mxu0 0.0
    %641 = vmatprep.subr.mxu0 0.0
    %642 = vmatpush2.msra.mxu0 0.0
    %643 = vmatprep.subr.mxu0 0.0
    %644 = vmatpush2.msra.mxu0 0.0
    %645 = vmatprep.subr.mxu0 0.0
    %646 = vmatpush2.msra.mxu0 0.0
    %647 = vmatprep.subr.mxu0 0.0
    %648 = vmatpush2.msra.mxu0 0.0
    %649 = vmatprep.mubr.f32.mxu0 0.0
    %650 = vmatmul.mubr.f32.gmra.mxu0 %v540
    %v651 = vpop.f32.mrf.mxu0
    %v652 = vadd.f32 %v583, %v651
    %v653 = vpop.f32.mrf.mxu0
    %654 = vdwg.mxu0
    %v655 = vmax.f32 %v652, 0.0
    %656 = vmatprep.subr.mxu0 0.0
    %657 = vmatpush1.msra.mxu0 %v576
    %658 = vmatprep.subr.mxu0 0.0
    %659 = vmatpush1.msra.mxu0 %v575
    %660 = vmatprep.subr.mxu0 0.0
    %661 = vmatpush1.msra.mxu0 %v574
    %662 = vmatprep.subr.mxu0 0.0
    %663 = vmatpush1.msra.mxu0 %v573
    %664 = vmatprep.subr.mxu0 0.0
    %665 = vmatpush1.msra.mxu0 %v572
    %666 = vmatprep.subr.mxu0 0.0
    %667 = vmatpush1.msra.mxu0 %v571
    %668 = vmatprep.subr.mxu0 0.0
    %669 = vmatpush1.msra.mxu0 %v570
    %670 = vmatprep.subr.mxu0 0.0
    %671 = vmatpush1.msra.mxu0 %v569
    %672 = vmatprep.subr.mxu0 0.0
    %673 = vmatpush1.msra.mxu0 %v568
    %674 = vmatprep.subr.mxu0 0.0
    %675 = vmatpush1.msra.mxu0 %v567
    %676 = vmatprep.subr.mxu0 0.0
    %677 = vmatpush1.msra.mxu0 %v566
    %678 = vmatprep.subr.mxu0 0.0
    %679 = vmatpush1.msra.mxu0 %v565
    %680 = vmatprep.subr.mxu0 0.0
    %681 = vmatpush1.msra.mxu0 %v564
    %682 = vmatprep.subr.mxu0 0.0
    %683 = vmatpush1.msra.mxu0 %v563
    %684 = vmatprep.subr.mxu0 0.0
    %685 = vmatpush1.msra.mxu0 %v562
    %686 = vmatprep.subr.mxu0 0.0
    %687 = vmatpush1.msra.mxu0 %v561
    %688 = vmatprep.subr.mxu0 0.0
    %689 = vmatpush2.msra.mxu0 0.0
    %690 = vmatprep.subr.mxu0 0.0
    %691 = vmatpush2.msra.mxu0 0.0
    %692 = vmatprep.subr.mxu0 0.0
    %693 = vmatpush2.msra.mxu0 0.0
    %694 = vmatprep.subr.mxu0 0.0
    %695 = vmatpush2.msra.mxu0 0.0
    %696 = vmatprep.subr.mxu0 0.0
    %697 = vmatpush2.msra.mxu0 0.0
    %698 = vmatprep.subr.mxu0 0.0
    %699 = vmatpush2.msra.mxu0 0.0
    %700 = vmatprep.subr.mxu0 0.0
    %701 = vmatpush2.msra.mxu0 0.0
    %702 = vmatprep.subr.mxu0 0.0
    %703 = vmatpush2.msra.mxu0 0.0
    %704 = vmatprep.subr.mxu0 0.0
    %705 = vmatpush2.msra.mxu0 0.0
    %706 = vmatprep.subr.mxu0 0.0
    %707 = vmatpush2.msra.mxu0 0.0
    %708 = vmatprep.subr.mxu0 0.0
    %709 = vmatpush2.msra.mxu0 0.0
    %710 = vmatprep.subr.mxu0 0.0
    %711 = vmatpush2.msra.mxu0 0.0
    %712 = vmatprep.subr.mxu0 0.0
    %713 = vmatpush2.msra.mxu0 0.0
    %714 = vmatprep.subr.mxu0 0.0
    %715 = vmatpush2.msra.mxu0 0.0
    %716 = vmatprep.subr.mxu0 0.0
    %717 = vmatpush2.msra.mxu0 0.0
    %718 = vmatprep.subr.mxu0 0.0
    %719 = vmatpush2.msra.mxu0 0.0
    %720 = vmatprep.mubr.f32.mxu0 0.0
    %721 = vmatmul.mubr.f32.gmra.mxu0 %v655
    %v722 = vpop.f32.mrf.mxu0
    %v723 = vadd.f32 0.0, %v722
    %v724 = vpop.f32.mrf.mxu0
    %725 = vdwg.mxu0
    %v726 = vadd.f32 %v540, %v723
    %v728 = vlaneseq
    %v729 = vshrl.u32 %v728, 7
    %v730 = vsub.s32 0, %v729
    %v731 = vrot.slane %v578, %v730
    %v733 = vadd.f32 %v726, %v731
    %s734 = scalar_lea.vmem [#allocation12], 512
    %v735 = vld [vmem:[%s734] sm:$0xff]
    %v736 = vld [vmem:[%s734 + $0x8] sm:$0xff]
    %v737 = vld [vmem:[%s734 + $0x10] sm:$0xff]
    %v738 = vld [vmem:[%s734 + $0x18] sm:$0xff]
    %v739 = vld [vmem:[%s734 + $0x20] sm:$0xff]
    %v740 = vld [vmem:[%s734 + $0x28] sm:$0xff]
    %v741 = vld [vmem:[%s734 + $0x30] sm:$0xff]
    %v742 = vld [vmem:[%s734 + $0x38] sm:$0xff]
    %v743 = vld [vmem:[%s734 + $0x40] sm:$0xff]
    %v744 = vld [vmem:[%s734 + $0x48] sm:$0xff]
    %v745 = vld [vmem:[%s734 + $0x50] sm:$0xff]
    %v746 = vld [vmem:[%s734 + $0x58] sm:$0xff]
    %v747 = vld [vmem:[%s734 + $0x60] sm:$0xff]
    %v748 = vld [vmem:[%s734 + $0x68] sm:$0xff]
    %v749 = vld [vmem:[%s734 + $0x70] sm:$0xff]
    %v750 = vld [vmem:[%s734 + $0x78] sm:$0xff]
    %s751 = scalar_lea.vmem %s7, 4
    %v752 = vld [vmem:[%s751] sm:$0x1]
    %s753 = scalar_lea.vmem [#allocation12], 640
    %v754 = vld [vmem:[%s753] sm:$0xff]
    %v755 = vld [vmem:[%s753 + $0x8] sm:$0xff]
    %v756 = vld [vmem:[%s753 + $0x10] sm:$0xff]
    %v757 = vld [vmem:[%s753 + $0x18] sm:$0xff]
    %v758 = vld [vmem:[%s753 + $0x20] sm:$0xff]
    %v759 = vld [vmem:[%s753 + $0x28] sm:$0xff]
    %v760 = vld [vmem:[%s753 + $0x30] sm:$0xff]
    %v761 = vld [vmem:[%s753 + $0x38] sm:$0xff]
    %v762 = vld [vmem:[%s753 + $0x40] sm:$0xff]
    %v763 = vld [vmem:[%s753 + $0x48] sm:$0xff]
    %v764 = vld [vmem:[%s753 + $0x50] sm:$0xff]
    %v765 = vld [vmem:[%s753 + $0x58] sm:$0xff]
    %v766 = vld [vmem:[%s753 + $0x60] sm:$0xff]
    %v767 = vld [vmem:[%s753 + $0x68] sm:$0xff]
    %v768 = vld [vmem:[%s753 + $0x70] sm:$0xff]
    %v769 = vld [vmem:[%s753 + $0x78] sm:$0xff]
    %s770 = scalar_lea.vmem %s7, 5
    %v771 = vld [vmem:[%s770] sm:$0x1]
    %v773 = vlaneseq
    %v774 = vshrl.u32 %v773, 7
    %v775 = vsub.s32 0, %v774
    %v776 = vrot.slane %v752, %v775
    %778 = vmatprep.subr.mxu0 0.0
    %779 = vmatpush1.msra.mxu0 %v750
    %780 = vmatprep.subr.mxu0 0.0
    %781 = vmatpush1.msra.mxu0 %v749
    %782 = vmatprep.subr.mxu0 0.0
    %783 = vmatpush1.msra.mxu0 %v748
    %784 = vmatprep.subr.mxu0 0.0
    %785 = vmatpush1.msra.mxu0 %v747
    %786 = vmatprep.subr.mxu0 0.0
    %787 = vmatpush1.msra.mxu0 %v746
    %788 = vmatprep.subr.mxu0 0.0
    %789 = vmatpush1.msra.mxu0 %v745
    %790 = vmatprep.subr.mxu0 0.0
    %791 = vmatpush1.msra.mxu0 %v744
    %792 = vmatprep.subr.mxu0 0.0
    %793 = vmatpush1.msra.mxu0 %v743
    %794 = vmatprep.subr.mxu0 0.0
    %795 = vmatpush1.msra.mxu0 %v742
    %796 = vmatprep.subr.mxu0 0.0
    %797 = vmatpush1.msra.mxu0 %v741
    %798 = vmatprep.subr.mxu0 0.0
    %799 = vmatpush1.msra.mxu0 %v740
    %800 = vmatprep.subr.mxu0 0.0
    %801 = vmatpush1.msra.mxu0 %v739
    %802 = vmatprep.subr.mxu0 0.0
    %803 = vmatpush1.msra.mxu0 %v738
    %804 = vmatprep.subr.mxu0 0.0
    %805 = vmatpush1.msra.mxu0 %v737
    %806 = vmatprep.subr.mxu0 0.0
    %807 = vmatpush1.msra.mxu0 %v736
    %808 = vmatprep.subr.mxu0 0.0
    %809 = vmatpush1.msra.mxu0 %v735
    %810 = vmatprep.subr.mxu0 0.0
    %811 = vmatpush2.msra.mxu0 0.0
    %812 = vmatprep.subr.mxu0 0.0
    %813 = vmatpush2.msra.mxu0 0.0
    %814 = vmatprep.subr.mxu0 0.0
    %815 = vmatpush2.msra.mxu0 0.0
    %816 = vmatprep.subr.mxu0 0.0
    %817 = vmatpush2.msra.mxu0 0.0
    %818 = vmatprep.subr.mxu0 0.0
    %819 = vmatpush2.msra.mxu0 0.0
    %820 = vmatprep.subr.mxu0 0.0
    %821 = vmatpush2.msra.mxu0 0.0
    %822 = vmatprep.subr.mxu0 0.0
    %823 = vmatpush2.msra.mxu0 0.0
    %824 = vmatprep.subr.mxu0 0.0
    %825 = vmatpush2.msra.mxu0 0.0
    %826 = vmatprep.subr.mxu0 0.0
    %827 = vmatpush2.msra.mxu0 0.0
    %828 = vmatprep.subr.mxu0 0.0
    %829 = vmatpush2.msra.mxu0 0.0
    %830 = vmatprep.subr.mxu0 0.0
    %831 = vmatpush2.msra.mxu0 0.0
    %832 = vmatprep.subr.mxu0 0.0
    %833 = vmatpush2.msra.mxu0 0.0
    %834 = vmatprep.subr.mxu0 0.0
    %835 = vmatpush2.msra.mxu0 0.0
    %836 = vmatprep.subr.mxu0 0.0
    %837 = vmatpush2.msra.mxu0 0.0
    %838 = vmatprep.subr.mxu0 0.0
    %839 = vmatpush2.msra.mxu0 0.0
    %840 = vmatprep.subr.mxu0 0.0
    %841 = vmatpush2.msra.mxu0 0.0
    %842 = vmatprep.mubr.f32.mxu0 0.0
    %843 = vmatmul.mubr.f32.gmra.mxu0 %v733
    %v844 = vpop.f32.mrf.mxu0
    %v845 = vadd.f32 %v776, %v844
    %v846 = vpop.f32.mrf.mxu0
    %847 = vdwg.mxu0
    %v848 = vmax.f32 %v845, 0.0
    %849 = vmatprep.subr.mxu0 0.0
    %850 = vmatpush1.msra.mxu0 %v769
    %851 = vmatprep.subr.mxu0 0.0
    %852 = vmatpush1.msra.mxu0 %v768
    %853 = vmatprep.subr.mxu0 0.0
    %854 = vmatpush1.msra.mxu0 %v767
    %855 = vmatprep.subr.mxu0 0.0
    %856 = vmatpush1.msra.mxu0 %v766
    %857 = vmatprep.subr.mxu0 0.0
    %858 = vmatpush1.msra.mxu0 %v765
    %859 = vmatprep.subr.mxu0 0.0
    %860 = vmatpush1.msra.mxu0 %v764
    %861 = vmatprep.subr.mxu0 0.0
    %862 = vmatpush1.msra.mxu0 %v763
    %863 = vmatprep.subr.mxu0 0.0
    %864 = vmatpush1.msra.mxu0 %v762
    %865 = vmatprep.subr.mxu0 0.0
    %866 = vmatpush1.msra.mxu0 %v761
    %867 = vmatprep.subr.mxu0 0.0
    %868 = vmatpush1.msra.mxu0 %v760
    %869 = vmatprep.subr.mxu0 0.0
    %870 = vmatpush1.msra.mxu0 %v759
    %871 = vmatprep.subr.mxu0 0.0
    %872 = vmatpush1.msra.mxu0 %v758
    %873 = vmatprep.subr.mxu0 0.0
    %874 = vmatpush1.msra.mxu0 %v757
    %875 = vmatprep.subr.mxu0 0.0
    %876 = vmatpush1.msra.mxu0 %v756
    %877 = vmatprep.subr.mxu0 0.0
    %878 = vmatpush1.msra.mxu0 %v755
    %879 = vmatprep.subr.mxu0 0.0
    %880 = vmatpush1.msra.mxu0 %v754
    %881 = vmatprep.subr.mxu0 0.0
    %882 = vmatpush2.msra.mxu0 0.0
    %883 = vmatprep.subr.mxu0 0.0
    %884 = vmatpush2.msra.mxu0 0.0
    %885 = vmatprep.subr.mxu0 0.0
    %886 = vmatpush2.msra.mxu0 0.0
    %887 = vmatprep.subr.mxu0 0.0
    %888 = vmatpush2.msra.mxu0 0.0
    %889 = vmatprep.subr.mxu0 0.0
    %890 = vmatpush2.msra.mxu0 0.0
    %891 = vmatprep.subr.mxu0 0.0
    %892 = vmatpush2.msra.mxu0 0.0
    %893 = vmatprep.subr.mxu0 0.0
    %894 = vmatpush2.msra.mxu0 0.0
    %895 = vmatprep.subr.mxu0 0.0
    %896 = vmatpush2.msra.mxu0 0.0
    %897 = vmatprep.subr.mxu0 0.0
    %898 = vmatpush2.msra.mxu0 0.0
    %899 = vmatprep.subr.mxu0 0.0
    %900 = vmatpush2.msra.mxu0 0.0
    %901 = vmatprep.subr.mxu0 0.0
    %902 = vmatpush2.msra.mxu0 0.0
    %903 = vmatprep.subr.mxu0 0.0
    %904 = vmatpush2.msra.mxu0 0.0
    %905 = vmatprep.subr.mxu0 0.0
    %906 = vmatpush2.msra.mxu0 0.0
    %907 = vmatprep.subr.mxu0 0.0
    %908 = vmatpush2.msra.mxu0 0.0
    %909 = vmatprep.subr.mxu0 0.0
    %910 = vmatpush2.msra.mxu0 0.0
    %911 = vmatprep.subr.mxu0 0.0
    %912 = vmatpush2.msra.mxu0 0.0
    %913 = vmatprep.mubr.f32.mxu0 0.0
    %914 = vmatmul.mubr.f32.gmra.mxu0 %v848
    %v915 = vpop.f32.mrf.mxu0
    %v916 = vadd.f32 0.0, %v915
    %v917 = vpop.f32.mrf.mxu0
    %918 = vdwg.mxu0
    %v919 = vadd.f32 %v733, %v916
    %v921 = vlaneseq
    %v922 = vshrl.u32 %v921, 7
    %v923 = vsub.s32 0, %v922
    %v924 = vrot.slane %v771, %v923
    %v926 = vadd.f32 %v919, %v924
    %s927 = scalar_lea.vmem [#allocation12], 768
    %v928 = vld [vmem:[%s927] sm:$0xff]
    %v929 = vld [vmem:[%s927 + $0x8] sm:$0xff]
    %v930 = vld [vmem:[%s927 + $0x10] sm:$0xff]
    %v931 = vld [vmem:[%s927 + $0x18] sm:$0xff]
    %v932 = vld [vmem:[%s927 + $0x20] sm:$0xff]
    %v933 = vld [vmem:[%s927 + $0x28] sm:$0xff]
    %v934 = vld [vmem:[%s927 + $0x30] sm:$0xff]
    %v935 = vld [vmem:[%s927 + $0x38] sm:$0xff]
    %v936 = vld [vmem:[%s927 + $0x40] sm:$0xff]
    %v937 = vld [vmem:[%s927 + $0x48] sm:$0xff]
    %v938 = vld [vmem:[%s927 + $0x50] sm:$0xff]
    %v939 = vld [vmem:[%s927 + $0x58] sm:$0xff]
    %v940 = vld [vmem:[%s927 + $0x60] sm:$0xff]
    %v941 = vld [vmem:[%s927 + $0x68] sm:$0xff]
    %v942 = vld [vmem:[%s927 + $0x70] sm:$0xff]
    %v943 = vld [vmem:[%s927 + $0x78] sm:$0xff]
    %s944 = scalar_lea.vmem %s7, 6
    %v945 = vld [vmem:[%s944] sm:$0x1]
    %s946 = scalar_lea.vmem [#allocation12], 896
    %v947 = vld [vmem:[%s946] sm:$0xff]
    %v948 = vld [vmem:[%s946 + $0x8] sm:$0xff]
    %v949 = vld [vmem:[%s946 + $0x10] sm:$0xff]
    %v950 = vld [vmem:[%s946 + $0x18] sm:$0xff]
    %v951 = vld [vmem:[%s946 + $0x20] sm:$0xff]
    %v952 = vld [vmem:[%s946 + $0x28] sm:$0xff]
    %v953 = vld [vmem:[%s946 + $0x30] sm:$0xff]
    %v954 = vld [vmem:[%s946 + $0x38] sm:$0xff]
    %v955 = vld [vmem:[%s946 + $0x40] sm:$0xff]
    %v956 = vld [vmem:[%s946 + $0x48] sm:$0xff]
    %v957 = vld [vmem:[%s946 + $0x50] sm:$0xff]
    %v958 = vld [vmem:[%s946 + $0x58] sm:$0xff]
    %v959 = vld [vmem:[%s946 + $0x60] sm:$0xff]
    %v960 = vld [vmem:[%s946 + $0x68] sm:$0xff]
    %v961 = vld [vmem:[%s946 + $0x70] sm:$0xff]
    %v962 = vld [vmem:[%s946 + $0x78] sm:$0xff]
    %s963 = scalar_lea.vmem %s7, 7
    %v964 = vld [vmem:[%s963] sm:$0x1]
    %v966 = vlaneseq
    %v967 = vshrl.u32 %v966, 7
    %v968 = vsub.s32 0, %v967
    %v969 = vrot.slane %v945, %v968
    %971 = vmatprep.subr.mxu0 0.0
    %972 = vmatpush1.msra.mxu0 %v943
    %973 = vmatprep.subr.mxu0 0.0
    %974 = vmatpush1.msra.mxu0 %v942
    %975 = vmatprep.subr.mxu0 0.0
    %976 = vmatpush1.msra.mxu0 %v941
    %977 = vmatprep.subr.mxu0 0.0
    %978 = vmatpush1.msra.mxu0 %v940
    %979 = vmatprep.subr.mxu0 0.0
    %980 = vmatpush1.msra.mxu0 %v939
    %981 = vmatprep.subr.mxu0 0.0
    %982 = vmatpush1.msra.mxu0 %v938
    %983 = vmatprep.subr.mxu0 0.0
    %984 = vmatpush1.msra.mxu0 %v937
    %985 = vmatprep.subr.mxu0 0.0
    %986 = vmatpush1.msra.mxu0 %v936
    %987 = vmatprep.subr.mxu0 0.0
    %988 = vmatpush1.msra.mxu0 %v935
    %989 = vmatprep.subr.mxu0 0.0
    %990 = vmatpush1.msra.mxu0 %v934
    %991 = vmatprep.subr.mxu0 0.0
    %992 = vmatpush1.msra.mxu0 %v933
    %993 = vmatprep.subr.mxu0 0.0
    %994 = vmatpush1.msra.mxu0 %v932
    %995 = vmatprep.subr.mxu0 0.0
    %996 = vmatpush1.msra.mxu0 %v931
    %997 = vmatprep.subr.mxu0 0.0
    %998 = vmatpush1.msra.mxu0 %v930
    %999 = vmatprep.subr.mxu0 0.0
    %1000 = vmatpush1.msra.mxu0 %v929
    %1001 = vmatprep.subr.mxu0 0.0
    %1002 = vmatpush1.msra.mxu0 %v928
    %1003 = vmatprep.subr.mxu0 0.0
    %1004 = vmatpush2.msra.mxu0 0.0
    %1005 = vmatprep.subr.mxu0 0.0
    %1006 = vmatpush2.msra.mxu0 0.0
    %1007 = vmatprep.subr.mxu0 0.0
    %1008 = vmatpush2.msra.mxu0 0.0
    %1009 = vmatprep.subr.mxu0 0.0
    %1010 = vmatpush2.msra.mxu0 0.0
    %1011 = vmatprep.subr.mxu0 0.0
    %1012 = vmatpush2.msra.mxu0 0.0
    %1013 = vmatprep.subr.mxu0 0.0
    %1014 = vmatpush2.msra.mxu0 0.0
    %1015 = vmatprep.subr.mxu0 0.0
    %1016 = vmatpush2.msra.mxu0 0.0
    %1017 = vmatprep.subr.mxu0 0.0
    %1018 = vmatpush2.msra.mxu0 0.0
    %1019 = vmatprep.subr.mxu0 0.0
    %1020 = vmatpush2.msra.mxu0 0.0
    %1021 = vmatprep.subr.mxu0 0.0
    %1022 = vmatpush2.msra.mxu0 0.0
    %1023 = vmatprep.subr.mxu0 0.0
    %1024 = vmatpush2.msra.mxu0 0.0
    %1025 = vmatprep.subr.mxu0 0.0
    %1026 = vmatpush2.msra.mxu0 0.0
    %1027 = vmatprep.subr.mxu0 0.0
    %1028 = vmatpush2.msra.mxu0 0.0
    %1029 = vmatprep.subr.mxu0 0.0
    %1030 = vmatpush2.msra.mxu0 0.0
    %1031 = vmatprep.subr.mxu0 0.0
    %1032 = vmatpush2.msra.mxu0 0.0
    %1033 = vmatprep.subr.mxu0 0.0
    %1034 = vmatpush2.msra.mxu0 0.0
    %1035 = vmatprep.mubr.f32.mxu0 0.0
    %1036 = vmatmul.mubr.f32.gmra.mxu0 %v926
    %v1037 = vpop.f32.mrf.mxu0
    %v1038 = vadd.f32 %v969, %v1037
    %v1039 = vpop.f32.mrf.mxu0
    %1040 = vdwg.mxu0
    %v1041 = vmax.f32 %v1038, 0.0
    %1042 = vmatprep.subr.mxu0 0.0
    %1043 = vmatpush1.msra.mxu0 %v962
    %1044 = vmatprep.subr.mxu0 0.0
    %1045 = vmatpush1.msra.mxu0 %v961
    %1046 = vmatprep.subr.mxu0 0.0
    %1047 = vmatpush1.msra.mxu0 %v960
    %1048 = vmatprep.subr.mxu0 0.0
    %1049 = vmatpush1.msra.mxu0 %v959
    %1050 = vmatprep.subr.mxu0 0.0
    %1051 = vmatpush1.msra.mxu0 %v958
    %1052 = vmatprep.subr.mxu0 0.0
    %1053 = vmatpush1.msra.mxu0 %v957
    %1054 = vmatprep.subr.mxu0 0.0
    %1055 = vmatpush1.msra.mxu0 %v956
    %1056 = vmatprep.subr.mxu0 0.0
    %1057 = vmatpush1.msra.mxu0 %v955
    %1058 = vmatprep.subr.mxu0 0.0
    %1059 = vmatpush1.msra.mxu0 %v954
    %1060 = vmatprep.subr.mxu0 0.0
    %1061 = vmatpush1.msra.mxu0 %v953
    %1062 = vmatprep.subr.mxu0 0.0
    %1063 = vmatpush1.msra.mxu0 %v952
    %1064 = vmatprep.subr.mxu0 0.0
    %1065 = vmatpush1.msra.mxu0 %v951
    %1066 = vmatprep.subr.mxu0 0.0
    %1067 = vmatpush1.msra.mxu0 %v950
    %1068 = vmatprep.subr.mxu0 0.0
    %1069 = vmatpush1.msra.mxu0 %v949
    %1070 = vmatprep.subr.mxu0 0.0
    %1071 = vmatpush1.msra.mxu0 %v948
    %1072 = vmatprep.subr.mxu0 0.0
    %1073 = vmatpush1.msra.mxu0 %v947
    %1074 = vmatprep.subr.mxu0 0.0
    %1075 = vmatpush2.msra.mxu0 0.0
    %1076 = vmatprep.subr.mxu0 0.0
    %1077 = vmatpush2.msra.mxu0 0.0
    %1078 = vmatprep.subr.mxu0 0.0
    %1079 = vmatpush2.msra.mxu0 0.0
    %1080 = vmatprep.subr.mxu0 0.0
    %1081 = vmatpush2.msra.mxu0 0.0
    %1082 = vmatprep.subr.mxu0 0.0
    %1083 = vmatpush2.msra.mxu0 0.0
    %1084 = vmatprep.subr.mxu0 0.0
    %1085 = vmatpush2.msra.mxu0 0.0
    %1086 = vmatprep.subr.mxu0 0.0
    %1087 = vmatpush2.msra.mxu0 0.0
    %1088 = vmatprep.subr.mxu0 0.0
    %1089 = vmatpush2.msra.mxu0 0.0
    %1090 = vmatprep.subr.mxu0 0.0
    %1091 = vmatpush2.msra.mxu0 0.0
    %1092 = vmatprep.subr.mxu0 0.0
    %1093 = vmatpush2.msra.mxu0 0.0
    %1094 = vmatprep.subr.mxu0 0.0
    %1095 = vmatpush2.msra.mxu0 0.0
    %1096 = vmatprep.subr.mxu0 0.0
    %1097 = vmatpush2.msra.mxu0 0.0
    %1098 = vmatprep.subr.mxu0 0.0
    %1099 = vmatpush2.msra.mxu0 0.0
    %1100 = vmatprep.subr.mxu0 0.0
    %1101 = vmatpush2.msra.mxu0 0.0
    %1102 = vmatprep.subr.mxu0 0.0
    %1103 = vmatpush2.msra.mxu0 0.0
    %1104 = vmatprep.subr.mxu0 0.0
    %1105 = vmatpush2.msra.mxu0 0.0
    %1106 = vmatprep.mubr.f32.mxu0 0.0
    %1107 = vmatmul.mubr.f32.gmra.mxu0 %v1041
    %v1108 = vpop.f32.mrf.mxu0
    %v1109 = vadd.f32 0.0, %v1108
    %v1110 = vpop.f32.mrf.mxu0
    %1111 = vdwg.mxu0
    %v1112 = vadd.f32 %v926, %v1109
    %v1114 = vlaneseq
    %v1115 = vshrl.u32 %v1114, 7
    %v1116 = vsub.s32 0, %v1115
    %v1117 = vrot.slane %v964, %v1116
    %v1119 = vadd.f32 %v1112, %v1117
    %s1120 = scalar_lea.vmem [#allocation12], 1024
    %v1121 = vld [vmem:[%s1120] sm:$0xff]
    %v1122 = vld [vmem:[%s1120 + $0x8] sm:$0xff]
    %v1123 = vld [vmem:[%s1120 + $0x10] sm:$0xff]
    %v1124 = vld [vmem:[%s1120 + $0x18] sm:$0xff]
    %v1125 = vld [vmem:[%s1120 + $0x20] sm:$0xff]
    %v1126 = vld [vmem:[%s1120 + $0x28] sm:$0xff]
    %v1127 = vld [vmem:[%s1120 + $0x30] sm:$0xff]
    %v1128 = vld [vmem:[%s1120 + $0x38] sm:$0xff]
    %v1129 = vld [vmem:[%s1120 + $0x40] sm:$0xff]
    %v1130 = vld [vmem:[%s1120 + $0x48] sm:$0xff]
    %v1131 = vld [vmem:[%s1120 + $0x50] sm:$0xff]
    %v1132 = vld [vmem:[%s1120 + $0x58] sm:$0xff]
    %v1133 = vld [vmem:[%s1120 + $0x60] sm:$0xff]
    %v1134 = vld [vmem:[%s1120 + $0x68] sm:$0xff]
    %v1135 = vld [vmem:[%s1120 + $0x70] sm:$0xff]
    %v1136 = vld [vmem:[%s1120 + $0x78] sm:$0xff]
    %s1137 = scalar_lea.vmem %s7, 8
    %v1138 = vld [vmem:[%s1137] sm:$0x1]
    %s1139 = scalar_lea.vmem [#allocation12], 1152
    %v1140 = vld [vmem:[%s1139] sm:$0xff]
    %v1141 = vld [vmem:[%s1139 + $0x8] sm:$0xff]
    %v1142 = vld [vmem:[%s1139 + $0x10] sm:$0xff]
    %v1143 = vld [vmem:[%s1139 + $0x18] sm:$0xff]
    %v1144 = vld [vmem:[%s1139 + $0x20] sm:$0xff]
    %v1145 = vld [vmem:[%s1139 + $0x28] sm:$0xff]
    %v1146 = vld [vmem:[%s1139 + $0x30] sm:$0xff]
    %v1147 = vld [vmem:[%s1139 + $0x38] sm:$0xff]
    %v1148 = vld [vmem:[%s1139 + $0x40] sm:$0xff]
    %v1149 = vld [vmem:[%s1139 + $0x48] sm:$0xff]
    %v1150 = vld [vmem:[%s1139 + $0x50] sm:$0xff]
    %v1151 = vld [vmem:[%s1139 + $0x58] sm:$0xff]
    %v1152 = vld [vmem:[%s1139 + $0x60] sm:$0xff]
    %v1153 = vld [vmem:[%s1139 + $0x68] sm:$0xff]
    %v1154 = vld [vmem:[%s1139 + $0x70] sm:$0xff]
    %v1155 = vld [vmem:[%s1139 + $0x78] sm:$0xff]
    %s1156 = scalar_lea.vmem %s7, 9
    %v1157 = vld [vmem:[%s1156] sm:$0x1]
    %v1159 = vlaneseq
    %v1160 = vshrl.u32 %v1159, 7
    %v1161 = vsub.s32 0, %v1160
    %v1162 = vrot.slane %v1138, %v1161
    %1164 = vmatprep.subr.mxu0 0.0
    %1165 = vmatpush1.msra.mxu0 %v1136
    %1166 = vmatprep.subr.mxu0 0.0
    %1167 = vmatpush1.msra.mxu0 %v1135
    %1168 = vmatprep.subr.mxu0 0.0
    %1169 = vmatpush1.msra.mxu0 %v1134
    %1170 = vmatprep.subr.mxu0 0.0
    %1171 = vmatpush1.msra.mxu0 %v1133
    %1172 = vmatprep.subr.mxu0 0.0
    %1173 = vmatpush1.msra.mxu0 %v1132
    %1174 = vmatprep.subr.mxu0 0.0
    %1175 = vmatpush1.msra.mxu0 %v1131
    %1176 = vmatprep.subr.mxu0 0.0
    %1177 = vmatpush1.msra.mxu0 %v1130
    %1178 = vmatprep.subr.mxu0 0.0
    %1179 = vmatpush1.msra.mxu0 %v1129
    %1180 = vmatprep.subr.mxu0 0.0
    %1181 = vmatpush1.msra.mxu0 %v1128
    %1182 = vmatprep.subr.mxu0 0.0
    %1183 = vmatpush1.msra.mxu0 %v1127
    %1184 = vmatprep.subr.mxu0 0.0
    %1185 = vmatpush1.msra.mxu0 %v1126
    %1186 = vmatprep.subr.mxu0 0.0
    %1187 = vmatpush1.msra.mxu0 %v1125
    %1188 = vmatprep.subr.mxu0 0.0
    %1189 = vmatpush1.msra.mxu0 %v1124
    %1190 = vmatprep.subr.mxu0 0.0
    %1191 = vmatpush1.msra.mxu0 %v1123
    %1192 = vmatprep.subr.mxu0 0.0
    %1193 = vmatpush1.msra.mxu0 %v1122
    %1194 = vmatprep.subr.mxu0 0.0
    %1195 = vmatpush1.msra.mxu0 %v1121
    %1196 = vmatprep.subr.mxu0 0.0
    %1197 = vmatpush2.msra.mxu0 0.0
    %1198 = vmatprep.subr.mxu0 0.0
    %1199 = vmatpush2.msra.mxu0 0.0
    %1200 = vmatprep.subr.mxu0 0.0
    %1201 = vmatpush2.msra.mxu0 0.0
    %1202 = vmatprep.subr.mxu0 0.0
    %1203 = vmatpush2.msra.mxu0 0.0
    %1204 = vmatprep.subr.mxu0 0.0
    %1205 = vmatpush2.msra.mxu0 0.0
    %1206 = vmatprep.subr.mxu0 0.0
    %1207 = vmatpush2.msra.mxu0 0.0
    %1208 = vmatprep.subr.mxu0 0.0
    %1209 = vmatpush2.msra.mxu0 0.0
    %1210 = vmatprep.subr.mxu0 0.0
    %1211 = vmatpush2.msra.mxu0 0.0
    %1212 = vmatprep.subr.mxu0 0.0
    %1213 = vmatpush2.msra.mxu0 0.0
    %1214 = vmatprep.subr.mxu0 0.0
    %1215 = vmatpush2.msra.mxu0 0.0
    %1216 = vmatprep.subr.mxu0 0.0
    %1217 = vmatpush2.msra.mxu0 0.0
    %1218 = vmatprep.subr.mxu0 0.0
    %1219 = vmatpush2.msra.mxu0 0.0
    %1220 = vmatprep.subr.mxu0 0.0
    %1221 = vmatpush2.msra.mxu0 0.0
    %1222 = vmatprep.subr.mxu0 0.0
    %1223 = vmatpush2.msra.mxu0 0.0
    %1224 = vmatprep.subr.mxu0 0.0
    %1225 = vmatpush2.msra.mxu0 0.0
    %1226 = vmatprep.subr.mxu0 0.0
    %1227 = vmatpush2.msra.mxu0 0.0
    %1228 = vmatprep.mubr.f32.mxu0 0.0
    %1229 = vmatmul.mubr.f32.gmra.mxu0 %v1119
    %v1230 = vpop.f32.mrf.mxu0
    %v1231 = vadd.f32 %v1162, %v1230
    %v1232 = vpop.f32.mrf.mxu0
    %1233 = vdwg.mxu0
    %v1234 = vmax.f32 %v1231, 0.0
    %1235 = vmatprep.subr.mxu0 0.0
    %1236 = vmatpush1.msra.mxu0 %v1155
    %1237 = vmatprep.subr.mxu0 0.0
    %1238 = vmatpush1.msra.mxu0 %v1154
    %1239 = vmatprep.subr.mxu0 0.0
    %1240 = vmatpush1.msra.mxu0 %v1153
    %1241 = vmatprep.subr.mxu0 0.0
    %1242 = vmatpush1.msra.mxu0 %v1152
    %1243 = vmatprep.subr.mxu0 0.0
    %1244 = vmatpush1.msra.mxu0 %v1151
    %1245 = vmatprep.subr.mxu0 0.0
    %1246 = vmatpush1.msra.mxu0 %v1150
    %1247 = vmatprep.subr.mxu0 0.0
    %1248 = vmatpush1.msra.mxu0 %v1149
    %1249 = vmatprep.subr.mxu0 0.0
    %1250 = vmatpush1.msra.mxu0 %v1148
    %1251 = vmatprep.subr.mxu0 0.0
    %1252 = vmatpush1.msra.mxu0 %v1147
    %1253 = vmatprep.subr.mxu0 0.0
    %1254 = vmatpush1.msra.mxu0 %v1146
    %1255 = vmatprep.subr.mxu0 0.0
    %1256 = vmatpush1.msra.mxu0 %v1145
    %1257 = vmatprep.subr.mxu0 0.0
    %1258 = vmatpush1.msra.mxu0 %v1144
    %1259 = vmatprep.subr.mxu0 0.0
    %1260 = vmatpush1.msra.mxu0 %v1143
    %1261 = vmatprep.subr.mxu0 0.0
    %1262 = vmatpush1.msra.mxu0 %v1142
    %1263 = vmatprep.subr.mxu0 0.0
    %1264 = vmatpush1.msra.mxu0 %v1141
    %1265 = vmatprep.subr.mxu0 0.0
    %1266 = vmatpush1.msra.mxu0 %v1140
    %1267 = vmatprep.subr.mxu0 0.0
    %1268 = vmatpush2.msra.mxu0 0.0
    %1269 = vmatprep.subr.mxu0 0.0
    %1270 = vmatpush2.msra.mxu0 0.0
    %1271 = vmatprep.subr.mxu0 0.0
    %1272 = vmatpush2.msra.mxu0 0.0
    %1273 = vmatprep.subr.mxu0 0.0
    %1274 = vmatpush2.msra.mxu0 0.0
    %1275 = vmatprep.subr.mxu0 0.0
    %1276 = vmatpush2.msra.mxu0 0.0
    %1277 = vmatprep.subr.mxu0 0.0
    %1278 = vmatpush2.msra.mxu0 0.0
    %1279 = vmatprep.subr.mxu0 0.0
    %1280 = vmatpush2.msra.mxu0 0.0
    %1281 = vmatprep.subr.mxu0 0.0
    %1282 = vmatpush2.msra.mxu0 0.0
    %1283 = vmatprep.subr.mxu0 0.0
    %1284 = vmatpush2.msra.mxu0 0.0
    %1285 = vmatprep.subr.mxu0 0.0
    %1286 = vmatpush2.msra.mxu0 0.0
    %1287 = vmatprep.subr.mxu0 0.0
    %1288 = vmatpush2.msra.mxu0 0.0
    %1289 = vmatprep.subr.mxu0 0.0
    %1290 = vmatpush2.msra.mxu0 0.0
    %1291 = vmatprep.subr.mxu0 0.0
    %1292 = vmatpush2.msra.mxu0 0.0
    %1293 = vmatprep.subr.mxu0 0.0
    %1294 = vmatpush2.msra.mxu0 0.0
    %1295 = vmatprep.subr.mxu0 0.0
    %1296 = vmatpush2.msra.mxu0 0.0
    %1297 = vmatprep.subr.mxu0 0.0
    %1298 = vmatpush2.msra.mxu0 0.0
    %1299 = vmatprep.mubr.f32.mxu0 0.0
    %1300 = vmatmul.mubr.f32.gmra.mxu0 %v1234
    %v1301 = vpop.f32.mrf.mxu0
    %v1302 = vadd.f32 0.0, %v1301
    %v1303 = vpop.f32.mrf.mxu0
    %1304 = vdwg.mxu0
    %v1305 = vadd.f32 %v1119, %v1302
    %v1307 = vlaneseq
    %v1308 = vshrl.u32 %v1307, 7
    %v1309 = vsub.s32 0, %v1308
    %v1310 = vrot.slane %v1157, %v1309
    %v1312 = vadd.f32 %v1305, %v1310
    %s1313 = scalar_lea.vmem [#allocation12], 1280
    %v1314 = vld [vmem:[%s1313] sm:$0xff]
    %v1315 = vld [vmem:[%s1313 + $0x8] sm:$0xff]
    %v1316 = vld [vmem:[%s1313 + $0x10] sm:$0xff]
    %v1317 = vld [vmem:[%s1313 + $0x18] sm:$0xff]
    %v1318 = vld [vmem:[%s1313 + $0x20] sm:$0xff]
    %v1319 = vld [vmem:[%s1313 + $0x28] sm:$0xff]
    %v1320 = vld [vmem:[%s1313 + $0x30] sm:$0xff]
    %v1321 = vld [vmem:[%s1313 + $0x38] sm:$0xff]
    %v1322 = vld [vmem:[%s1313 + $0x40] sm:$0xff]
    %v1323 = vld [vmem:[%s1313 + $0x48] sm:$0xff]
    %v1324 = vld [vmem:[%s1313 + $0x50] sm:$0xff]
    %v1325 = vld [vmem:[%s1313 + $0x58] sm:$0xff]
    %v1326 = vld [vmem:[%s1313 + $0x60] sm:$0xff]
    %v1327 = vld [vmem:[%s1313 + $0x68] sm:$0xff]
    %v1328 = vld [vmem:[%s1313 + $0x70] sm:$0xff]
    %v1329 = vld [vmem:[%s1313 + $0x78] sm:$0xff]
    %s1330 = scalar_lea.vmem %s7, 10
    %v1331 = vld [vmem:[%s1330] sm:$0x1]
    %s1332 = scalar_lea.vmem [#allocation12], 1408
    %v1333 = vld [vmem:[%s1332] sm:$0xff]
    %v1334 = vld [vmem:[%s1332 + $0x8] sm:$0xff]
    %v1335 = vld [vmem:[%s1332 + $0x10] sm:$0xff]
    %v1336 = vld [vmem:[%s1332 + $0x18] sm:$0xff]
    %v1337 = vld [vmem:[%s1332 + $0x20] sm:$0xff]
    %v1338 = vld [vmem:[%s1332 + $0x28] sm:$0xff]
    %v1339 = vld [vmem:[%s1332 + $0x30] sm:$0xff]
    %v1340 = vld [vmem:[%s1332 + $0x38] sm:$0xff]
    %v1341 = vld [vmem:[%s1332 + $0x40] sm:$0xff]
    %v1342 = vld [vmem:[%s1332 + $0x48] sm:$0xff]
    %v1343 = vld [vmem:[%s1332 + $0x50] sm:$0xff]
    %v1344 = vld [vmem:[%s1332 + $0x58] sm:$0xff]
    %v1345 = vld [vmem:[%s1332 + $0x60] sm:$0xff]
    %v1346 = vld [vmem:[%s1332 + $0x68] sm:$0xff]
    %v1347 = vld [vmem:[%s1332 + $0x70] sm:$0xff]
    %v1348 = vld [vmem:[%s1332 + $0x78] sm:$0xff]
    %s1349 = scalar_lea.vmem %s7, 11
    %v1350 = vld [vmem:[%s1349] sm:$0x1]
    %v1352 = vlaneseq
    %v1353 = vshrl.u32 %v1352, 7
    %v1354 = vsub.s32 0, %v1353
    %v1355 = vrot.slane %v1331, %v1354
    %1357 = vmatprep.subr.mxu0 0.0
    %1358 = vmatpush1.msra.mxu0 %v1329
    %1359 = vmatprep.subr.mxu0 0.0
    %1360 = vmatpush1.msra.mxu0 %v1328
    %1361 = vmatprep.subr.mxu0 0.0
    %1362 = vmatpush1.msra.mxu0 %v1327
    %1363 = vmatprep.subr.mxu0 0.0
    %1364 = vmatpush1.msra.mxu0 %v1326
    %1365 = vmatprep.subr.mxu0 0.0
    %1366 = vmatpush1.msra.mxu0 %v1325
    %1367 = vmatprep.subr.mxu0 0.0
    %1368 = vmatpush1.msra.mxu0 %v1324
    %1369 = vmatprep.subr.mxu0 0.0
    %1370 = vmatpush1.msra.mxu0 %v1323
    %1371 = vmatprep.subr.mxu0 0.0
    %1372 = vmatpush1.msra.mxu0 %v1322
    %1373 = vmatprep.subr.mxu0 0.0
    %1374 = vmatpush1.msra.mxu0 %v1321
    %1375 = vmatprep.subr.mxu0 0.0
    %1376 = vmatpush1.msra.mxu0 %v1320
    %1377 = vmatprep.subr.mxu0 0.0
    %1378 = vmatpush1.msra.mxu0 %v1319
    %1379 = vmatprep.subr.mxu0 0.0
    %1380 = vmatpush1.msra.mxu0 %v1318
    %1381 = vmatprep.subr.mxu0 0.0
    %1382 = vmatpush1.msra.mxu0 %v1317
    %1383 = vmatprep.subr.mxu0 0.0
    %1384 = vmatpush1.msra.mxu0 %v1316
    %1385 = vmatprep.subr.mxu0 0.0
    %1386 = vmatpush1.msra.mxu0 %v1315
    %1387 = vmatprep.subr.mxu0 0.0
    %1388 = vmatpush1.msra.mxu0 %v1314
    %1389 = vmatprep.subr.mxu0 0.0
    %1390 = vmatpush2.msra.mxu0 0.0
    %1391 = vmatprep.subr.mxu0 0.0
    %1392 = vmatpush2.msra.mxu0 0.0
    %1393 = vmatprep.subr.mxu0 0.0
    %1394 = vmatpush2.msra.mxu0 0.0
    %1395 = vmatprep.subr.mxu0 0.0
    %1396 = vmatpush2.msra.mxu0 0.0
    %1397 = vmatprep.subr.mxu0 0.0
    %1398 = vmatpush2.msra.mxu0 0.0
    %1399 = vmatprep.subr.mxu0 0.0
    %1400 = vmatpush2.msra.mxu0 0.0
    %1401 = vmatprep.subr.mxu0 0.0
    %1402 = vmatpush2.msra.mxu0 0.0
    %1403 = vmatprep.subr.mxu0 0.0
    %1404 = vmatpush2.msra.mxu0 0.0
    %1405 = vmatprep.subr.mxu0 0.0
    %1406 = vmatpush2.msra.mxu0 0.0
    %1407 = vmatprep.subr.mxu0 0.0
    %1408 = vmatpush2.msra.mxu0 0.0
    %1409 = vmatprep.subr.mxu0 0.0
    %1410 = vmatpush2.msra.mxu0 0.0
    %1411 = vmatprep.subr.mxu0 0.0
    %1412 = vmatpush2.msra.mxu0 0.0
    %1413 = vmatprep.subr.mxu0 0.0
    %1414 = vmatpush2.msra.mxu0 0.0
    %1415 = vmatprep.subr.mxu0 0.0
    %1416 = vmatpush2.msra.mxu0 0.0
    %1417 = vmatprep.subr.mxu0 0.0
    %1418 = vmatpush2.msra.mxu0 0.0
    %1419 = vmatprep.subr.mxu0 0.0
    %1420 = vmatpush2.msra.mxu0 0.0
    %1421 = vmatprep.mubr.f32.mxu0 0.0
    %1422 = vmatmul.mubr.f32.gmra.mxu0 %v1312
    %v1423 = vpop.f32.mrf.mxu0
    %v1424 = vadd.f32 %v1355, %v1423
    %v1425 = vpop.f32.mrf.mxu0
    %1426 = vdwg.mxu0
    %v1427 = vmax.f32 %v1424, 0.0
    %1428 = vmatprep.subr.mxu0 0.0
    %1429 = vmatpush1.msra.mxu0 %v1348
    %1430 = vmatprep.subr.mxu0 0.0
    %1431 = vmatpush1.msra.mxu0 %v1347
    %1432 = vmatprep.subr.mxu0 0.0
    %1433 = vmatpush1.msra.mxu0 %v1346
    %1434 = vmatprep.subr.mxu0 0.0
    %1435 = vmatpush1.msra.mxu0 %v1345
    %1436 = vmatprep.subr.mxu0 0.0
    %1437 = vmatpush1.msra.mxu0 %v1344
    %1438 = vmatprep.subr.mxu0 0.0
    %1439 = vmatpush1.msra.mxu0 %v1343
    %1440 = vmatprep.subr.mxu0 0.0
    %1441 = vmatpush1.msra.mxu0 %v1342
    %1442 = vmatprep.subr.mxu0 0.0
    %1443 = vmatpush1.msra.mxu0 %v1341
    %1444 = vmatprep.subr.mxu0 0.0
    %1445 = vmatpush1.msra.mxu0 %v1340
    %1446 = vmatprep.subr.mxu0 0.0
    %1447 = vmatpush1.msra.mxu0 %v1339
    %1448 = vmatprep.subr.mxu0 0.0
    %1449 = vmatpush1.msra.mxu0 %v1338
    %1450 = vmatprep.subr.mxu0 0.0
    %1451 = vmatpush1.msra.mxu0 %v1337
    %1452 = vmatprep.subr.mxu0 0.0
    %1453 = vmatpush1.msra.mxu0 %v1336
    %1454 = vmatprep.subr.mxu0 0.0
    %1455 = vmatpush1.msra.mxu0 %v1335
    %1456 = vmatprep.subr.mxu0 0.0
    %1457 = vmatpush1.msra.mxu0 %v1334
    %1458 = vmatprep.subr.mxu0 0.0
    %1459 = vmatpush1.msra.mxu0 %v1333
    %1460 = vmatprep.subr.mxu0 0.0
    %1461 = vmatpush2.msra.mxu0 0.0
    %1462 = vmatprep.subr.mxu0 0.0
    %1463 = vmatpush2.msra.mxu0 0.0
    %1464 = vmatprep.subr.mxu0 0.0
    %1465 = vmatpush2.msra.mxu0 0.0
    %1466 = vmatprep.subr.mxu0 0.0
    %1467 = vmatpush2.msra.mxu0 0.0
    %1468 = vmatprep.subr.mxu0 0.0
    %1469 = vmatpush2.msra.mxu0 0.0
    %1470 = vmatprep.subr.mxu0 0.0
    %1471 = vmatpush2.msra.mxu0 0.0
    %1472 = vmatprep.subr.mxu0 0.0
    %1473 = vmatpush2.msra.mxu0 0.0
    %1474 = vmatprep.subr.mxu0 0.0
    %1475 = vmatpush2.msra.mxu0 0.0
    %1476 = vmatprep.subr.mxu0 0.0
    %1477 = vmatpush2.msra.mxu0 0.0
    %1478 = vmatprep.subr.mxu0 0.0
    %1479 = vmatpush2.msra.mxu0 0.0
    %1480 = vmatprep.subr.mxu0 0.0
    %1481 = vmatpush2.msra.mxu0 0.0
    %1482 = vmatprep.subr.mxu0 0.0
    %1483 = vmatpush2.msra.mxu0 0.0
    %1484 = vmatprep.subr.mxu0 0.0
    %1485 = vmatpush2.msra.mxu0 0.0
    %1486 = vmatprep.subr.mxu0 0.0
    %1487 = vmatpush2.msra.mxu0 0.0
    %1488 = vmatprep.subr.mxu0 0.0
    %1489 = vmatpush2.msra.mxu0 0.0
    %1490 = vmatprep.subr.mxu0 0.0
    %1491 = vmatpush2.msra.mxu0 0.0
    %1492 = vmatprep.mubr.f32.mxu0 0.0
    %1493 = vmatmul.mubr.f32.gmra.mxu0 %v1427
    %v1494 = vpop.f32.mrf.mxu0
    %v1495 = vadd.f32 0.0, %v1494
    %v1496 = vpop.f32.mrf.mxu0
    %1497 = vdwg.mxu0
    %v1498 = vadd.f32 %v1312, %v1495
    %v1500 = vlaneseq
    %v1501 = vshrl.u32 %v1500, 7
    %v1502 = vsub.s32 0, %v1501
    %v1503 = vrot.slane %v1350, %v1502
    %v1505 = vadd.f32 %v1498, %v1503
    %s1506 = scalar_lea.vmem [#allocation12], 1536
    %v1507 = vld [vmem:[%s1506] sm:$0xff]
    %v1508 = vld [vmem:[%s1506 + $0x8] sm:$0xff]
    %v1509 = vld [vmem:[%s1506 + $0x10] sm:$0xff]
    %v1510 = vld [vmem:[%s1506 + $0x18] sm:$0xff]
    %v1511 = vld [vmem:[%s1506 + $0x20] sm:$0xff]
    %v1512 = vld [vmem:[%s1506 + $0x28] sm:$0xff]
    %v1513 = vld [vmem:[%s1506 + $0x30] sm:$0xff]
    %v1514 = vld [vmem:[%s1506 + $0x38] sm:$0xff]
    %v1515 = vld [vmem:[%s1506 + $0x40] sm:$0xff]
    %v1516 = vld [vmem:[%s1506 + $0x48] sm:$0xff]
    %v1517 = vld [vmem:[%s1506 + $0x50] sm:$0xff]
    %v1518 = vld [vmem:[%s1506 + $0x58] sm:$0xff]
    %v1519 = vld [vmem:[%s1506 + $0x60] sm:$0xff]
    %v1520 = vld [vmem:[%s1506 + $0x68] sm:$0xff]
    %v1521 = vld [vmem:[%s1506 + $0x70] sm:$0xff]
    %v1522 = vld [vmem:[%s1506 + $0x78] sm:$0xff]
    %s1523 = scalar_lea.vmem %s7, 12
    %v1524 = vld [vmem:[%s1523] sm:$0x1]
    %s1525 = scalar_lea.vmem [#allocation12], 1664
    %v1526 = vld [vmem:[%s1525] sm:$0xff]
    %v1527 = vld [vmem:[%s1525 + $0x8] sm:$0xff]
    %v1528 = vld [vmem:[%s1525 + $0x10] sm:$0xff]
    %v1529 = vld [vmem:[%s1525 + $0x18] sm:$0xff]
    %v1530 = vld [vmem:[%s1525 + $0x20] sm:$0xff]
    %v1531 = vld [vmem:[%s1525 + $0x28] sm:$0xff]
    %v1532 = vld [vmem:[%s1525 + $0x30] sm:$0xff]
    %v1533 = vld [vmem:[%s1525 + $0x38] sm:$0xff]
    %v1534 = vld [vmem:[%s1525 + $0x40] sm:$0xff]
    %v1535 = vld [vmem:[%s1525 + $0x48] sm:$0xff]
    %v1536 = vld [vmem:[%s1525 + $0x50] sm:$0xff]
    %v1537 = vld [vmem:[%s1525 + $0x58] sm:$0xff]
    %v1538 = vld [vmem:[%s1525 + $0x60] sm:$0xff]
    %v1539 = vld [vmem:[%s1525 + $0x68] sm:$0xff]
    %v1540 = vld [vmem:[%s1525 + $0x70] sm:$0xff]
    %v1541 = vld [vmem:[%s1525 + $0x78] sm:$0xff]
    %s1542 = scalar_lea.vmem %s7, 13
    %v1543 = vld [vmem:[%s1542] sm:$0x1]
    %v1545 = vlaneseq
    %v1546 = vshrl.u32 %v1545, 7
    %v1547 = vsub.s32 0, %v1546
    %v1548 = vrot.slane %v1524, %v1547
    %1550 = vmatprep.subr.mxu0 0.0
    %1551 = vmatpush1.msra.mxu0 %v1522
    %1552 = vmatprep.subr.mxu0 0.0
    %1553 = vmatpush1.msra.mxu0 %v1521
    %1554 = vmatprep.subr.mxu0 0.0
    %1555 = vmatpush1.msra.mxu0 %v1520
    %1556 = vmatprep.subr.mxu0 0.0
    %1557 = vmatpush1.msra.mxu0 %v1519
    %1558 = vmatprep.subr.mxu0 0.0
    %1559 = vmatpush1.msra.mxu0 %v1518
    %1560 = vmatprep.subr.mxu0 0.0
    %1561 = vmatpush1.msra.mxu0 %v1517
    %1562 = vmatprep.subr.mxu0 0.0
    %1563 = vmatpush1.msra.mxu0 %v1516
    %1564 = vmatprep.subr.mxu0 0.0
    %1565 = vmatpush1.msra.mxu0 %v1515
    %1566 = vmatprep.subr.mxu0 0.0
    %1567 = vmatpush1.msra.mxu0 %v1514
    %1568 = vmatprep.subr.mxu0 0.0
    %1569 = vmatpush1.msra.mxu0 %v1513
    %1570 = vmatprep.subr.mxu0 0.0
    %1571 = vmatpush1.msra.mxu0 %v1512
    %1572 = vmatprep.subr.mxu0 0.0
    %1573 = vmatpush1.msra.mxu0 %v1511
    %1574 = vmatprep.subr.mxu0 0.0
    %1575 = vmatpush1.msra.mxu0 %v1510
    %1576 = vmatprep.subr.mxu0 0.0
    %1577 = vmatpush1.msra.mxu0 %v1509
    %1578 = vmatprep.subr.mxu0 0.0
    %1579 = vmatpush1.msra.mxu0 %v1508
    %1580 = vmatprep.subr.mxu0 0.0
    %1581 = vmatpush1.msra.mxu0 %v1507
    %1582 = vmatprep.subr.mxu0 0.0
    %1583 = vmatpush2.msra.mxu0 0.0
    %1584 = vmatprep.subr.mxu0 0.0
    %1585 = vmatpush2.msra.mxu0 0.0
    %1586 = vmatprep.subr.mxu0 0.0
    %1587 = vmatpush2.msra.mxu0 0.0
    %1588 = vmatprep.subr.mxu0 0.0
    %1589 = vmatpush2.msra.mxu0 0.0
    %1590 = vmatprep.subr.mxu0 0.0
    %1591 = vmatpush2.msra.mxu0 0.0
    %1592 = vmatprep.subr.mxu0 0.0
    %1593 = vmatpush2.msra.mxu0 0.0
    %1594 = vmatprep.subr.mxu0 0.0
    %1595 = vmatpush2.msra.mxu0 0.0
    %1596 = vmatprep.subr.mxu0 0.0
    %1597 = vmatpush2.msra.mxu0 0.0
    %1598 = vmatprep.subr.mxu0 0.0
    %1599 = vmatpush2.msra.mxu0 0.0
    %1600 = vmatprep.subr.mxu0 0.0
    %1601 = vmatpush2.msra.mxu0 0.0
    %1602 = vmatprep.subr.mxu0 0.0
    %1603 = vmatpush2.msra.mxu0 0.0
    %1604 = vmatprep.subr.mxu0 0.0
    %1605 = vmatpush2.msra.mxu0 0.0
    %1606 = vmatprep.subr.mxu0 0.0
    %1607 = vmatpush2.msra.mxu0 0.0
    %1608 = vmatprep.subr.mxu0 0.0
    %1609 = vmatpush2.msra.mxu0 0.0
    %1610 = vmatprep.subr.mxu0 0.0
    %1611 = vmatpush2.msra.mxu0 0.0
    %1612 = vmatprep.subr.mxu0 0.0
    %1613 = vmatpush2.msra.mxu0 0.0
    %1614 = vmatprep.mubr.f32.mxu0 0.0
    %1615 = vmatmul.mubr.f32.gmra.mxu0 %v1505
    %v1616 = vpop.f32.mrf.mxu0
    %v1617 = vadd.f32 %v1548, %v1616
    %v1618 = vpop.f32.mrf.mxu0
    %1619 = vdwg.mxu0
    %v1620 = vmax.f32 %v1617, 0.0
    %1621 = vmatprep.subr.mxu0 0.0
    %1622 = vmatpush1.msra.mxu0 %v1541
    %1623 = vmatprep.subr.mxu0 0.0
    %1624 = vmatpush1.msra.mxu0 %v1540
    %1625 = vmatprep.subr.mxu0 0.0
    %1626 = vmatpush1.msra.mxu0 %v1539
    %1627 = vmatprep.subr.mxu0 0.0
    %1628 = vmatpush1.msra.mxu0 %v1538
    %1629 = vmatprep.subr.mxu0 0.0
    %1630 = vmatpush1.msra.mxu0 %v1537
    %1631 = vmatprep.subr.mxu0 0.0
    %1632 = vmatpush1.msra.mxu0 %v1536
    %1633 = vmatprep.subr.mxu0 0.0
    %1634 = vmatpush1.msra.mxu0 %v1535
    %1635 = vmatprep.subr.mxu0 0.0
    %1636 = vmatpush1.msra.mxu0 %v1534
    %1637 = vmatprep.subr.mxu0 0.0
    %1638 = vmatpush1.msra.mxu0 %v1533
    %1639 = vmatprep.subr.mxu0 0.0
    %1640 = vmatpush1.msra.mxu0 %v1532
    %1641 = vmatprep.subr.mxu0 0.0
    %1642 = vmatpush1.msra.mxu0 %v1531
    %1643 = vmatprep.subr.mxu0 0.0
    %1644 = vmatpush1.msra.mxu0 %v1530
    %1645 = vmatprep.subr.mxu0 0.0
    %1646 = vmatpush1.msra.mxu0 %v1529
    %1647 = vmatprep.subr.mxu0 0.0
    %1648 = vmatpush1.msra.mxu0 %v1528
    %1649 = vmatprep.subr.mxu0 0.0
    %1650 = vmatpush1.msra.mxu0 %v1527
    %1651 = vmatprep.subr.mxu0 0.0
    %1652 = vmatpush1.msra.mxu0 %v1526
    %1653 = vmatprep.subr.mxu0 0.0
    %1654 = vmatpush2.msra.mxu0 0.0
    %1655 = vmatprep.subr.mxu0 0.0
    %1656 = vmatpush2.msra.mxu0 0.0
    %1657 = vmatprep.subr.mxu0 0.0
    %1658 = vmatpush2.msra.mxu0 0.0
    %1659 = vmatprep.subr.mxu0 0.0
    %1660 = vmatpush2.msra.mxu0 0.0
    %1661 = vmatprep.subr.mxu0 0.0
    %1662 = vmatpush2.msra.mxu0 0.0
    %1663 = vmatprep.subr.mxu0 0.0
    %1664 = vmatpush2.msra.mxu0 0.0
    %1665 = vmatprep.subr.mxu0 0.0
    %1666 = vmatpush2.msra.mxu0 0.0
    %1667 = vmatprep.subr.mxu0 0.0
    %1668 = vmatpush2.msra.mxu0 0.0
    %1669 = vmatprep.subr.mxu0 0.0
    %1670 = vmatpush2.msra.mxu0 0.0
    %1671 = vmatprep.subr.mxu0 0.0
    %1672 = vmatpush2.msra.mxu0 0.0
    %1673 = vmatprep.subr.mxu0 0.0
    %1674 = vmatpush2.msra.mxu0 0.0
    %1675 = vmatprep.subr.mxu0 0.0
    %1676 = vmatpush2.msra.mxu0 0.0
    %1677 = vmatprep.subr.mxu0 0.0
    %1678 = vmatpush2.msra.mxu0 0.0
    %1679 = vmatprep.subr.mxu0 0.0
    %1680 = vmatpush2.msra.mxu0 0.0
    %1681 = vmatprep.subr.mxu0 0.0
    %1682 = vmatpush2.msra.mxu0 0.0
    %1683 = vmatprep.subr.mxu0 0.0
    %1684 = vmatpush2.msra.mxu0 0.0
    %1685 = vmatprep.mubr.f32.mxu0 0.0
    %1686 = vmatmul.mubr.f32.gmra.mxu0 %v1620
    %v1687 = vpop.f32.mrf.mxu0
    %v1688 = vadd.f32 0.0, %v1687
    %v1689 = vpop.f32.mrf.mxu0
    %1690 = vdwg.mxu0
    %v1691 = vadd.f32 %v1505, %v1688
    %v1693 = vlaneseq
    %v1694 = vshrl.u32 %v1693, 7
    %v1695 = vsub.s32 0, %v1694
    %v1696 = vrot.slane %v1543, %v1695
    %v1698 = vadd.f32 %v1691, %v1696
    %v1699 = vmax.f32 %v1698, 0.0
    %v1700 = vld [vmem:[#allocation13] sm:$0xff]
    %v1701 = vld [vmem:[#allocation13 + $0x8] sm:$0xff]
    %v1702 = vld [vmem:[#allocation13 + $0x10] sm:$0xff]
    %v1703 = vld [vmem:[#allocation13 + $0x18] sm:$0xff]
    %v1704 = vld [vmem:[#allocation13 + $0x20] sm:$0xff]
    %v1705 = vld [vmem:[#allocation13 + $0x28] sm:$0xff]
    %v1706 = vld [vmem:[#allocation13 + $0x30] sm:$0xff]
    %v1707 = vld [vmem:[#allocation13 + $0x38] sm:$0xff]
    %v1708 = vld [vmem:[#allocation13 + $0x40] sm:$0xff]
    %v1709 = vld [vmem:[#allocation13 + $0x48] sm:$0xff]
    %v1710 = vld [vmem:[#allocation13 + $0x50] sm:$0xff]
    %v1711 = vld [vmem:[#allocation13 + $0x58] sm:$0xff]
    %v1712 = vld [vmem:[#allocation13 + $0x60] sm:$0xff]
    %v1713 = vld [vmem:[#allocation13 + $0x68] sm:$0xff]
    %v1714 = vld [vmem:[#allocation13 + $0x70] sm:$0xff]
    %v1715 = vld [vmem:[#allocation13 + $0x78] sm:$0xff]
    %v1716 = vld [vmem:[#allocation13 + $0x80] sm:$0xff]
    %v1717 = vld [vmem:[#allocation13 + $0x88] sm:$0xff]
    %v1718 = vld [vmem:[#allocation13 + $0x90] sm:$0xff]
    %v1719 = vld [vmem:[#allocation13 + $0x98] sm:$0xff]
    %v1720 = vld [vmem:[#allocation13 + $0xa0] sm:$0xff]
    %v1721 = vld [vmem:[#allocation13 + $0xa8] sm:$0xff]
    %v1722 = vld [vmem:[#allocation13 + $0xb0] sm:$0xff]
    %v1723 = vld [vmem:[#allocation13 + $0xb8] sm:$0xff]
    %v1724 = vld [vmem:[#allocation13 + $0xc0] sm:$0xff]
    %v1725 = vld [vmem:[#allocation13 + $0xc8] sm:$0xff]
    %v1726 = vld [vmem:[#allocation13 + $0xd0] sm:$0xff]
    %v1727 = vld [vmem:[#allocation13 + $0xd8] sm:$0xff]
    %v1728 = vld [vmem:[#allocation13 + $0xe0] sm:$0xff]
    %v1729 = vld [vmem:[#allocation13 + $0xe8] sm:$0xff]
    %v1730 = vld [vmem:[#allocation13 + $0xf0] sm:$0xff]
    %v1731 = vld [vmem:[#allocation13 + $0xf8] sm:$0xff]
    %v1732 = vld [vmem:[%s9] sm:$0x3]
    %v1734 = vlaneseq
    %v1735 = vshrl.u32 %v1734, 7
    %v1736 = vsub.s32 0, %v1735
    %v1737 = vrot.slane %v1732, %v1736
    %v1738 = vlaneseq
    %v1739 = vshrl.u32 %v1738, 7
    %v1740 = vsub.s32 1, %v1739
    %v1741 = vrot.slane %v1732, %v1740
    %1744 = vmatprep.subr.mxu0 %v1731
    %1745 = vmatpush1.msra.mxu0 %v1730
    %1746 = vmatprep.subr.mxu0 %v1729
    %1747 = vmatpush1.msra.mxu0 %v1728
    %1748 = vmatprep.subr.mxu0 %v1727
    %1749 = vmatpush1.msra.mxu0 %v1726
    %1750 = vmatprep.subr.mxu0 %v1725
    %1751 = vmatpush1.msra.mxu0 %v1724
    %1752 = vmatprep.subr.mxu0 %v1723
    %1753 = vmatpush1.msra.mxu0 %v1722
    %1754 = vmatprep.subr.mxu0 %v1721
    %1755 = vmatpush1.msra.mxu0 %v1720
    %1756 = vmatprep.subr.mxu0 %v1719
    %1757 = vmatpush1.msra.mxu0 %v1718
    %1758 = vmatprep.subr.mxu0 %v1717
    %1759 = vmatpush1.msra.mxu0 %v1716
    %1760 = vmatprep.subr.mxu0 %v1715
    %1761 = vmatpush1.msra.mxu0 %v1714
    %1762 = vmatprep.subr.mxu0 %v1713
    %1763 = vmatpush1.msra.mxu0 %v1712
    %1764 = vmatprep.subr.mxu0 %v1711
    %1765 = vmatpush1.msra.mxu0 %v1710
    %1766 = vmatprep.subr.mxu0 %v1709
    %1767 = vmatpush1.msra.mxu0 %v1708
    %1768 = vmatprep.subr.mxu0 %v1707
    %1769 = vmatpush1.msra.mxu0 %v1706
    %1770 = vmatprep.subr.mxu0 %v1705
    %1771 = vmatpush1.msra.mxu0 %v1704
    %1772 = vmatprep.subr.mxu0 %v1703
    %1773 = vmatpush1.msra.mxu0 %v1702
    %1774 = vmatprep.subr.mxu0 %v1701
    %1775 = vmatpush1.msra.mxu0 %v1700
    %1776 = vmatprep.subr.mxu0 0.0
    %1777 = vmatpush2.msra.mxu0 0.0
    %1778 = vmatprep.subr.mxu0 0.0
    %1779 = vmatpush2.msra.mxu0 0.0
    %1780 = vmatprep.subr.mxu0 0.0
    %1781 = vmatpush2.msra.mxu0 0.0
    %1782 = vmatprep.subr.mxu0 0.0
    %1783 = vmatpush2.msra.mxu0 0.0
    %1784 = vmatprep.subr.mxu0 0.0
    %1785 = vmatpush2.msra.mxu0 0.0
    %1786 = vmatprep.subr.mxu0 0.0
    %1787 = vmatpush2.msra.mxu0 0.0
    %1788 = vmatprep.subr.mxu0 0.0
    %1789 = vmatpush2.msra.mxu0 0.0
    %1790 = vmatprep.subr.mxu0 0.0
    %1791 = vmatpush2.msra.mxu0 0.0
    %1792 = vmatprep.subr.mxu0 0.0
    %1793 = vmatpush2.msra.mxu0 0.0
    %1794 = vmatprep.subr.mxu0 0.0
    %1795 = vmatpush2.msra.mxu0 0.0
    %1796 = vmatprep.subr.mxu0 0.0
    %1797 = vmatpush2.msra.mxu0 0.0
    %1798 = vmatprep.subr.mxu0 0.0
    %1799 = vmatpush2.msra.mxu0 0.0
    %1800 = vmatprep.subr.mxu0 0.0
    %1801 = vmatpush2.msra.mxu0 0.0
    %1802 = vmatprep.subr.mxu0 0.0
    %1803 = vmatpush2.msra.mxu0 0.0
    %1804 = vmatprep.subr.mxu0 0.0
    %1805 = vmatpush2.msra.mxu0 0.0
    %1806 = vmatprep.subr.mxu0 0.0
    %1807 = vmatpush2.msra.mxu0 0.0
    %1808 = vmatprep.mubr.f32.mxu0 0.0
    %1809 = vmatmul.mubr.f32.gmra.mxu0 %v1699
    %v1810 = vpop.f32.mrf.mxu0
    %v1811 = vadd.f32 %v1737, %v1810
    %v1812 = vpop.f32.mrf.mxu0
    %v1813 = vadd.f32 %v1741, %v1812
    %1814 = vdwg.mxu0
    %v1815 = vld [vmem:[#allocation15] sm:$0xff]
    %v1816 = vld [vmem:[#allocation15 + $0x8] sm:$0xff]
    %v1817 = vld [vmem:[#allocation15 + $0x10] sm:$0xff]
    %v1818 = vld [vmem:[#allocation15 + $0x18] sm:$0xff]
    %v1819 = vld [vmem:[#allocation15 + $0x20] sm:$0xff]
    %v1820 = vld [vmem:[#allocation15 + $0x28] sm:$0xff]
    %v1821 = vld [vmem:[#allocation15 + $0x30] sm:$0xff]
    %v1822 = vld [vmem:[#allocation15 + $0x38] sm:$0xff]
    %v1823 = vld [vmem:[#allocation15 + $0x40] sm:$0xff]
    %v1824 = vld [vmem:[#allocation15 + $0x48] sm:$0xff]
    %v1825 = vld [vmem:[#allocation15 + $0x50] sm:$0xff]
    %v1826 = vld [vmem:[#allocation15 + $0x58] sm:$0xff]
    %v1827 = vld [vmem:[#allocation15 + $0x60] sm:$0xff]
    %v1828 = vld [vmem:[#allocation15 + $0x68] sm:$0xff]
    %v1829 = vld [vmem:[#allocation15 + $0x70] sm:$0xff]
    %v1830 = vld [vmem:[#allocation15 + $0x78] sm:$0xff]
    %v1831 = vld [vmem:[#allocation15 + $0x80] sm:$0xff]
    %v1832 = vld [vmem:[#allocation15 + $0x88] sm:$0xff]
    %v1833 = vld [vmem:[#allocation15 + $0x90] sm:$0xff]
    %v1834 = vld [vmem:[#allocation15 + $0x98] sm:$0xff]
    %v1835 = vld [vmem:[#allocation15 + $0xa0] sm:$0xff]
    %v1836 = vld [vmem:[#allocation15 + $0xa8] sm:$0xff]
    %v1837 = vld [vmem:[#allocation15 + $0xb0] sm:$0xff]
    %v1838 = vld [vmem:[#allocation15 + $0xb8] sm:$0xff]
    %v1839 = vld [vmem:[#allocation15 + $0xc0] sm:$0xff]
    %v1840 = vld [vmem:[#allocation15 + $0xc8] sm:$0xff]
    %v1841 = vld [vmem:[#allocation15 + $0xd0] sm:$0xff]
    %v1842 = vld [vmem:[#allocation15 + $0xd8] sm:$0xff]
    %v1843 = vld [vmem:[#allocation15 + $0xe0] sm:$0xff]
    %v1844 = vld [vmem:[#allocation15 + $0xe8] sm:$0xff]
    %v1845 = vld [vmem:[#allocation15 + $0xf0] sm:$0xff]
    %v1846 = vld [vmem:[#allocation15 + $0xf8] sm:$0xff]
    %v1847 = vld [vmem:[%s11] sm:$0x3]
    %v1849 = vlaneseq
    %v1850 = vshrl.u32 %v1849, 7
    %v1851 = vsub.s32 0, %v1850
    %v1852 = vrot.slane %v1847, %v1851
    %v1853 = vlaneseq
    %v1854 = vshrl.u32 %v1853, 7
    %v1855 = vsub.s32 1, %v1854
    %v1856 = vrot.slane %v1847, %v1855
    %1859 = vmatprep.subr.mxu0 %v1846
    %1860 = vmatpush1.msra.mxu0 %v1845
    %1861 = vmatprep.subr.mxu0 %v1844
    %1862 = vmatpush1.msra.mxu0 %v1843
    %1863 = vmatprep.subr.mxu0 %v1842
    %1864 = vmatpush1.msra.mxu0 %v1841
    %1865 = vmatprep.subr.mxu0 %v1840
    %1866 = vmatpush1.msra.mxu0 %v1839
    %1867 = vmatprep.subr.mxu0 %v1838
    %1868 = vmatpush1.msra.mxu0 %v1837
    %1869 = vmatprep.subr.mxu0 %v1836
    %1870 = vmatpush1.msra.mxu0 %v1835
    %1871 = vmatprep.subr.mxu0 %v1834
    %1872 = vmatpush1.msra.mxu0 %v1833
    %1873 = vmatprep.subr.mxu0 %v1832
    %1874 = vmatpush1.msra.mxu0 %v1831
    %1875 = vmatprep.subr.mxu0 %v1830
    %1876 = vmatpush1.msra.mxu0 %v1829
    %1877 = vmatprep.subr.mxu0 %v1828
    %1878 = vmatpush1.msra.mxu0 %v1827
    %1879 = vmatprep.subr.mxu0 %v1826
    %1880 = vmatpush1.msra.mxu0 %v1825
    %1881 = vmatprep.subr.mxu0 %v1824
    %1882 = vmatpush1.msra.mxu0 %v1823
    %1883 = vmatprep.subr.mxu0 %v1822
    %1884 = vmatpush1.msra.mxu0 %v1821
    %1885 = vmatprep.subr.mxu0 %v1820
    %1886 = vmatpush1.msra.mxu0 %v1819
    %1887 = vmatprep.subr.mxu0 %v1818
    %1888 = vmatpush1.msra.mxu0 %v1817
    %1889 = vmatprep.subr.mxu0 %v1816
    %1890 = vmatpush1.msra.mxu0 %v1815
    %1891 = vmatprep.subr.mxu0 0.0
    %1892 = vmatpush2.msra.mxu0 0.0
    %1893 = vmatprep.subr.mxu0 0.0
    %1894 = vmatpush2.msra.mxu0 0.0
    %1895 = vmatprep.subr.mxu0 0.0
    %1896 = vmatpush2.msra.mxu0 0.0
    %1897 = vmatprep.subr.mxu0 0.0
    %1898 = vmatpush2.msra.mxu0 0.0
    %1899 = vmatprep.subr.mxu0 0.0
    %1900 = vmatpush2.msra.mxu0 0.0
    %1901 = vmatprep.subr.mxu0 0.0
    %1902 = vmatpush2.msra.mxu0 0.0
    %1903 = vmatprep.subr.mxu0 0.0
    %1904 = vmatpush2.msra.mxu0 0.0
    %1905 = vmatprep.subr.mxu0 0.0
    %1906 = vmatpush2.msra.mxu0 0.0
    %1907 = vmatprep.subr.mxu0 0.0
    %1908 = vmatpush2.msra.mxu0 0.0
    %1909 = vmatprep.subr.mxu0 0.0
    %1910 = vmatpush2.msra.mxu0 0.0
    %1911 = vmatprep.subr.mxu0 0.0
    %1912 = vmatpush2.msra.mxu0 0.0
    %1913 = vmatprep.subr.mxu0 0.0
    %1914 = vmatpush2.msra.mxu0 0.0
    %1915 = vmatprep.subr.mxu0 0.0
    %1916 = vmatpush2.msra.mxu0 0.0
    %1917 = vmatprep.subr.mxu0 0.0
    %1918 = vmatpush2.msra.mxu0 0.0
    %1919 = vmatprep.subr.mxu0 0.0
    %1920 = vmatpush2.msra.mxu0 0.0
    %1921 = vmatprep.subr.mxu0 0.0
    %1922 = vmatpush2.msra.mxu0 0.0
    %1923 = vmatprep.mubr.f32.mxu0 0.0
    %1924 = vmatmul.mubr.f32.gmra.mxu0 %v1699
    %v1925 = vpop.f32.mrf.mxu0
    %v1926 = vadd.f32 %v1852, %v1925
    %v1927 = vpop.f32.mrf.mxu0
    %v1928 = vadd.f32 %v1856, %v1927
    %1929 = vdwg.mxu0
    %v1930 = vld [vmem:[#allocation16] sm:$0xff]
    %v1931 = vld [vmem:[#allocation16 + $0x8] sm:$0xff]
    %v1932 = vld [vmem:[#allocation16 + $0x10] sm:$0xff]
    %v1933 = vld [vmem:[#allocation16 + $0x18] sm:$0xff]
    %v1934 = vld [vmem:[#allocation16 + $0x20] sm:$0xff]
    %v1935 = vld [vmem:[#allocation16 + $0x28] sm:$0xff]
    %v1936 = vld [vmem:[#allocation16 + $0x30] sm:$0xff]
    %v1937 = vld [vmem:[#allocation16 + $0x38] sm:$0xff]
    %v1938 = vld [vmem:[#allocation16 + $0x40] sm:$0xff]
    %v1939 = vld [vmem:[#allocation16 + $0x48] sm:$0xff]
    %v1940 = vld [vmem:[#allocation16 + $0x50] sm:$0xff]
    %v1941 = vld [vmem:[#allocation16 + $0x58] sm:$0xff]
    %v1942 = vld [vmem:[#allocation16 + $0x60] sm:$0xff]
    %v1943 = vld [vmem:[#allocation16 + $0x68] sm:$0xff]
    %v1944 = vld [vmem:[#allocation16 + $0x70] sm:$0xff]
    %v1945 = vld [vmem:[#allocation16 + $0x78] sm:$0xff]
    %v1946 = vld [vmem:[#allocation16 + $0x80] sm:$0xff]
    %v1947 = vld [vmem:[#allocation16 + $0x88] sm:$0xff]
    %v1948 = vld [vmem:[#allocation16 + $0x90] sm:$0xff]
    %v1949 = vld [vmem:[#allocation16 + $0x98] sm:$0xff]
    %v1950 = vld [vmem:[#allocation16 + $0xa0] sm:$0xff]
    %v1951 = vld [vmem:[#allocation16 + $0xa8] sm:$0xff]
    %v1952 = vld [vmem:[#allocation16 + $0xb0] sm:$0xff]
    %v1953 = vld [vmem:[#allocation16 + $0xb8] sm:$0xff]
    %v1954 = vld [vmem:[#allocation16 + $0xc0] sm:$0xff]
    %v1955 = vld [vmem:[#allocation16 + $0xc8] sm:$0xff]
    %v1956 = vld [vmem:[#allocation16 + $0xd0] sm:$0xff]
    %v1957 = vld [vmem:[#allocation16 + $0xd8] sm:$0xff]
    %v1958 = vld [vmem:[#allocation16 + $0xe0] sm:$0xff]
    %v1959 = vld [vmem:[#allocation16 + $0xe8] sm:$0xff]
    %v1960 = vld [vmem:[#allocation16 + $0xf0] sm:$0xff]
    %v1961 = vld [vmem:[#allocation16 + $0xf8] sm:$0xff]
    %v1962 = vld [vmem:[%s13] sm:$0x3]
    %v1964 = vlaneseq
    %v1965 = vshrl.u32 %v1964, 7
    %v1966 = vsub.s32 0, %v1965
    %v1967 = vrot.slane %v1962, %v1966
    %v1968 = vlaneseq
    %v1969 = vshrl.u32 %v1968, 7
    %v1970 = vsub.s32 1, %v1969
    %v1971 = vrot.slane %v1962, %v1970
    %1974 = vmatprep.subr.mxu0 %v1961
    %1975 = vmatpush1.msra.mxu0 %v1960
    %1976 = vmatprep.subr.mxu0 %v1959
    %1977 = vmatpush1.msra.mxu0 %v1958
    %1978 = vmatprep.subr.mxu0 %v1957
    %1979 = vmatpush1.msra.mxu0 %v1956
    %1980 = vmatprep.subr.mxu0 %v1955
    %1981 = vmatpush1.msra.mxu0 %v1954
    %1982 = vmatprep.subr.mxu0 %v1953
    %1983 = vmatpush1.msra.mxu0 %v1952
    %1984 = vmatprep.subr.mxu0 %v1951
    %1985 = vmatpush1.msra.mxu0 %v1950
    %1986 = vmatprep.subr.mxu0 %v1949
    %1987 = vmatpush1.msra.mxu0 %v1948
    %1988 = vmatprep.subr.mxu0 %v1947
    %1989 = vmatpush1.msra.mxu0 %v1946
    %1990 = vmatprep.subr.mxu0 %v1945
    %1991 = vmatpush1.msra.mxu0 %v1944
    %1992 = vmatprep.subr.mxu0 %v1943
    %1993 = vmatpush1.msra.mxu0 %v1942
    %1994 = vmatprep.subr.mxu0 %v1941
    %1995 = vmatpush1.msra.mxu0 %v1940
    %1996 = vmatprep.subr.mxu0 %v1939
    %1997 = vmatpush1.msra.mxu0 %v1938
    %1998 = vmatprep.subr.mxu0 %v1937
    %1999 = vmatpush1.msra.mxu0 %v1936
    %2000 = vmatprep.subr.mxu0 %v1935
    %2001 = vmatpush1.msra.mxu0 %v1934
    %2002 = vmatprep.subr.mxu0 %v1933
    %2003 = vmatpush1.msra.mxu0 %v1932
    %2004 = vmatprep.subr.mxu0 %v1931
    %2005 = vmatpush1.msra.mxu0 %v1930
    %2006 = vmatprep.subr.mxu0 0.0
    %2007 = vmatpush2.msra.mxu0 0.0
    %2008 = vmatprep.subr.mxu0 0.0
    %2009 = vmatpush2.msra.mxu0 0.0
    %2010 = vmatprep.subr.mxu0 0.0
    %2011 = vmatpush2.msra.mxu0 0.0
    %2012 = vmatprep.subr.mxu0 0.0
    %2013 = vmatpush2.msra.mxu0 0.0
    %2014 = vmatprep.subr.mxu0 0.0
    %2015 = vmatpush2.msra.mxu0 0.0
    %2016 = vmatprep.subr.mxu0 0.0
    %2017 = vmatpush2.msra.mxu0 0.0
    %2018 = vmatprep.subr.mxu0 0.0
    %2019 = vmatpush2.msra.mxu0 0.0
    %2020 = vmatprep.subr.mxu0 0.0
    %2021 = vmatpush2.msra.mxu0 0.0
    %2022 = vmatprep.subr.mxu0 0.0
    %2023 = vmatpush2.msra.mxu0 0.0
    %2024 = vmatprep.subr.mxu0 0.0
    %2025 = vmatpush2.msra.mxu0 0.0
    %2026 = vmatprep.subr.mxu0 0.0
    %2027 = vmatpush2.msra.mxu0 0.0
    %2028 = vmatprep.subr.mxu0 0.0
    %2029 = vmatpush2.msra.mxu0 0.0
    %2030 = vmatprep.subr.mxu0 0.0
    %2031 = vmatpush2.msra.mxu0 0.0
    %2032 = vmatprep.subr.mxu0 0.0
    %2033 = vmatpush2.msra.mxu0 0.0
    %2034 = vmatprep.subr.mxu0 0.0
    %2035 = vmatpush2.msra.mxu0 0.0
    %2036 = vmatprep.subr.mxu0 0.0
    %2037 = vmatpush2.msra.mxu0 0.0
    %2038 = vmatprep.mubr.f32.mxu0 0.0
    %2039 = vmatmul.mubr.f32.gmra.mxu0 %v1699
    %v2040 = vpop.f32.mrf.mxu0
    %v2041 = vadd.f32 %v1967, %v2040
    %v2042 = vpop.f32.mrf.mxu0
    %v2043 = vadd.f32 %v1971, %v2042
    %2044 = vdwg.mxu0
    %v2045 = vxor.u32 %v2041, 2147483648
    %v2046 = vxor.u32 %v2043, 2147483648
    %v2047 = vmul.f32 %v2045, 1.442695
    %v2048 = vpow.pop %v2047
    %v2049 = vmul.f32 %v2046, 1.442695
    %v2050 = vpow.pop %v2049
    %v2051 = vadd.f32 %v2048, 1.0
    %v2052 = vadd.f32 %v2050, 1.0
    %v2053 = vrcp.pop %v2051
    %v2054 = vmul.f32 1.0, %v2053
    %v2055 = vrcp.pop %v2052
    %v2056 = vmul.f32 1.0, %v2055
    %v2057 = vld [vmem:[#allocation18] sm:$0xff]
    %v2058 = vld [vmem:[#allocation18 + $0x8] sm:$0xff]
    %v2059 = vld [vmem:[#allocation18 + $0x10] sm:$0xff]
    %v2060 = vld [vmem:[#allocation18 + $0x18] sm:$0xff]
    %v2061 = vld [vmem:[#allocation18 + $0x20] sm:$0xff]
    %v2062 = vld [vmem:[#allocation18 + $0x28] sm:$0xff]
    %v2063 = vld [vmem:[#allocation18 + $0x30] sm:$0xff]
    %v2064 = vld [vmem:[#allocation18 + $0x38] sm:$0xff]
    %v2065 = vld [vmem:[#allocation18 + $0x40] sm:$0xff]
    %v2066 = vld [vmem:[#allocation18 + $0x48] sm:$0xff]
    %v2067 = vld [vmem:[#allocation18 + $0x50] sm:$0xff]
    %v2068 = vld [vmem:[#allocation18 + $0x58] sm:$0xff]
    %v2069 = vld [vmem:[#allocation18 + $0x60] sm:$0xff]
    %v2070 = vld [vmem:[#allocation18 + $0x68] sm:$0xff]
    %v2071 = vld [vmem:[#allocation18 + $0x70] sm:$0xff]
    %v2072 = vld [vmem:[#allocation18 + $0x78] sm:$0xff]
    %v2073 = vld [vmem:[#allocation18 + $0x80] sm:$0xff]
    %v2074 = vld [vmem:[#allocation18 + $0x88] sm:$0xff]
    %v2075 = vld [vmem:[#allocation18 + $0x90] sm:$0xff]
    %v2076 = vld [vmem:[#allocation18 + $0x98] sm:$0xff]
    %v2077 = vld [vmem:[#allocation18 + $0xa0] sm:$0xff]
    %v2078 = vld [vmem:[#allocation18 + $0xa8] sm:$0xff]
    %v2079 = vld [vmem:[#allocation18 + $0xb0] sm:$0xff]
    %v2080 = vld [vmem:[#allocation18 + $0xb8] sm:$0xff]
    %v2081 = vld [vmem:[#allocation18 + $0xc0] sm:$0xff]
    %v2082 = vld [vmem:[#allocation18 + $0xc8] sm:$0xff]
    %v2083 = vld [vmem:[#allocation18 + $0xd0] sm:$0xff]
    %v2084 = vld [vmem:[#allocation18 + $0xd8] sm:$0xff]
    %v2085 = vld [vmem:[#allocation18 + $0xe0] sm:$0xff]
    %v2086 = vld [vmem:[#allocation18 + $0xe8] sm:$0xff]
    %v2087 = vld [vmem:[#allocation18 + $0xf0] sm:$0xff]
    %v2088 = vld [vmem:[#allocation18 + $0xf8] sm:$0xff]
    %v2089 = vld [vmem:[#allocation18 + $0x100] sm:$0xff]
    %v2090 = vld [vmem:[#allocation18 + $0x108] sm:$0xff]
    %v2091 = vld [vmem:[#allocation18 + $0x110] sm:$0xff]
    %v2092 = vld [vmem:[#allocation18 + $0x118] sm:$0xff]
    %v2093 = vld [vmem:[#allocation18 + $0x120] sm:$0xff]
    %v2094 = vld [vmem:[#allocation18 + $0x128] sm:$0xff]
    %v2095 = vld [vmem:[#allocation18 + $0x130] sm:$0xff]
    %v2096 = vld [vmem:[#allocation18 + $0x138] sm:$0xff]
    %v2097 = vld [vmem:[#allocation18 + $0x140] sm:$0xff]
    %v2098 = vld [vmem:[#allocation18 + $0x148] sm:$0xff]
    %v2099 = vld [vmem:[#allocation18 + $0x150] sm:$0xff]
    %v2100 = vld [vmem:[#allocation18 + $0x158] sm:$0xff]
    %v2101 = vld [vmem:[#allocation18 + $0x160] sm:$0xff]
    %v2102 = vld [vmem:[#allocation18 + $0x168] sm:$0xff]
    %v2103 = vld [vmem:[#allocation18 + $0x170] sm:$0xff]
    %v2104 = vld [vmem:[#allocation18 + $0x178] sm:$0xff]
    %v2105 = vld [vmem:[#allocation18 + $0x180] sm:$0xff]
    %v2106 = vld [vmem:[#allocation18 + $0x188] sm:$0xff]
    %v2107 = vld [vmem:[#allocation18 + $0x190] sm:$0xff]
    %v2108 = vld [vmem:[#allocation18 + $0x198] sm:$0xff]
    %v2109 = vld [vmem:[#allocation18 + $0x1a0] sm:$0xff]
    %v2110 = vld [vmem:[#allocation18 + $0x1a8] sm:$0xff]
    %v2111 = vld [vmem:[#allocation18 + $0x1b0] sm:$0xff]
    %v2112 = vld [vmem:[#allocation18 + $0x1b8] sm:$0xff]
    %v2113 = vld [vmem:[#allocation18 + $0x1c0] sm:$0xff]
    %v2114 = vld [vmem:[#allocation18 + $0x1c8] sm:$0xff]
    %v2115 = vld [vmem:[#allocation18 + $0x1d0] sm:$0xff]
    %v2116 = vld [vmem:[#allocation18 + $0x1d8] sm:$0xff]
    %v2117 = vld [vmem:[#allocation18 + $0x1e0] sm:$0xff]
    %v2118 = vld [vmem:[#allocation18 + $0x1e8] sm:$0xff]
    %v2119 = vld [vmem:[#allocation18 + $0x1f0] sm:$0xff]
    %v2120 = vld [vmem:[#allocation18 + $0x1f8] sm:$0xff]
    %2121 = vmatprep.subr.mxu0 %v2088
    %2122 = vmatpush1.msra.mxu0 %v2087
    %2123 = vmatprep.subr.mxu0 %v2086
    %2124 = vmatpush1.msra.mxu0 %v2085
    %2125 = vmatprep.subr.mxu0 %v2084
    %2126 = vmatpush1.msra.mxu0 %v2083
    %2127 = vmatprep.subr.mxu0 %v2082
    %2128 = vmatpush1.msra.mxu0 %v2081
    %2129 = vmatprep.subr.mxu0 %v2080
    %2130 = vmatpush1.msra.mxu0 %v2079
    %2131 = vmatprep.subr.mxu0 %v2078
    %2132 = vmatpush1.msra.mxu0 %v2077
    %2133 = vmatprep.subr.mxu0 %v2076
    %2134 = vmatpush1.msra.mxu0 %v2075
    %2135 = vmatprep.subr.mxu0 %v2074
    %2136 = vmatpush1.msra.mxu0 %v2073
    %2137 = vmatprep.subr.mxu0 %v2072
    %2138 = vmatpush1.msra.mxu0 %v2071
    %2139 = vmatprep.subr.mxu0 %v2070
    %2140 = vmatpush1.msra.mxu0 %v2069
    %2141 = vmatprep.subr.mxu0 %v2068
    %2142 = vmatpush1.msra.mxu0 %v2067
    %2143 = vmatprep.subr.mxu0 %v2066
    %2144 = vmatpush1.msra.mxu0 %v2065
    %2145 = vmatprep.subr.mxu0 %v2064
    %2146 = vmatpush1.msra.mxu0 %v2063
    %2147 = vmatprep.subr.mxu0 %v2062
    %2148 = vmatpush1.msra.mxu0 %v2061
    %2149 = vmatprep.subr.mxu0 %v2060
    %2150 = vmatpush1.msra.mxu0 %v2059
    %2151 = vmatprep.subr.mxu0 %v2058
    %2152 = vmatpush1.msra.mxu0 %v2057
    %2153 = vmatprep.subr.mxu0 %v2120
    %2154 = vmatpush2.msra.mxu0 %v2119
    %2155 = vmatprep.subr.mxu0 %v2118
    %2156 = vmatpush2.msra.mxu0 %v2117
    %2157 = vmatprep.subr.mxu0 %v2116
    %2158 = vmatpush2.msra.mxu0 %v2115
    %2159 = vmatprep.subr.mxu0 %v2114
    %2160 = vmatpush2.msra.mxu0 %v2113
    %2161 = vmatprep.subr.mxu0 %v2112
    %2162 = vmatpush2.msra.mxu0 %v2111
    %2163 = vmatprep.subr.mxu0 %v2110
    %2164 = vmatpush2.msra.mxu0 %v2109
    %2165 = vmatprep.subr.mxu0 %v2108
    %2166 = vmatpush2.msra.mxu0 %v2107
    %2167 = vmatprep.subr.mxu0 %v2106
    %2168 = vmatpush2.msra.mxu0 %v2105
    %2169 = vmatprep.subr.mxu0 %v2104
    %2170 = vmatpush2.msra.mxu0 %v2103
    %2171 = vmatprep.subr.mxu0 %v2102
    %2172 = vmatpush2.msra.mxu0 %v2101
    %2173 = vmatprep.subr.mxu0 %v2100
    %2174 = vmatpush2.msra.mxu0 %v2099
    %2175 = vmatprep.subr.mxu0 %v2098
    %2176 = vmatpush2.msra.mxu0 %v2097
    %2177 = vmatprep.subr.mxu0 %v2096
    %2178 = vmatpush2.msra.mxu0 %v2095
    %2179 = vmatprep.subr.mxu0 %v2094
    %2180 = vmatpush2.msra.mxu0 %v2093
    %2181 = vmatprep.subr.mxu0 %v2092
    %2182 = vmatpush2.msra.mxu0 %v2091
    %2183 = vmatprep.subr.mxu0 %v2090
    %2184 = vmatpush2.msra.mxu0 %v2089
    %2185 = vmatprep.mubr.f32.mxu0 %v1928
    %2186 = vmatmul.mubr.f32.gmra.mxu0 %v1926
    %v2187 = vpop.f32.mrf.mxu0
    %v2188 = vadd.f32 0.0, %v2187
    %v2189 = vpop.f32.mrf.mxu0
    %v2190 = vadd.f32 0.0, %v2189
    %2191 = vdwg.mxu0
    %v2192 = vlaneseq
    %v2193 = vshrl.u32 %v2192, 7
    %s2194 = sld [smem:[#allocation2]]
    %s2195 = sadd.s32 %s2194, 1
    %p2196 = scmp.lt.s32.totalorder %s2195, 0
    %s2197 = ssub.s32 0, %s2195
    %s2198 = scalar_select %p2196, %s2197, %s2195
    %s2199 = sand.u32 %s2198, 255
    %s2200 = ssub.s32 0, %s2199
    %s2201 = scalar_select %p2196, %s2200, %s2199
    %s2202 = sand.u32 %s2201, 255
    %s2203 = sand.u32 %s2202, 127
    %s2204 = sshrl.u32 %s2202, 7
    %2205 = vrot.lane.b32.xlu0 %v2188, %s2203
    %v2206 = vpop.permute.xlu0 %2205
    %2207 = vrot.lane.b32.xlu0 %v2190, %s2203
    %v2208 = vpop.permute.xlu0 %2207
    %v2209 = vstv %s2203
    %v2210 = vlaneseq
    %v2211 = vand.u32 %v2210, 127
    %vm2212 = vcmp.lt.s32.totalorder %v2211, %v2209
    %v2213 = vsel %vm2212, %v2206, %v2208
    %v2214 = vsel %vm2212, %v2208, %v2206
    %s2215 = sand.u32 %s2204, 1
    %v2216 = vstv %s2215
    %vm2217 = vcmp.ne.s32.totalorder %v2216, 0
    %v2218 = vsel %vm2217, %v2213, %v2214
    %v2219 = vsel %vm2217, %v2214, %v2213
    %vm2220 = vcmp.eq.s32.totalorder %v2193, 0
    %v2221 = vsel %vm2220, 1, 0
    %v2222 = vcvt.s32.f32 %v2221
    %v2223 = vmul.f32 %v2218, %v2222
    %v2224 = vmul.f32 %v2219, %v2222
    %v2225 = vadd.f32 %v2223, 0.0
    %v2226 = vadd.f32 %v2224, 0.0
    %s2227 = sld [smem:[#allocation2 + $0x1]]
    %s2228 = sadd.s32 %s2227, 1
    %p2229 = scmp.lt.s32.totalorder %s2228, 0
    %s2230 = ssub.s32 0, %s2228
    %s2231 = scalar_select %p2229, %s2230, %s2228
    %s2232 = sand.u32 %s2231, 255
    %s2233 = ssub.s32 0, %s2232
    %s2234 = scalar_select %p2229, %s2233, %s2232
    %s2235 = sand.u32 %s2234, 255
    %s2236 = sand.u32 %s2235, 127
    %s2237 = sshrl.u32 %s2235, 7
    %2238 = vrot.lane.b32.xlu0 %v2188, %s2236
    %v2239 = vpop.permute.xlu0 %2238
    %2240 = vrot.lane.b32.xlu0 %v2190, %s2236
    %v2241 = vpop.permute.xlu0 %2240
    %v2242 = vstv %s2236
    %vm2243 = vcmp.lt.s32.totalorder %v2211, %v2242
    %v2244 = vsel %vm2243, %v2239, %v2241
    %v2245 = vsel %vm2243, %v2241, %v2239
    %s2246 = sand.u32 %s2237, 1
    %v2247 = vstv %s2246
    %vm2248 = vcmp.ne.s32.totalorder %v2247, 0
    %v2249 = vsel %vm2248, %v2244, %v2245
    %v2250 = vsel %vm2248, %v2245, %v2244
    %vm2251 = vcmp.eq.s32.totalorder %v2193, 1
    %v2252 = vsel %vm2251, 1, 0
    %v2253 = vcvt.s32.f32 %v2252
    %v2254 = vmul.f32 %v2249, %v2253
    %v2255 = vmul.f32 %v2250, %v2253
    %v2256 = vadd.f32 %v2225, %v2254
    %v2257 = vadd.f32 %v2226, %v2255
    %s2258 = sld [smem:[#allocation2 + $0x2]]
    %s2259 = sadd.s32 %s2258, 1
    %p2260 = scmp.lt.s32.totalorder %s2259, 0
    %s2261 = ssub.s32 0, %s2259
    %s2262 = scalar_select %p2260, %s2261, %s2259
    %s2263 = sand.u32 %s2262, 255
    %s2264 = ssub.s32 0, %s2263
    %s2265 = scalar_select %p2260, %s2264, %s2263
    %s2266 = sand.u32 %s2265, 255
    %s2267 = sand.u32 %s2266, 127
    %s2268 = sshrl.u32 %s2266, 7
    %2269 = vrot.lane.b32.xlu0 %v2188, %s2267
    %v2270 = vpop.permute.xlu0 %2269
    %2271 = vrot.lane.b32.xlu0 %v2190, %s2267
    %v2272 = vpop.permute.xlu0 %2271
    %v2273 = vstv %s2267
    %vm2274 = vcmp.lt.s32.totalorder %v2211, %v2273
    %v2275 = vsel %vm2274, %v2270, %v2272
    %v2276 = vsel %vm2274, %v2272, %v2270
    %s2277 = sand.u32 %s2268, 1
    %v2278 = vstv %s2277
    %vm2279 = vcmp.ne.s32.totalorder %v2278, 0
    %v2280 = vsel %vm2279, %v2275, %v2276
    %v2281 = vsel %vm2279, %v2276, %v2275
    %vm2282 = vcmp.eq.s32.totalorder %v2193, 2
    %v2283 = vsel %vm2282, 1, 0
    %v2284 = vcvt.s32.f32 %v2283
    %v2285 = vmul.f32 %v2280, %v2284
    %v2286 = vmul.f32 %v2281, %v2284
    %v2287 = vadd.f32 %v2256, %v2285
    %v2288 = vadd.f32 %v2257, %v2286
    %s2289 = sld [smem:[#allocation2 + $0x3]]
    %s2290 = sadd.s32 %s2289, 1
    %p2291 = scmp.lt.s32.totalorder %s2290, 0
    %s2292 = ssub.s32 0, %s2290
    %s2293 = scalar_select %p2291, %s2292, %s2290
    %s2294 = sand.u32 %s2293, 255
    %s2295 = ssub.s32 0, %s2294
    %s2296 = scalar_select %p2291, %s2295, %s2294
    %s2297 = sand.u32 %s2296, 255
    %s2298 = sand.u32 %s2297, 127
    %s2299 = sshrl.u32 %s2297, 7
    %2300 = vrot.lane.b32.xlu0 %v2188, %s2298
    %v2301 = vpop.permute.xlu0 %2300
    %2302 = vrot.lane.b32.xlu0 %v2190, %s2298
    %v2303 = vpop.permute.xlu0 %2302
    %v2304 = vstv %s2298
    %vm2305 = vcmp.lt.s32.totalorder %v2211, %v2304
    %v2306 = vsel %vm2305, %v2301, %v2303
    %v2307 = vsel %vm2305, %v2303, %v2301
    %s2308 = sand.u32 %s2299, 1
    %v2309 = vstv %s2308
    %vm2310 = vcmp.ne.s32.totalorder %v2309, 0
    %v2311 = vsel %vm2310, %v2306, %v2307
    %v2312 = vsel %vm2310, %v2307, %v2306
    %vm2313 = vcmp.eq.s32.totalorder %v2193, 3
    %v2314 = vsel %vm2313, 1, 0
    %v2315 = vcvt.s32.f32 %v2314
    %v2316 = vmul.f32 %v2311, %v2315
    %v2317 = vmul.f32 %v2312, %v2315
    %v2318 = vadd.f32 %v2287, %v2316
    %v2319 = vadd.f32 %v2288, %v2317
    %s2320 = sld [smem:[#allocation2 + $0x4]]
    %s2321 = sadd.s32 %s2320, 1
    %p2322 = scmp.lt.s32.totalorder %s2321, 0
    %s2323 = ssub.s32 0, %s2321
    %s2324 = scalar_select %p2322, %s2323, %s2321
    %s2325 = sand.u32 %s2324, 255
    %s2326 = ssub.s32 0, %s2325
    %s2327 = scalar_select %p2322, %s2326, %s2325
    %s2328 = sand.u32 %s2327, 255
    %s2329 = sand.u32 %s2328, 127
    %s2330 = sshrl.u32 %s2328, 7
    %2331 = vrot.lane.b32.xlu0 %v2188, %s2329
    %v2332 = vpop.permute.xlu0 %2331
    %2333 = vrot.lane.b32.xlu0 %v2190, %s2329
    %v2334 = vpop.permute.xlu0 %2333
    %v2335 = vstv %s2329
    %vm2336 = vcmp.lt.s32.totalorder %v2211, %v2335
    %v2337 = vsel %vm2336, %v2332, %v2334
    %v2338 = vsel %vm2336, %v2334, %v2332
    %s2339 = sand.u32 %s2330, 1
    %v2340 = vstv %s2339
    %vm2341 = vcmp.ne.s32.totalorder %v2340, 0
    %v2342 = vsel %vm2341, %v2337, %v2338
    %v2343 = vsel %vm2341, %v2338, %v2337
    %vm2344 = vcmp.eq.s32.totalorder %v2193, 4
    %v2345 = vsel %vm2344, 1, 0
    %v2346 = vcvt.s32.f32 %v2345
    %v2347 = vmul.f32 %v2342, %v2346
    %v2348 = vmul.f32 %v2343, %v2346
    %v2349 = vadd.f32 %v2318, %v2347
    %v2350 = vadd.f32 %v2319, %v2348
    %s2351 = sld [smem:[#allocation2 + $0x5]]
    %s2352 = sadd.s32 %s2351, 1
    %p2353 = scmp.lt.s32.totalorder %s2352, 0
    %s2354 = ssub.s32 0, %s2352
    %s2355 = scalar_select %p2353, %s2354, %s2352
    %s2356 = sand.u32 %s2355, 255
    %s2357 = ssub.s32 0, %s2356
    %s2358 = scalar_select %p2353, %s2357, %s2356
    %s2359 = sand.u32 %s2358, 255
    %s2360 = sand.u32 %s2359, 127
    %s2361 = sshrl.u32 %s2359, 7
    %2362 = vrot.lane.b32.xlu0 %v2188, %s2360
    %v2363 = vpop.permute.xlu0 %2362
    %2364 = vrot.lane.b32.xlu0 %v2190, %s2360
    %v2365 = vpop.permute.xlu0 %2364
    %v2366 = vstv %s2360
    %vm2367 = vcmp.lt.s32.totalorder %v2211, %v2366
    %v2368 = vsel %vm2367, %v2363, %v2365
    %v2369 = vsel %vm2367, %v2365, %v2363
    %s2370 = sand.u32 %s2361, 1
    %v2371 = vstv %s2370
    %vm2372 = vcmp.ne.s32.totalorder %v2371, 0
    %v2373 = vsel %vm2372, %v2368, %v2369
    %v2374 = vsel %vm2372, %v2369, %v2368
    %vm2375 = vcmp.eq.s32.totalorder %v2193, 5
    %v2376 = vsel %vm2375, 1, 0
    %v2377 = vcvt.s32.f32 %v2376
    %v2378 = vmul.f32 %v2373, %v2377
    %v2379 = vmul.f32 %v2374, %v2377
    %v2380 = vadd.f32 %v2349, %v2378
    %v2381 = vadd.f32 %v2350, %v2379
    %s2382 = sld [smem:[#allocation2 + $0x6]]
    %s2383 = sadd.s32 %s2382, 1
    %p2384 = scmp.lt.s32.totalorder %s2383, 0
    %s2385 = ssub.s32 0, %s2383
    %s2386 = scalar_select %p2384, %s2385, %s2383
    %s2387 = sand.u32 %s2386, 255
    %s2388 = ssub.s32 0, %s2387
    %s2389 = scalar_select %p2384, %s2388, %s2387
    %s2390 = sand.u32 %s2389, 255
    %s2391 = sand.u32 %s2390, 127
    %s2392 = sshrl.u32 %s2390, 7
    %2393 = vrot.lane.b32.xlu0 %v2188, %s2391
    %v2394 = vpop.permute.xlu0 %2393
    %2395 = vrot.lane.b32.xlu0 %v2190, %s2391
    %v2396 = vpop.permute.xlu0 %2395
    %v2397 = vstv %s2391
    %vm2398 = vcmp.lt.s32.totalorder %v2211, %v2397
    %v2399 = vsel %vm2398, %v2394, %v2396
    %v2400 = vsel %vm2398, %v2396, %v2394
    %s2401 = sand.u32 %s2392, 1
    %v2402 = vstv %s2401
    %vm2403 = vcmp.ne.s32.totalorder %v2402, 0
    %v2404 = vsel %vm2403, %v2399, %v2400
    %v2405 = vsel %vm2403, %v2400, %v2399
    %vm2406 = vcmp.eq.s32.totalorder %v2193, 6
    %v2407 = vsel %vm2406, 1, 0
    %v2408 = vcvt.s32.f32 %v2407
    %v2409 = vmul.f32 %v2404, %v2408
    %v2410 = vmul.f32 %v2405, %v2408
    %v2411 = vadd.f32 %v2380, %v2409
    %v2412 = vadd.f32 %v2381, %v2410
    %s2413 = sld [smem:[#allocation2 + $0x7]]
    %s2414 = sadd.s32 %s2413, 1
    %p2415 = scmp.lt.s32.totalorder %s2414, 0
    %s2416 = ssub.s32 0, %s2414
    %s2417 = scalar_select %p2415, %s2416, %s2414
    %s2418 = sand.u32 %s2417, 255
    %s2419 = ssub.s32 0, %s2418
    %s2420 = scalar_select %p2415, %s2419, %s2418
    %s2421 = sand.u32 %s2420, 255
    %s2422 = sand.u32 %s2421, 127
    %s2423 = sshrl.u32 %s2421, 7
    %2424 = vrot.lane.b32.xlu0 %v2188, %s2422
    %v2425 = vpop.permute.xlu0 %2424
    %2426 = vrot.lane.b32.xlu0 %v2190, %s2422
    %v2427 = vpop.permute.xlu0 %2426
    %v2428 = vstv %s2422
    %vm2429 = vcmp.lt.s32.totalorder %v2211, %v2428
    %v2430 = vsel %vm2429, %v2425, %v2427
    %v2431 = vsel %vm2429, %v2427, %v2425
    %s2432 = sand.u32 %s2423, 1
    %v2433 = vstv %s2432
    %vm2434 = vcmp.ne.s32.totalorder %v2433, 0
    %v2435 = vsel %vm2434, %v2430, %v2431
    %v2436 = vsel %vm2434, %v2431, %v2430
    %vm2437 = vcmp.eq.s32.totalorder %v2193, 7
    %v2438 = vsel %vm2437, 1, 0
    %v2439 = vcvt.s32.f32 %v2438
    %v2440 = vmul.f32 %v2435, %v2439
    %v2441 = vmul.f32 %v2436, %v2439
    %v2442 = vadd.f32 %v2411, %v2440
    %v2443 = vadd.f32 %v2412, %v2441
    %v2444 = vadd.s32 %v2211, 128
    %v2445 = vld [vmem:[%s1] sm:$0xff]
    %2446 = vset.pattern.permute.xlu0 0
    %2447 = vperm.xlu0 %2446, %v2445
    %v2448 = vpop.permute.xlu0 %2447
    %vm2449 = vcmp.le.s32.totalorder %v2211, %v2448
    %vm2450 = vcmp.le.s32.totalorder %v2444, %v2448
    %v2451 = vsel %vm2449, 1, 0
    %v2452 = vsel %vm2450, 1, 0
    %v2453 = vcvt.s32.f32 %v2451
    %v2454 = vcvt.s32.f32 %v2452
    %v2455 = vmul.f32 %v2054, %v1811
    %v2456 = vmul.f32 %v2056, %v1813
    %v2457 = vsub.f32 1.0, %v2054
    %v2458 = vsub.f32 1.0, %v2056
    %v2459 = vmul.f32 %v2457, %v2442
    %v2460 = vmul.f32 %v2458, %v2443
    %v2461 = vadd.f32 %v2455, %v2459
    %v2462 = vadd.f32 %v2456, %v2460
    %v2463 = vmul.f32 %v2453, %v2461
    %v2464 = vmul.f32 %v2454, %v2462
    %v2465 = vmax.f32 %v2463, 0.0
    %v2466 = vmax.f32 %v2464, 0.0
    %2467 = vst [vmem:[#allocation19] sm:$0xff] %v2465
    %2468 = vst [vmem:[#allocation19 + $0x8] sm:$0xff] %v2466
    // Predicated region
    $region102: #{tpu_custom_call.1} parent=1 // pred_check
      _
    $region103: #{tpu_custom_call.1} parent=1 // pred_check_branch
      %2470 = sbr.rel (0) target = $region105
    $region104: #{tpu_custom_call.1} parent=1 // pred_region
      %s2472 = ssub.s32 256, 256
      %2473 = vsyncadd [#allocation4], %s2472
      %s2475 = sshll.u32 [#allocation19], 4
      %s2476 = int_to_ptr.vmem [resolvable:$true] %s2475
      %2478 = dma.vmem_to_hbm [thread:$0]  %s2476, 256, %s15, [#allocation4]
    $region105: #{tpu_custom_call.1} parent=1 // pred_fallthru
      _
    // Predicated region
    $region106: #{tpu_custom_call.1} parent=1 // pred_check
      _
    $region107: #{tpu_custom_call.1} parent=1 // pred_check_branch
      %2480 = sbr.rel (0) target = $region109
    $region108: #{tpu_custom_call.1} parent=1 // pred_region
      %2481 = dma.done [#allocation4], 256
    $region109: #{tpu_custom_call.1} parent=1 // pred_fallthru
      _
    %2482 = vsyncpa [#allocation3], 1
    %2483 = vsyncpa [#allocation8], 1
    %2484 = vsyncpa [#allocation11], 1
    %2485 = vsyncpa [#allocation14], 1
    %2486 = vsyncpa [#allocation17], 1
    %2487 = vsyncpa [#allocation4], 1
    %2488 = vsyncpa [#allocation5], 1

</llo_original>
